<compile_context>
chip_gen: v7x
topology: tpu7x:2x2x1
jax: 0.10.0
libtpu: 0.0.40
codegen_flags: <defaults>
</compile_context>

<pallas_src>
import jax
import jax.numpy as jnp
from jax.experimental import pallas as pl
from jax.experimental.pallas import tpu as pltpu

# MXU operand dtype. bf16 operands + f32 accumulation on v5e/v6e/v7x MXUs;
# all elementwise / softmax math stays f32 (required on v5e).
MXU_DTYPE = jnp.bfloat16


# ----------------------------------------------------------------------------
# Fused per-grid-step pipeline kernel (Bb batch elements per step).
#   H = emb1 @ enc_w + enc_b            [Bb,Tc,d]
#   U = emb2 @ enc_w + enc_b            [Bb,Tq,d]
#   S[b,i,j] = wh.h_i + wu.u_j + whu.(h_i*u_j)
#            = (h_i*whu + wu).u_j + wh.h_i        (wu folded into the matmul)
#   att1 = softmax_j(S)        -> U~ = att1 @ U
#   att2 = softmax_i(max_j S)  -> H~ = att2^T @ H (batched dot_general, MXU)
#   G pieces: H, U~, H*U~, H*H~   (never concatenated)
#   M  = G @ re_w + re_b   (four (Bb*Tc,d)x(d,d) matmuls)
#   M2 = M @ m2_w + m2_b
#   log_p1 = log_softmax_Tc([G; M ] . w1)   log_p2 = log_softmax_Tc([G; M2] . w2)
# ----------------------------------------------------------------------------
def _pipeline_kernel(emb1_ref, emb2_ref, enc_w_ref, enc_b_ref,
                     att_wh_ref, att_wu_ref, att_whu_ref,
                     re_w_ref, re_b_ref, m2_w_ref, m2_b_ref,
                     w1_ref, w2_ref, p1_ref, p2_ref):
    Bb, Tc, E = emb1_ref.shape
    Tq = emb2_ref.shape[1]
    d = m2_w_ref.shape[0]
    f32 = jnp.float32
    mdt = MXU_DTYPE

    # --- Encoder: one MXU matmul over Bb*Tc (resp. Bb*Tq) rows --------------
    enc_w = enc_w_ref[...].astype(mdt)
    enc_b = enc_b_ref[...]
    ec = emb1_ref[...].reshape(Bb * Tc, E).astype(mdt)
    eq = emb2_ref[...].reshape(Bb * Tq, E).astype(mdt)
    Hf = jnp.dot(ec, enc_w, preferred_element_type=f32) + enc_b       # [Bb*Tc,d]
    Uf = jnp.dot(eq, enc_w, preferred_element_type=f32) + enc_b       # [Bb*Tq,d]
    H = Hf.reshape(Bb, Tc, d)
    U = Uf.reshape(Bb, Tq, d)

    # --- Trilinear similarity (wu folded into the batched matmul) -----------
    s_h = jnp.sum(H * att_wh_ref[...], axis=-1, keepdims=True)        # [Bb,Tc,1]
    sim_lhs = (H * att_whu_ref[...] + att_wu_ref[...]).astype(mdt)
    U_b = U.astype(mdt)
    S = jnp.einsum('bid,bjd->bij', sim_lhs, U_b,
                   preferred_element_type=f32) + s_h                  # [Bb,Tc,Tq]

    # --- Context-to-query attention: softmax over query lanes (f32) ---------
    m1 = jnp.max(S, axis=-1, keepdims=True)                           # [Bb,Tc,1]
    e1 = jnp.exp(S - m1)
    att1 = e1 * pl.reciprocal(jnp.sum(e1, axis=-1, keepdims=True), approx=True)
    u_tilde = jnp.einsum('bij,bjd->bid', att1.astype(mdt), U_b,
                         preferred_element_type=f32)                  # [Bb,Tc,d]

    # --- Query-to-context attention (reuse m1 = max_j S) --------------------
    mg = jnp.max(m1, axis=1, keepdims=True)                           # [Bb,1,1]
    e2 = jnp.exp(m1 - mg)                                             # [Bb,Tc,1]
    att2 = e2 * pl.reciprocal(jnp.sum(e2, axis=1, keepdims=True), approx=True)
    # Contract over Tc on the MXU instead of a sublane reduction.
    h_tilde = jnp.einsum('btk,btd->bkd', att2.astype(mdt), H.astype(mdt),
                         preferred_element_type=f32)                  # [Bb,1,d]

    HU = H * u_tilde                                                  # [Bb,Tc,d]
    HH = H * h_tilde                                                  # [Bb,Tc,d]

    # --- Re-encoder: M = [H,U~,H*U~,H*H~] @ re_w + re_b, no concatenation ---
    u_t2 = u_tilde.reshape(Bb * Tc, d)
    Mf = (jnp.dot(Hf.astype(mdt), re_w_ref[0].astype(mdt), preferred_element_type=f32)
          + jnp.dot(u_t2.astype(mdt), re_w_ref[1].astype(mdt), preferred_element_type=f32)
          + jnp.dot(HU.reshape(Bb * Tc, d).astype(mdt), re_w_ref[2].astype(mdt),
                    preferred_element_type=f32)
          + jnp.dot(HH.reshape(Bb * Tc, d).astype(mdt), re_w_ref[3].astype(mdt),
                    preferred_element_type=f32)
          + re_b_ref[...])                                            # [Bb*Tc,d]

    # --- Second modeling projection -----------------------------------------
    M2f = jnp.dot(Mf.astype(mdt), m2_w_ref[...].astype(mdt),
                  preferred_element_type=f32) + m2_b_ref[...]         # [Bb*Tc,d]

    M = Mf.reshape(Bb, Tc, d)
    M2 = M2f.reshape(Bb, Tc, d)
    w1 = w1_ref[...]                                                  # [5,d]
    w2 = w2_ref[...]                                                  # [5,d]

    # --- Classifier heads: one VPU accumulator, one lane reduction per head -
    def head(w, Mx):
        acc = (H * w[0:1] + u_tilde * w[1:2] + HU * w[2:3]
               + HH * w[3:4] + Mx * w[4:5])                           # [Bb,Tc,d]
        logit = jnp.sum(acc, axis=-1)                                 # [Bb,Tc] lane-dense
        mx = jnp.max(logit, axis=-1, keepdims=True)
        z = logit - mx
        lse = jnp.log(jnp.sum(jnp.exp(z), axis=-1, keepdims=True))
        return z - lse                                                # [Bb,Tc]

    p1_ref[...] = head(w1, M).astype(p1_ref.dtype)
    p2_ref[...] = head(w2, M2).astype(p2_ref.dtype)


def _pick_block_batch(B):
    # Largest batch block that (a) keeps the (Bb, Tc) output block
    # sublane-aligned (Bb % 8 == 0 or Bb == B) and (b) gives grid >= 2 when
    # B > 8 so both v7x TensorCores get work; Bb*Tc rows feed each MXU matmul.
    return 8 if B % 8 == 0 else B


def fused_pipeline(emb1, emb2, params):
    B, Tc, E = emb1.shape
    Tq = emb2.shape[1]
    d = params["enc_w"].shape[1]
    Bb = _pick_block_batch(B)
    G = B // Bb

    wrow = pl.BlockSpec((1, d), lambda g: (0, 0))
    log_p1, log_p2 = pl.pallas_call(
        _pipeline_kernel,
        out_shape=(jax.ShapeDtypeStruct((B, Tc), jnp.float32),
                   jax.ShapeDtypeStruct((B, Tc), jnp.float32)),
        grid=(G,),
        in_specs=[
            pl.BlockSpec((Bb, Tc, E), lambda g: (g, 0, 0)),   # emb1
            pl.BlockSpec((Bb, Tq, E), lambda g: (g, 0, 0)),   # emb2
            pl.BlockSpec((E, d), lambda g: (0, 0)),           # enc_w
            wrow,                                             # enc_b
            wrow,                                             # att_wh
            wrow,                                             # att_wu
            wrow,                                             # att_whu
            pl.BlockSpec((4, d, d), lambda g: (0, 0, 0)),     # re_w (4 aligned blocks)
            wrow,                                             # re_b
            pl.BlockSpec((d, d), lambda g: (0, 0)),           # m2_w
            wrow,                                             # m2_b
            pl.BlockSpec((5, d), lambda g: (0, 0)),           # cls_w1
            pl.BlockSpec((5, d), lambda g: (0, 0)),           # cls_w2
        ],
        out_specs=(pl.BlockSpec((Bb, Tc), lambda g: (g, 0)),
                   pl.BlockSpec((Bb, Tc), lambda g: (g, 0))),
        compiler_params=pltpu.CompilerParams(
            dimension_semantics=("parallel",),                # megacore on v7x
            vmem_limit_bytes=32 * 1024 * 1024),
    )(emb1, emb2,
      params["enc_w"], params["enc_b"],
      params["att_wh"], params["att_wu"], params["att_whu"],
      params["re_w"], params["re_b"],
      params["m2_w"], params["m2_b"],
      params["cls_w1"], params["cls_w2"])
    return log_p1, log_p2


# ----------------------------------------------------------------------------
# Full pipeline forward
# ----------------------------------------------------------------------------
def pipeline_forward(params, sent1, sent2):
    # Word-vector lookup (plain-JAX glue).
    # TODO(synk): fold into the kernel via scalar-prefetched token ids + DMA
    # row gather to remove the [B,T,E] HBM round-trip.
    emb1 = jnp.take(params["emb"], sent1, axis=0)             # [B, Tc, E]
    emb2 = jnp.take(params["emb"], sent2, axis=0)             # [B, Tq, E]
    return fused_pipeline(emb1, emb2, params)


def init_params(key, vocab=50, emb_dim=16, hidden=32):
    ks = jax.random.split(key, 10)
    s = 0.1
    d = hidden
    return {
        "emb":     s * jax.random.normal(ks[0], (vocab, emb_dim), jnp.float32),
        "enc_w":   s * jax.random.normal(ks[1], (emb_dim, d), jnp.float32),
        "enc_b":   jnp.zeros((1, d), jnp.float32),
        # trilinear similarity weights, stored as lane-oriented rows
        "att_wh":  s * jax.random.normal(ks[2], (1, d), jnp.float32),
        "att_wu":  s * jax.random.normal(ks[3], (1, d), jnp.float32),
        "att_whu": s * jax.random.normal(ks[4], (1, d), jnp.float32),
        # re-encoder weight: one (d,d) block per G piece [H, U~, H*U~, H*H~]
        "re_w":    s * jax.random.normal(ks[5], (4, d, d), jnp.float32),
        "re_b":    jnp.zeros((1, d), jnp.float32),
        "m2_w":    s * jax.random.normal(ks[6], (d, d), jnp.float32),
        "m2_b":    jnp.zeros((1, d), jnp.float32),
        # classifier heads: row r is the weight for piece r of [H,U~,HU~,HH~,M]
        "cls_w1":  s * jax.random.normal(ks[7], (5, d), jnp.float32),
        "cls_w2":  s * jax.random.normal(ks[8], (5, d), jnp.float32),
    }


if __name__ == "__main__":
    # Small but layout-friendly shapes: Bb=8 per grid step -> 8*16 = 128 MXU
    # rows per matmul, grid=(2,) so both v7x TensorCores get a step.
    B, Tc, Tq = 16, 16, 8
    vocab, emb_dim, hidden = 50, 16, 32

    key = jax.random.PRNGKey(0)
    kp, k1, k2 = jax.random.split(key, 3)
    params = init_params(kp, vocab=vocab, emb_dim=emb_dim, hidden=hidden)

    sent1 = jax.random.randint(k1, (B, Tc), 0, vocab)         # context token ids
    sent2 = jax.random.randint(k2, (B, Tq), 0, vocab)         # query token ids

    log_p1, log_p2 = jax.jit(pipeline_forward)(params, sent1, sent2)
    jax.block_until_ready((log_p1, log_p2))

    assert log_p1.shape == (B, Tc) and log_p2.shape == (B, Tc)
    # log-probabilities over the context axis must sum to ~1
    assert bool(jnp.allclose(jnp.exp(log_p1).sum(-1), 1.0, atol=1e-4))
    assert bool(jnp.allclose(jnp.exp(log_p2).sum(-1), 1.0, atol=1e-4))
    print("KERNEL_OK")
</pallas_src>

<mosaic_0001>
module attributes {stable_mosaic.version = 11 : i64} {
  func.func @_pipeline_kernel(%arg0: i32, %arg1: memref<8x16x16xf32, #tpu.memory_space<vmem>>, %arg2: memref<8x8x16xf32, #tpu.memory_space<vmem>>, %arg3: memref<16x32xf32, #tpu.memory_space<vmem>>, %arg4: memref<1x32xf32, #tpu.memory_space<vmem>>, %arg5: memref<1x32xf32, #tpu.memory_space<vmem>>, %arg6: memref<1x32xf32, #tpu.memory_space<vmem>>, %arg7: memref<1x32xf32, #tpu.memory_space<vmem>>, %arg8: memref<4x32x32xf32, #tpu.memory_space<vmem>>, %arg9: memref<1x32xf32, #tpu.memory_space<vmem>>, %arg10: memref<32x32xf32, #tpu.memory_space<vmem>>, %arg11: memref<1x32xf32, #tpu.memory_space<vmem>>, %arg12: memref<5x32xf32, #tpu.memory_space<vmem>>, %arg13: memref<5x32xf32, #tpu.memory_space<vmem>>, %arg14: memref<8x16xf32, #tpu.memory_space<vmem>>, %arg15: memref<8x16xf32, #tpu.memory_space<vmem>>) attributes {dimension_semantics = [#tpu.dimension_semantics<parallel>], iteration_bounds = array<i64: 2>, scalar_prefetch = 0 : i64, scratch_operands = 0 : i64, tpu.core_type = #tpu.core_type<tc>, window_params = [{transform_indices = @transform_0, window_bounds = array<i64: 8, 16, 16>}, {transform_indices = @transform_1, window_bounds = array<i64: 8, 8, 16>}, {pipeline_mode = #tpu.pipeline_mode<synchronous>, transform_indices = @transform_2, window_bounds = array<i64: 16, 32>}, {pipeline_mode = #tpu.pipeline_mode<synchronous>, transform_indices = @transform_3, window_bounds = array<i64: 1, 32>}, {pipeline_mode = #tpu.pipeline_mode<synchronous>, transform_indices = @transform_4, window_bounds = array<i64: 1, 32>}, {pipeline_mode = #tpu.pipeline_mode<synchronous>, transform_indices = @transform_5, window_bounds = array<i64: 1, 32>}, {pipeline_mode = #tpu.pipeline_mode<synchronous>, transform_indices = @transform_6, window_bounds = array<i64: 1, 32>}, {pipeline_mode = #tpu.pipeline_mode<synchronous>, transform_indices = @transform_7, window_bounds = array<i64: 4, 32, 32>}, {pipeline_mode = #tpu.pipeline_mode<synchronous>, transform_indices = @transform_8, window_bounds = array<i64: 1, 32>}, {pipeline_mode = #tpu.pipeline_mode<synchronous>, transform_indices = @transform_9, window_bounds = array<i64: 32, 32>}, {pipeline_mode = #tpu.pipeline_mode<synchronous>, transform_indices = @transform_10, window_bounds = array<i64: 1, 32>}, {pipeline_mode = #tpu.pipeline_mode<synchronous>, transform_indices = @transform_11, window_bounds = array<i64: 5, 32>}, {pipeline_mode = #tpu.pipeline_mode<synchronous>, transform_indices = @transform_12, window_bounds = array<i64: 5, 32>}, {transform_indices = @transform_13, window_bounds = array<i64: 8, 16>}, {transform_indices = @transform_14, window_bounds = array<i64: 8, 16>}]} {
    %c0 = arith.constant 0 : index
    %c0_0 = arith.constant 0 : index
    %0 = vector.load %arg3[%c0, %c0_0] : memref<16x32xf32, #tpu.memory_space<vmem>>, vector<16x32xf32>
    %1 = arith.truncf %0 : vector<16x32xf32> to vector<16x32xbf16>
    %c0_1 = arith.constant 0 : index
    %c0_2 = arith.constant 0 : index
    %2 = vector.load %arg4[%c0_1, %c0_2] : memref<1x32xf32, #tpu.memory_space<vmem>>, vector<1x32xf32>
    %c0_3 = arith.constant 0 : index
    %c0_4 = arith.constant 0 : index
    %c0_5 = arith.constant 0 : index
    %3 = vector.load %arg1[%c0_3, %c0_4, %c0_5] : memref<8x16x16xf32, #tpu.memory_space<vmem>>, vector<8x16x16xf32>
    %4 = vector.shape_cast %3 : vector<8x16x16xf32> to vector<128x16xf32>
    %5 = arith.truncf %4 : vector<128x16xf32> to vector<128x16xbf16>
    %c0_6 = arith.constant 0 : index
    %c0_7 = arith.constant 0 : index
    %c0_8 = arith.constant 0 : index
    %6 = vector.load %arg2[%c0_6, %c0_7, %c0_8] : memref<8x8x16xf32, #tpu.memory_space<vmem>>, vector<8x8x16xf32>
    %7 = vector.shape_cast %6 : vector<8x8x16xf32> to vector<64x16xf32>
    %8 = arith.truncf %7 : vector<64x16xf32> to vector<64x16xbf16>
    %cst = arith.constant dense<0.000000e+00> : vector<128x32xf32>
    %9 = tpu.matmul %5, %1, %cst {dimension_numbers = #tpu.dot_dimension_numbers<[1], [0], [0], [1], [0, 0, 1, 1], [], []>} : vector<128x16xbf16>, vector<16x32xbf16>, vector<128x32xf32> -> vector<128x32xf32>
    %10 = vector.broadcast %2 : vector<1x32xf32> to vector<128x32xf32>
    %11 = arith.addf %9, %10 : vector<128x32xf32>
    %cst_9 = arith.constant dense<0.000000e+00> : vector<64x32xf32>
    %12 = tpu.matmul %8, %1, %cst_9 {dimension_numbers = #tpu.dot_dimension_numbers<[1], [0], [0], [1], [0, 0, 1, 1], [], []>} : vector<64x16xbf16>, vector<16x32xbf16>, vector<64x32xf32> -> vector<64x32xf32>
    %13 = vector.broadcast %2 : vector<1x32xf32> to vector<64x32xf32>
    %14 = arith.addf %12, %13 : vector<64x32xf32>
    %15 = vector.shape_cast %11 : vector<128x32xf32> to vector<8x16x32xf32>
    %16 = vector.shape_cast %14 : vector<64x32xf32> to vector<8x8x32xf32>
    %c0_10 = arith.constant 0 : index
    %c0_11 = arith.constant 0 : index
    %17 = vector.load %arg5[%c0_10, %c0_11] : memref<1x32xf32, #tpu.memory_space<vmem>>, vector<1x32xf32>
    %18 = vector.shape_cast %17 : vector<1x32xf32> to vector<1x1x32xf32>
    %19 = vector.broadcast %18 : vector<1x1x32xf32> to vector<8x16x32xf32>
    %20 = arith.mulf %15, %19 : vector<8x16x32xf32>
    %cst_12 = arith.constant dense<0.000000e+00> : vector<8x16xf32>
    %21 = vector.multi_reduction <add>, %20, %cst_12 [2] : vector<8x16x32xf32> to vector<8x16xf32>
    %22 = vector.shape_cast %21 : vector<8x16xf32> to vector<8x16x1xf32>
    %c0_13 = arith.constant 0 : index
    %c0_14 = arith.constant 0 : index
    %23 = vector.load %arg7[%c0_13, %c0_14] : memref<1x32xf32, #tpu.memory_space<vmem>>, vector<1x32xf32>
    %24 = vector.shape_cast %23 : vector<1x32xf32> to vector<1x1x32xf32>
    %25 = vector.broadcast %24 : vector<1x1x32xf32> to vector<8x16x32xf32>
    %26 = arith.mulf %15, %25 : vector<8x16x32xf32>
    %c0_15 = arith.constant 0 : index
    %c0_16 = arith.constant 0 : index
    %27 = vector.load %arg6[%c0_15, %c0_16] : memref<1x32xf32, #tpu.memory_space<vmem>>, vector<1x32xf32>
    %28 = vector.shape_cast %27 : vector<1x32xf32> to vector<1x1x32xf32>
    %29 = vector.broadcast %28 : vector<1x1x32xf32> to vector<8x16x32xf32>
    %30 = arith.addf %26, %29 : vector<8x16x32xf32>
    %31 = arith.truncf %30 : vector<8x16x32xf32> to vector<8x16x32xbf16>
    %32 = arith.truncf %16 : vector<8x8x32xf32> to vector<8x8x32xbf16>
    "tpu.trace_start"() <{level = 10 : i32, message = "bid,bjd->bij"}> : () -> ()
    %cst_17 = arith.constant dense<0.000000e+00> : vector<8x16x8xf32>
    %33 = tpu.matmul %31, %32, %cst_17 {dimension_numbers = #tpu.dot_dimension_numbers<[2], [2], [1], [1], [0, 0, 0, 1, 1, 1], [0], [0]>} : vector<8x16x32xbf16>, vector<8x8x32xbf16>, vector<8x16x8xf32> -> vector<8x16x8xf32>
    "tpu.trace_stop"() : () -> ()
    %34 = vector.broadcast %22 : vector<8x16x1xf32> to vector<8x16x8xf32>
    %35 = arith.addf %33, %34 : vector<8x16x8xf32>
    %cst_18 = arith.constant dense<0xFF800000> : vector<8x16xf32>
    %36 = vector.multi_reduction <maximumf>, %35, %cst_18 [2] : vector<8x16x8xf32> to vector<8x16xf32>
    %37 = vector.shape_cast %36 : vector<8x16xf32> to vector<8x16x1xf32>
    %38 = vector.broadcast %37 : vector<8x16x1xf32> to vector<8x16x8xf32>
    %39 = arith.subf %35, %38 : vector<8x16x8xf32>
    %40 = math.exp %39 : vector<8x16x8xf32>
    %cst_19 = arith.constant dense<0.000000e+00> : vector<8x16xf32>
    %41 = vector.multi_reduction <add>, %40, %cst_19 [2] : vector<8x16x8xf32> to vector<8x16xf32>
    %42 = vector.shape_cast %41 : vector<8x16xf32> to vector<8x16x1xf32>
    %43 = tpu.reciprocal %42 {approx = true} : vector<8x16x1xf32> -> vector<8x16x1xf32>
    %44 = vector.broadcast %43 : vector<8x16x1xf32> to vector<8x16x8xf32>
    %45 = arith.mulf %40, %44 : vector<8x16x8xf32>
    %46 = arith.truncf %45 : vector<8x16x8xf32> to vector<8x16x8xbf16>
    "tpu.trace_start"() <{level = 10 : i32, message = "bij,bjd->bid"}> : () -> ()
    %cst_20 = arith.constant dense<0.000000e+00> : vector<8x16x32xf32>
    %47 = tpu.matmul %46, %32, %cst_20 {dimension_numbers = #tpu.dot_dimension_numbers<[2], [1], [1], [2], [0, 0, 0, 1, 1, 2], [0], [0]>} : vector<8x16x8xbf16>, vector<8x8x32xbf16>, vector<8x16x32xf32> -> vector<8x16x32xf32>
    "tpu.trace_stop"() : () -> ()
    %cst_21 = arith.constant dense<0xFF800000> : vector<8x1xf32>
    %48 = vector.multi_reduction <maximumf>, %37, %cst_21 [1] : vector<8x16x1xf32> to vector<8x1xf32>
    %49 = vector.shape_cast %48 : vector<8x1xf32> to vector<8x1x1xf32>
    %50 = vector.broadcast %49 : vector<8x1x1xf32> to vector<8x16x1xf32>
    %51 = arith.subf %37, %50 : vector<8x16x1xf32>
    %52 = math.exp %51 : vector<8x16x1xf32>
    %cst_22 = arith.constant dense<0.000000e+00> : vector<8x1xf32>
    %53 = vector.multi_reduction <add>, %52, %cst_22 [1] : vector<8x16x1xf32> to vector<8x1xf32>
    %54 = vector.shape_cast %53 : vector<8x1xf32> to vector<8x1x1xf32>
    %55 = tpu.reciprocal %54 {approx = true} : vector<8x1x1xf32> -> vector<8x1x1xf32>
    %56 = vector.broadcast %55 : vector<8x1x1xf32> to vector<8x16x1xf32>
    %57 = arith.mulf %52, %56 : vector<8x16x1xf32>
    %58 = arith.truncf %57 : vector<8x16x1xf32> to vector<8x16x1xbf16>
    %59 = arith.truncf %15 : vector<8x16x32xf32> to vector<8x16x32xbf16>
    "tpu.trace_start"() <{level = 10 : i32, message = "btk,btd->bkd"}> : () -> ()
    %cst_23 = arith.constant dense<0.000000e+00> : vector<8x1x32xf32>
    %60 = tpu.matmul %58, %59, %cst_23 {dimension_numbers = #tpu.dot_dimension_numbers<[1], [1], [2], [2], [0, 0, 0, 2, 1, 2], [0], [0]>} : vector<8x16x1xbf16>, vector<8x16x32xbf16>, vector<8x1x32xf32> -> vector<8x1x32xf32>
    "tpu.trace_stop"() : () -> ()
    %61 = arith.mulf %15, %47 : vector<8x16x32xf32>
    %62 = vector.broadcast %60 : vector<8x1x32xf32> to vector<8x16x32xf32>
    %63 = arith.mulf %15, %62 : vector<8x16x32xf32>
    %64 = vector.shape_cast %47 : vector<8x16x32xf32> to vector<128x32xf32>
    %65 = arith.truncf %11 : vector<128x32xf32> to vector<128x32xbf16>
    %c0_24 = arith.constant 0 : index
    %c0_25 = arith.constant 0 : index
    %c0_26 = arith.constant 0 : index
    %66 = vector.load %arg8[%c0_24, %c0_25, %c0_26] : memref<4x32x32xf32, #tpu.memory_space<vmem>>, vector<1x32x32xf32>
    %67 = vector.shape_cast %66 : vector<1x32x32xf32> to vector<32x32xf32>
    %68 = arith.truncf %67 : vector<32x32xf32> to vector<32x32xbf16>
    %cst_27 = arith.constant dense<0.000000e+00> : vector<128x32xf32>
    %69 = tpu.matmul %65, %68, %cst_27 {dimension_numbers = #tpu.dot_dimension_numbers<[1], [0], [0], [1], [0, 0, 1, 1], [], []>} : vector<128x32xbf16>, vector<32x32xbf16>, vector<128x32xf32> -> vector<128x32xf32>
    %70 = arith.truncf %64 : vector<128x32xf32> to vector<128x32xbf16>
    %c1 = arith.constant 1 : index
    %c0_28 = arith.constant 0 : index
    %c0_29 = arith.constant 0 : index
    %71 = vector.load %arg8[%c1, %c0_28, %c0_29] : memref<4x32x32xf32, #tpu.memory_space<vmem>>, vector<1x32x32xf32>
    %72 = vector.shape_cast %71 : vector<1x32x32xf32> to vector<32x32xf32>
    %73 = arith.truncf %72 : vector<32x32xf32> to vector<32x32xbf16>
    %cst_30 = arith.constant dense<0.000000e+00> : vector<128x32xf32>
    %74 = tpu.matmul %70, %73, %cst_30 {dimension_numbers = #tpu.dot_dimension_numbers<[1], [0], [0], [1], [0, 0, 1, 1], [], []>} : vector<128x32xbf16>, vector<32x32xbf16>, vector<128x32xf32> -> vector<128x32xf32>
    %75 = arith.addf %69, %74 : vector<128x32xf32>
    %76 = vector.shape_cast %61 : vector<8x16x32xf32> to vector<128x32xf32>
    %77 = arith.truncf %76 : vector<128x32xf32> to vector<128x32xbf16>
    %c2 = arith.constant 2 : index
    %c0_31 = arith.constant 0 : index
    %c0_32 = arith.constant 0 : index
    %78 = vector.load %arg8[%c2, %c0_31, %c0_32] : memref<4x32x32xf32, #tpu.memory_space<vmem>>, vector<1x32x32xf32>
    %79 = vector.shape_cast %78 : vector<1x32x32xf32> to vector<32x32xf32>
    %80 = arith.truncf %79 : vector<32x32xf32> to vector<32x32xbf16>
    %cst_33 = arith.constant dense<0.000000e+00> : vector<128x32xf32>
    %81 = tpu.matmul %77, %80, %cst_33 {dimension_numbers = #tpu.dot_dimension_numbers<[1], [0], [0], [1], [0, 0, 1, 1], [], []>} : vector<128x32xbf16>, vector<32x32xbf16>, vector<128x32xf32> -> vector<128x32xf32>
    %82 = arith.addf %75, %81 : vector<128x32xf32>
    %83 = vector.shape_cast %63 : vector<8x16x32xf32> to vector<128x32xf32>
    %84 = arith.truncf %83 : vector<128x32xf32> to vector<128x32xbf16>
    %c3 = arith.constant 3 : index
    %c0_34 = arith.constant 0 : index
    %c0_35 = arith.constant 0 : index
    %85 = vector.load %arg8[%c3, %c0_34, %c0_35] : memref<4x32x32xf32, #tpu.memory_space<vmem>>, vector<1x32x32xf32>
    %86 = vector.shape_cast %85 : vector<1x32x32xf32> to vector<32x32xf32>
    %87 = arith.truncf %86 : vector<32x32xf32> to vector<32x32xbf16>
    %cst_36 = arith.constant dense<0.000000e+00> : vector<128x32xf32>
    %88 = tpu.matmul %84, %87, %cst_36 {dimension_numbers = #tpu.dot_dimension_numbers<[1], [0], [0], [1], [0, 0, 1, 1], [], []>} : vector<128x32xbf16>, vector<32x32xbf16>, vector<128x32xf32> -> vector<128x32xf32>
    %89 = arith.addf %82, %88 : vector<128x32xf32>
    %c0_37 = arith.constant 0 : index
    %c0_38 = arith.constant 0 : index
    %90 = vector.load %arg9[%c0_37, %c0_38] : memref<1x32xf32, #tpu.memory_space<vmem>>, vector<1x32xf32>
    %91 = vector.broadcast %90 : vector<1x32xf32> to vector<128x32xf32>
    %92 = arith.addf %89, %91 : vector<128x32xf32>
    %93 = arith.truncf %92 : vector<128x32xf32> to vector<128x32xbf16>
    %c0_39 = arith.constant 0 : index
    %c0_40 = arith.constant 0 : index
    %94 = vector.load %arg10[%c0_39, %c0_40] : memref<32x32xf32, #tpu.memory_space<vmem>>, vector<32x32xf32>
    %95 = arith.truncf %94 : vector<32x32xf32> to vector<32x32xbf16>
    %cst_41 = arith.constant dense<0.000000e+00> : vector<128x32xf32>
    %96 = tpu.matmul %93, %95, %cst_41 {dimension_numbers = #tpu.dot_dimension_numbers<[1], [0], [0], [1], [0, 0, 1, 1], [], []>} : vector<128x32xbf16>, vector<32x32xbf16>, vector<128x32xf32> -> vector<128x32xf32>
    %c0_42 = arith.constant 0 : index
    %c0_43 = arith.constant 0 : index
    %97 = vector.load %arg11[%c0_42, %c0_43] : memref<1x32xf32, #tpu.memory_space<vmem>>, vector<1x32xf32>
    %98 = vector.broadcast %97 : vector<1x32xf32> to vector<128x32xf32>
    %99 = arith.addf %96, %98 : vector<128x32xf32>
    %100 = vector.shape_cast %92 : vector<128x32xf32> to vector<8x16x32xf32>
    %101 = vector.shape_cast %99 : vector<128x32xf32> to vector<8x16x32xf32>
    %c0_44 = arith.constant 0 : index
    %c0_45 = arith.constant 0 : index
    %102 = vector.load %arg12[%c0_44, %c0_45] : memref<5x32xf32, #tpu.memory_space<vmem>>, vector<5x32xf32>
    %c0_46 = arith.constant 0 : index
    %c0_47 = arith.constant 0 : index
    %103 = vector.load %arg13[%c0_46, %c0_47] : memref<5x32xf32, #tpu.memory_space<vmem>>, vector<5x32xf32>
    %104 = vector.extract_strided_slice %102 {offsets = [0, 0], sizes = [1, 32], strides = [1, 1]} : vector<5x32xf32> to vector<1x32xf32>
    %105 = vector.shape_cast %104 : vector<1x32xf32> to vector<1x1x32xf32>
    %106 = vector.broadcast %105 : vector<1x1x32xf32> to vector<8x16x32xf32>
    %107 = arith.mulf %15, %106 : vector<8x16x32xf32>
    %108 = vector.extract_strided_slice %102 {offsets = [1, 0], sizes = [1, 32], strides = [1, 1]} : vector<5x32xf32> to vector<1x32xf32>
    %109 = vector.shape_cast %108 : vector<1x32xf32> to vector<1x1x32xf32>
    %110 = vector.broadcast %109 : vector<1x1x32xf32> to vector<8x16x32xf32>
    %111 = arith.mulf %47, %110 : vector<8x16x32xf32>
    %112 = arith.addf %107, %111 : vector<8x16x32xf32>
    %113 = vector.extract_strided_slice %102 {offsets = [2, 0], sizes = [1, 32], strides = [1, 1]} : vector<5x32xf32> to vector<1x32xf32>
    %114 = vector.shape_cast %113 : vector<1x32xf32> to vector<1x1x32xf32>
    %115 = vector.broadcast %114 : vector<1x1x32xf32> to vector<8x16x32xf32>
    %116 = arith.mulf %61, %115 : vector<8x16x32xf32>
    %117 = arith.addf %112, %116 : vector<8x16x32xf32>
    %118 = vector.extract_strided_slice %102 {offsets = [3, 0], sizes = [1, 32], strides = [1, 1]} : vector<5x32xf32> to vector<1x32xf32>
    %119 = vector.shape_cast %118 : vector<1x32xf32> to vector<1x1x32xf32>
    %120 = vector.broadcast %119 : vector<1x1x32xf32> to vector<8x16x32xf32>
    %121 = arith.mulf %63, %120 : vector<8x16x32xf32>
    %122 = arith.addf %117, %121 : vector<8x16x32xf32>
    %123 = vector.extract_strided_slice %102 {offsets = [4, 0], sizes = [1, 32], strides = [1, 1]} : vector<5x32xf32> to vector<1x32xf32>
    %124 = vector.shape_cast %123 : vector<1x32xf32> to vector<1x1x32xf32>
    %125 = vector.broadcast %124 : vector<1x1x32xf32> to vector<8x16x32xf32>
    %126 = arith.mulf %100, %125 : vector<8x16x32xf32>
    %127 = arith.addf %122, %126 : vector<8x16x32xf32>
    %cst_48 = arith.constant dense<0.000000e+00> : vector<8x16xf32>
    %128 = vector.multi_reduction <add>, %127, %cst_48 [2] : vector<8x16x32xf32> to vector<8x16xf32>
    %cst_49 = arith.constant dense<0xFF800000> : vector<8xf32>
    %129 = vector.multi_reduction <maximumf>, %128, %cst_49 [1] : vector<8x16xf32> to vector<8xf32>
    %130 = vector.shape_cast %129 : vector<8xf32> to vector<8x1xf32>
    %131 = vector.broadcast %130 : vector<8x1xf32> to vector<8x16xf32>
    %132 = arith.subf %128, %131 : vector<8x16xf32>
    %133 = math.exp %132 : vector<8x16xf32>
    %cst_50 = arith.constant dense<0.000000e+00> : vector<8xf32>
    %134 = vector.multi_reduction <add>, %133, %cst_50 [1] : vector<8x16xf32> to vector<8xf32>
    %135 = vector.shape_cast %134 : vector<8xf32> to vector<8x1xf32>
    %136 = math.log %135 : vector<8x1xf32>
    %137 = vector.broadcast %136 : vector<8x1xf32> to vector<8x16xf32>
    %138 = arith.subf %132, %137 : vector<8x16xf32>
    %c0_51 = arith.constant 0 : index
    %c0_52 = arith.constant 0 : index
    %139 = vector.load %arg14[%c0_51, %c0_52] : memref<8x16xf32, #tpu.memory_space<vmem>>, vector<8x16xf32>
    tpu.vector_store %arg14[%c0_51, %c0_52], %138 {strides = array<i32>} : memref<8x16xf32, #tpu.memory_space<vmem>>, vector<8x16xf32>,
    %140 = vector.extract_strided_slice %103 {offsets = [0, 0], sizes = [1, 32], strides = [1, 1]} : vector<5x32xf32> to vector<1x32xf32>
    %141 = vector.shape_cast %140 : vector<1x32xf32> to vector<1x1x32xf32>
    %142 = vector.broadcast %141 : vector<1x1x32xf32> to vector<8x16x32xf32>
    %143 = arith.mulf %15, %142 : vector<8x16x32xf32>
    %144 = vector.extract_strided_slice %103 {offsets = [1, 0], sizes = [1, 32], strides = [1, 1]} : vector<5x32xf32> to vector<1x32xf32>
    %145 = vector.shape_cast %144 : vector<1x32xf32> to vector<1x1x32xf32>
    %146 = vector.broadcast %145 : vector<1x1x32xf32> to vector<8x16x32xf32>
    %147 = arith.mulf %47, %146 : vector<8x16x32xf32>
    %148 = arith.addf %143, %147 : vector<8x16x32xf32>
    %149 = vector.extract_strided_slice %103 {offsets = [2, 0], sizes = [1, 32], strides = [1, 1]} : vector<5x32xf32> to vector<1x32xf32>
    %150 = vector.shape_cast %149 : vector<1x32xf32> to vector<1x1x32xf32>
    %151 = vector.broadcast %150 : vector<1x1x32xf32> to vector<8x16x32xf32>
    %152 = arith.mulf %61, %151 : vector<8x16x32xf32>
    %153 = arith.addf %148, %152 : vector<8x16x32xf32>
    %154 = vector.extract_strided_slice %103 {offsets = [3, 0], sizes = [1, 32], strides = [1, 1]} : vector<5x32xf32> to vector<1x32xf32>
    %155 = vector.shape_cast %154 : vector<1x32xf32> to vector<1x1x32xf32>
    %156 = vector.broadcast %155 : vector<1x1x32xf32> to vector<8x16x32xf32>
    %157 = arith.mulf %63, %156 : vector<8x16x32xf32>
    %158 = arith.addf %153, %157 : vector<8x16x32xf32>
    %159 = vector.extract_strided_slice %103 {offsets = [4, 0], sizes = [1, 32], strides = [1, 1]} : vector<5x32xf32> to vector<1x32xf32>
    %160 = vector.shape_cast %159 : vector<1x32xf32> to vector<1x1x32xf32>
    %161 = vector.broadcast %160 : vector<1x1x32xf32> to vector<8x16x32xf32>
    %162 = arith.mulf %101, %161 : vector<8x16x32xf32>
    %163 = arith.addf %158, %162 : vector<8x16x32xf32>
    %cst_53 = arith.constant dense<0.000000e+00> : vector<8x16xf32>
    %164 = vector.multi_reduction <add>, %163, %cst_53 [2] : vector<8x16x32xf32> to vector<8x16xf32>
    %cst_54 = arith.constant dense<0xFF800000> : vector<8xf32>
    %165 = vector.multi_reduction <maximumf>, %164, %cst_54 [1] : vector<8x16xf32> to vector<8xf32>
    %166 = vector.shape_cast %165 : vector<8xf32> to vector<8x1xf32>
    %167 = vector.broadcast %166 : vector<8x1xf32> to vector<8x16xf32>
    %168 = arith.subf %164, %167 : vector<8x16xf32>
    %169 = math.exp %168 : vector<8x16xf32>
    %cst_55 = arith.constant dense<0.000000e+00> : vector<8xf32>
    %170 = vector.multi_reduction <add>, %169, %cst_55 [1] : vector<8x16xf32> to vector<8xf32>
    %171 = vector.shape_cast %170 : vector<8xf32> to vector<8x1xf32>
    %172 = math.log %171 : vector<8x1xf32>
    %173 = vector.broadcast %172 : vector<8x1xf32> to vector<8x16xf32>
    %174 = arith.subf %168, %173 : vector<8x16xf32>
    %c0_56 = arith.constant 0 : index
    %c0_57 = arith.constant 0 : index
    %175 = vector.load %arg15[%c0_56, %c0_57] : memref<8x16xf32, #tpu.memory_space<vmem>>, vector<8x16xf32>
    tpu.vector_store %arg15[%c0_56, %c0_57], %174 {strides = array<i32>} : memref<8x16xf32, #tpu.memory_space<vmem>>, vector<8x16xf32>,
    return
  }
  func.func @transform_0(%arg0: i32) -> (i32, i32, i32) {
    %c0_i32 = arith.constant 0 : i32
    %c0_i32_0 = arith.constant 0 : i32
    %c0_i32_1 = arith.constant 0 : i32
    return %arg0, %c0_i32, %c0_i32_0 : i32, i32, i32
  }
  func.func @transform_1(%arg0: i32) -> (i32, i32, i32) {
    %c0_i32 = arith.constant 0 : i32
    %c0_i32_0 = arith.constant 0 : i32
    %c0_i32_1 = arith.constant 0 : i32
    return %arg0, %c0_i32, %c0_i32_0 : i32, i32, i32
  }
  func.func @transform_2(%arg0: i32) -> (i32, i32) {
    %c0_i32 = arith.constant 0 : i32
    %c0_i32_0 = arith.constant 0 : i32
    %c0_i32_1 = arith.constant 0 : i32
    return %c0_i32, %c0_i32_0 : i32, i32
  }
  func.func @transform_3(%arg0: i32) -> (i32, i32) {
    %c0_i32 = arith.constant 0 : i32
    %c0_i32_0 = arith.constant 0 : i32
    %c0_i32_1 = arith.constant 0 : i32
    return %c0_i32, %c0_i32_0 : i32, i32
  }
  func.func @transform_4(%arg0: i32) -> (i32, i32) {
    %c0_i32 = arith.constant 0 : i32
    %c0_i32_0 = arith.constant 0 : i32
    %c0_i32_1 = arith.constant 0 : i32
    return %c0_i32, %c0_i32_0 : i32, i32
  }
  func.func @transform_5(%arg0: i32) -> (i32, i32) {
    %c0_i32 = arith.constant 0 : i32
    %c0_i32_0 = arith.constant 0 : i32
    %c0_i32_1 = arith.constant 0 : i32
    return %c0_i32, %c0_i32_0 : i32, i32
  }
  func.func @transform_6(%arg0: i32) -> (i32, i32) {
    %c0_i32 = arith.constant 0 : i32
    %c0_i32_0 = arith.constant 0 : i32
    %c0_i32_1 = arith.constant 0 : i32
    return %c0_i32, %c0_i32_0 : i32, i32
  }
  func.func @transform_7(%arg0: i32) -> (i32, i32, i32) {
    %c0_i32 = arith.constant 0 : i32
    %c0_i32_0 = arith.constant 0 : i32
    %c0_i32_1 = arith.constant 0 : i32
    %c0_i32_2 = arith.constant 0 : i32
    return %c0_i32, %c0_i32_0, %c0_i32_1 : i32, i32, i32
  }
  func.func @transform_8(%arg0: i32) -> (i32, i32) {
    %c0_i32 = arith.constant 0 : i32
    %c0_i32_0 = arith.constant 0 : i32
    %c0_i32_1 = arith.constant 0 : i32
    return %c0_i32, %c0_i32_0 : i32, i32
  }
  func.func @transform_9(%arg0: i32) -> (i32, i32) {
    %c0_i32 = arith.constant 0 : i32
    %c0_i32_0 = arith.constant 0 : i32
    %c0_i32_1 = arith.constant 0 : i32
    return %c0_i32, %c0_i32_0 : i32, i32
  }
  func.func @transform_10(%arg0: i32) -> (i32, i32) {
    %c0_i32 = arith.constant 0 : i32
    %c0_i32_0 = arith.constant 0 : i32
    %c0_i32_1 = arith.constant 0 : i32
    return %c0_i32, %c0_i32_0 : i32, i32
  }
  func.func @transform_11(%arg0: i32) -> (i32, i32) {
    %c0_i32 = arith.constant 0 : i32
    %c0_i32_0 = arith.constant 0 : i32
    %c0_i32_1 = arith.constant 0 : i32
    return %c0_i32, %c0_i32_0 : i32, i32
  }
  func.func @transform_12(%arg0: i32) -> (i32, i32) {
    %c0_i32 = arith.constant 0 : i32
    %c0_i32_0 = arith.constant 0 : i32
    %c0_i32_1 = arith.constant 0 : i32
    return %c0_i32, %c0_i32_0 : i32, i32
  }
  func.func @transform_13(%arg0: i32) -> (i32, i32) {
    %c0_i32 = arith.constant 0 : i32
    %c0_i32_0 = arith.constant 0 : i32
    return %arg0, %c0_i32 : i32, i32
  }
  func.func @transform_14(%arg0: i32) -> (i32, i32) {
    %c0_i32 = arith.constant 0 : i32
    %c0_i32_0 = arith.constant 0 : i32
    return %arg0, %c0_i32 : i32, i32
  }
}

</mosaic_0001>

<llo_original>
// kernel: pipeline_forward.1
$region0: #{pipeline_forward.1}
  #allocation0 [shape = 'u32[]', space=smem, size = 0x4, offset = 0x4, fixed_abs, tag = 'smem constant byte address 0x4 - core index']
  #allocation1 [shape = 'u32[144,128]{1,0:T(1,128)}', space=vmem, size = 0x12000, scoped, tag = 'internal scratch']
  %s0 = inlined_call_operand.vmem [shape: f32[16,16,16], index: 0, kind: input, shape index: {}]
  %s1 = inlined_call_operand.vmem [shape: f32[16,8,16], index: 1, kind: input, shape index: {}]
  %s2 = inlined_call_operand.vmem [shape: f32[16,32], index: 2, kind: input, shape index: {}]
  %s3 = inlined_call_operand.vmem [shape: f32[1,32], index: 3, kind: input, shape index: {}]
  %s4 = inlined_call_operand.vmem [shape: f32[1,32], index: 4, kind: input, shape index: {}]
  %s5 = inlined_call_operand.vmem [shape: f32[1,32], index: 5, kind: input, shape index: {}]
  %s6 = inlined_call_operand.vmem [shape: f32[1,32], index: 6, kind: input, shape index: {}]
  %s7 = inlined_call_operand.vmem [shape: f32[4,32,32], index: 7, kind: input, shape index: {}]
  %s8 = inlined_call_operand.vmem [shape: f32[1,32], index: 8, kind: input, shape index: {}]
  %s9 = inlined_call_operand.vmem [shape: f32[32,32], index: 9, kind: input, shape index: {}]
  %s10 = inlined_call_operand.vmem [shape: f32[1,32], index: 10, kind: input, shape index: {}]
  %s11 = inlined_call_operand.vmem [shape: f32[5,32], index: 11, kind: input, shape index: {}]
  %s12 = inlined_call_operand.vmem [shape: f32[5,32], index: 12, kind: input, shape index: {}]
  %s13 = inlined_call_operand.hbm [shape: f32[16,16], index: 13, kind: output, shape index: {0}]
  %s14 = inlined_call_operand.hbm [shape: f32[16,16], index: 14, kind: output, shape index: {1}]
  %15 = xla_tuple %s13, %s14
  %s16 = sld [smem:[#allocation0]]
  $region93: #{pipeline_forward.1} parent=0
    _
  %s18 = ssub.s32 1, %s16
  %s19 = scalar_select 0, %s18, %s16
  $region1: #{pipeline_forward.1} parent=0
    #allocation2 [shape = 'u8[8192]{0}', space=vmem, size = 0x2000, scoped, tag = 'output window, operand 0']
    #allocation3 [shape = 's32[2]{0}', space=sflag, size = 0x8, scoped, tag = 'scoped memory for pipeline_forward.1']
    #allocation4 [shape = 'u8[8192]{0}', space=vmem, size = 0x2000, scoped, tag = 'output window, operand 1']
    #allocation5 [shape = 's32[2]{0}', space=sflag, size = 0x8, scoped, tag = 'scoped memory for pipeline_forward.1']
    %20 = vsyncpa [#allocation3], 0
    %s21 = scalar_lea.sflag [#allocation3], 1
    %22 = vsyncpa %s21, 0
    %23 = vsyncpa [#allocation5], 0
    %s24 = scalar_lea.sflag [#allocation5], 1
    %25 = vsyncpa %s24, 0
    loop: start=0, step=1, limit=4
    $region2: #{pipeline_forward.1} parent=1 // loop_pre_header
      _
    $region3: #{pipeline_forward.1} parent=1 // loop_header
      %s27 = sphi 0, %s31
      %p28 = scmp.ge.s32.totalorder %s27, 4
      %s37 = sphi 0, %s39
      %s40 = sphi 0, %s37
      %s41 = sphi 0, %s40
      %s57 = sphi 0, %s41
      %s63 = sphi 0, %s65
      %s66 = sphi 0, %s63
      %s67 = sphi 0, %s66
      %s83 = sphi 0, %s67
      %s87 = sphi 0, %s87
      %s89 = sphi 0, %s87
      %s90 = sphi 0, %s89
      %s104 = sphi 0, %s90
      %s108 = sphi 0, %s108
      %s110 = sphi 0, %s108
      %s111 = sphi 0, %s110
      %s125 = sphi 0, %s111
      %s129 = sphi 0, %s129
      %s131 = sphi 0, %s129
      %s132 = sphi 0, %s131
      %s146 = sphi 0, %s132
      %s150 = sphi 0, %s150
      %s152 = sphi 0, %s150
      %s153 = sphi 0, %s152
      %s167 = sphi 0, %s153
      %s171 = sphi 0, %s171
      %s173 = sphi 0, %s171
      %s174 = sphi 0, %s173
      %s188 = sphi 0, %s174
      %s192 = sphi 0, %s192
      %s194 = sphi 0, %s192
      %s195 = sphi 0, %s194
      %s209 = sphi 0, %s195
      %s213 = sphi 0, %s213
      %s215 = sphi 0, %s213
      %s216 = sphi 0, %s215
      %s230 = sphi 0, %s216
      %s234 = sphi 0, %s234
      %s236 = sphi 0, %s234
      %s237 = sphi 0, %s236
      %s251 = sphi 0, %s237
      %s255 = sphi 0, %s255
      %s257 = sphi 0, %s255
      %s258 = sphi 0, %s257
      %s272 = sphi 0, %s258
      %s276 = sphi 0, %s276
      %s278 = sphi 0, %s276
      %s279 = sphi 0, %s278
      %s293 = sphi 0, %s279
      %s297 = sphi 0, %s297
      %s299 = sphi 0, %s297
      %s300 = sphi 0, %s299
      %s314 = sphi 0, %s300
      %s320 = sphi 0, %s322
      %s323 = sphi 0, %s320
      %s324 = sphi 0, %s323
      %s340 = sphi 0, %s324
      %s346 = sphi 0, %s348
      %s349 = sphi 0, %s346
      %s350 = sphi 0, %s349
      %s366 = sphi 0, %s350
    $region4: #{pipeline_forward.1} parent=1 // loop_header_branch
      %30 = sbr.rel (%p28) target = $region8
    $region5: #{pipeline_forward.1} parent=1 // loop_body
      %s32 = ssub.s32 %s27, 1
      %s33 = ssub.s32 %s27, 2
      %s34 = sadd.s32 %s27, 1
      %s35 = ssub.s32 %s27, %s34
      %p36 = scmp.eq.s32.totalorder %s35, 0
      %s38 = sadd.s32 %s37, 1
      %s39 = scalar_select %p36, %s37, %s38
      %p42 = pneg %p36
      %p43 = scmp.eq.s32.totalorder %s27, 1
      %p44 = por %p42, %p43
      %p45 = scmp.ne.s32.totalorder %s37, %s40
      %p46 = scmp.eq.s32.totalorder %s27, 0
      %p47 = por %p45, %p46
      %p48 = scmp.ne.s32.totalorder %s37, %s40
      %p49 = scmp.eq.s32.totalorder %s32, 1
      %p50 = por %p48, %p49
      %p51 = scmp.ne.s32.totalorder %s40, %s41
      %p52 = scmp.eq.s32.totalorder %s32, 0
      %p53 = por %p51, %p52
      %p54 = scmp.ne.s32.totalorder %s40, %s41
      %p55 = scmp.eq.s32.totalorder %s33, 1
      %p56 = por %p54, %p55
      %p58 = scmp.ne.s32.totalorder %s41, %s57
      %p59 = scmp.eq.s32.totalorder %s33, 0
      %p60 = por %p58, %p59
      %s61 = ssub.s32 %s27, %s34
      %p62 = scmp.eq.s32.totalorder %s61, 0
      %s64 = sadd.s32 %s63, 1
      %s65 = scalar_select %p62, %s63, %s64
      %p68 = pneg %p62
      %p69 = scmp.eq.s32.totalorder %s27, 1
      %p70 = por %p68, %p69
      %p71 = scmp.ne.s32.totalorder %s63, %s66
      %p72 = scmp.eq.s32.totalorder %s27, 0
      %p73 = por %p71, %p72
      %p74 = scmp.ne.s32.totalorder %s63, %s66
      %p75 = scmp.eq.s32.totalorder %s32, 1
      %p76 = por %p74, %p75
      %p77 = scmp.ne.s32.totalorder %s66, %s67
      %p78 = scmp.eq.s32.totalorder %s32, 0
      %p79 = por %p77, %p78
      %p80 = scmp.ne.s32.totalorder %s66, %s67
      %p81 = scmp.eq.s32.totalorder %s33, 1
      %p82 = por %p80, %p81
      %p84 = scmp.ne.s32.totalorder %s67, %s83
      %p85 = scmp.eq.s32.totalorder %s33, 0
      %p86 = por %p84, %p85
      %s88 = sadd.s32 %s87, 1
      %p91 = scmp.eq.s32.totalorder %s27, 1
      %p92 = scmp.ne.s32.totalorder %s87, %s89
      %p93 = scmp.eq.s32.totalorder %s27, 0
      %p94 = por %p92, %p93
      %p95 = scmp.ne.s32.totalorder %s87, %s89
      %p96 = scmp.eq.s32.totalorder %s32, 1
      %p97 = por %p95, %p96
      %p98 = scmp.ne.s32.totalorder %s89, %s90
      %p99 = scmp.eq.s32.totalorder %s32, 0
      %p100 = por %p98, %p99
      %p101 = scmp.ne.s32.totalorder %s89, %s90
      %p102 = scmp.eq.s32.totalorder %s33, 1
      %p103 = por %p101, %p102
      %p105 = scmp.ne.s32.totalorder %s90, %s104
      %p106 = scmp.eq.s32.totalorder %s33, 0
      %p107 = por %p105, %p106
      %s109 = sadd.s32 %s108, 1
      %p112 = scmp.eq.s32.totalorder %s27, 1
      %p113 = scmp.ne.s32.totalorder %s108, %s110
      %p114 = scmp.eq.s32.totalorder %s27, 0
      %p115 = por %p113, %p114
      %p116 = scmp.ne.s32.totalorder %s108, %s110
      %p117 = scmp.eq.s32.totalorder %s32, 1
      %p118 = por %p116, %p117
      %p119 = scmp.ne.s32.totalorder %s110, %s111
      %p120 = scmp.eq.s32.totalorder %s32, 0
      %p121 = por %p119, %p120
      %p122 = scmp.ne.s32.totalorder %s110, %s111
      %p123 = scmp.eq.s32.totalorder %s33, 1
      %p124 = por %p122, %p123
      %p126 = scmp.ne.s32.totalorder %s111, %s125
      %p127 = scmp.eq.s32.totalorder %s33, 0
      %p128 = por %p126, %p127
      %s130 = sadd.s32 %s129, 1
      %p133 = scmp.eq.s32.totalorder %s27, 1
      %p134 = scmp.ne.s32.totalorder %s129, %s131
      %p135 = scmp.eq.s32.totalorder %s27, 0
      %p136 = por %p134, %p135
      %p137 = scmp.ne.s32.totalorder %s129, %s131
      %p138 = scmp.eq.s32.totalorder %s32, 1
      %p139 = por %p137, %p138
      %p140 = scmp.ne.s32.totalorder %s131, %s132
      %p141 = scmp.eq.s32.totalorder %s32, 0
      %p142 = por %p140, %p141
      %p143 = scmp.ne.s32.totalorder %s131, %s132
      %p144 = scmp.eq.s32.totalorder %s33, 1
      %p145 = por %p143, %p144
      %p147 = scmp.ne.s32.totalorder %s132, %s146
      %p148 = scmp.eq.s32.totalorder %s33, 0
      %p149 = por %p147, %p148
      %s151 = sadd.s32 %s150, 1
      %p154 = scmp.eq.s32.totalorder %s27, 1
      %p155 = scmp.ne.s32.totalorder %s150, %s152
      %p156 = scmp.eq.s32.totalorder %s27, 0
      %p157 = por %p155, %p156
      %p158 = scmp.ne.s32.totalorder %s150, %s152
      %p159 = scmp.eq.s32.totalorder %s32, 1
      %p160 = por %p158, %p159
      %p161 = scmp.ne.s32.totalorder %s152, %s153
      %p162 = scmp.eq.s32.totalorder %s32, 0
      %p163 = por %p161, %p162
      %p164 = scmp.ne.s32.totalorder %s152, %s153
      %p165 = scmp.eq.s32.totalorder %s33, 1
      %p166 = por %p164, %p165
      %p168 = scmp.ne.s32.totalorder %s153, %s167
      %p169 = scmp.eq.s32.totalorder %s33, 0
      %p170 = por %p168, %p169
      %s172 = sadd.s32 %s171, 1
      %p175 = scmp.eq.s32.totalorder %s27, 1
      %p176 = scmp.ne.s32.totalorder %s171, %s173
      %p177 = scmp.eq.s32.totalorder %s27, 0
      %p178 = por %p176, %p177
      %p179 = scmp.ne.s32.totalorder %s171, %s173
      %p180 = scmp.eq.s32.totalorder %s32, 1
      %p181 = por %p179, %p180
      %p182 = scmp.ne.s32.totalorder %s173, %s174
      %p183 = scmp.eq.s32.totalorder %s32, 0
      %p184 = por %p182, %p183
      %p185 = scmp.ne.s32.totalorder %s173, %s174
      %p186 = scmp.eq.s32.totalorder %s33, 1
      %p187 = por %p185, %p186
      %p189 = scmp.ne.s32.totalorder %s174, %s188
      %p190 = scmp.eq.s32.totalorder %s33, 0
      %p191 = por %p189, %p190
      %s193 = sadd.s32 %s192, 1
      %p196 = scmp.eq.s32.totalorder %s27, 1
      %p197 = scmp.ne.s32.totalorder %s192, %s194
      %p198 = scmp.eq.s32.totalorder %s27, 0
      %p199 = por %p197, %p198
      %p200 = scmp.ne.s32.totalorder %s192, %s194
      %p201 = scmp.eq.s32.totalorder %s32, 1
      %p202 = por %p200, %p201
      %p203 = scmp.ne.s32.totalorder %s194, %s195
      %p204 = scmp.eq.s32.totalorder %s32, 0
      %p205 = por %p203, %p204
      %p206 = scmp.ne.s32.totalorder %s194, %s195
      %p207 = scmp.eq.s32.totalorder %s33, 1
      %p208 = por %p206, %p207
      %p210 = scmp.ne.s32.totalorder %s195, %s209
      %p211 = scmp.eq.s32.totalorder %s33, 0
      %p212 = por %p210, %p211
      %s214 = sadd.s32 %s213, 1
      %p217 = scmp.eq.s32.totalorder %s27, 1
      %p218 = scmp.ne.s32.totalorder %s213, %s215
      %p219 = scmp.eq.s32.totalorder %s27, 0
      %p220 = por %p218, %p219
      %p221 = scmp.ne.s32.totalorder %s213, %s215
      %p222 = scmp.eq.s32.totalorder %s32, 1
      %p223 = por %p221, %p222
      %p224 = scmp.ne.s32.totalorder %s215, %s216
      %p225 = scmp.eq.s32.totalorder %s32, 0
      %p226 = por %p224, %p225
      %p227 = scmp.ne.s32.totalorder %s215, %s216
      %p228 = scmp.eq.s32.totalorder %s33, 1
      %p229 = por %p227, %p228
      %p231 = scmp.ne.s32.totalorder %s216, %s230
      %p232 = scmp.eq.s32.totalorder %s33, 0
      %p233 = por %p231, %p232
      %s235 = sadd.s32 %s234, 1
      %p238 = scmp.eq.s32.totalorder %s27, 1
      %p239 = scmp.ne.s32.totalorder %s234, %s236
      %p240 = scmp.eq.s32.totalorder %s27, 0
      %p241 = por %p239, %p240
      %p242 = scmp.ne.s32.totalorder %s234, %s236
      %p243 = scmp.eq.s32.totalorder %s32, 1
      %p244 = por %p242, %p243
      %p245 = scmp.ne.s32.totalorder %s236, %s237
      %p246 = scmp.eq.s32.totalorder %s32, 0
      %p247 = por %p245, %p246
      %p248 = scmp.ne.s32.totalorder %s236, %s237
      %p249 = scmp.eq.s32.totalorder %s33, 1
      %p250 = por %p248, %p249
      %p252 = scmp.ne.s32.totalorder %s237, %s251
      %p253 = scmp.eq.s32.totalorder %s33, 0
      %p254 = por %p252, %p253
      %s256 = sadd.s32 %s255, 1
      %p259 = scmp.eq.s32.totalorder %s27, 1
      %p260 = scmp.ne.s32.totalorder %s255, %s257
      %p261 = scmp.eq.s32.totalorder %s27, 0
      %p262 = por %p260, %p261
      %p263 = scmp.ne.s32.totalorder %s255, %s257
      %p264 = scmp.eq.s32.totalorder %s32, 1
      %p265 = por %p263, %p264
      %p266 = scmp.ne.s32.totalorder %s257, %s258
      %p267 = scmp.eq.s32.totalorder %s32, 0
      %p268 = por %p266, %p267
      %p269 = scmp.ne.s32.totalorder %s257, %s258
      %p270 = scmp.eq.s32.totalorder %s33, 1
      %p271 = por %p269, %p270
      %p273 = scmp.ne.s32.totalorder %s258, %s272
      %p274 = scmp.eq.s32.totalorder %s33, 0
      %p275 = por %p273, %p274
      %s277 = sadd.s32 %s276, 1
      %p280 = scmp.eq.s32.totalorder %s27, 1
      %p281 = scmp.ne.s32.totalorder %s276, %s278
      %p282 = scmp.eq.s32.totalorder %s27, 0
      %p283 = por %p281, %p282
      %p284 = scmp.ne.s32.totalorder %s276, %s278
      %p285 = scmp.eq.s32.totalorder %s32, 1
      %p286 = por %p284, %p285
      %p287 = scmp.ne.s32.totalorder %s278, %s279
      %p288 = scmp.eq.s32.totalorder %s32, 0
      %p289 = por %p287, %p288
      %p290 = scmp.ne.s32.totalorder %s278, %s279
      %p291 = scmp.eq.s32.totalorder %s33, 1
      %p292 = por %p290, %p291
      %p294 = scmp.ne.s32.totalorder %s279, %s293
      %p295 = scmp.eq.s32.totalorder %s33, 0
      %p296 = por %p294, %p295
      %s298 = sadd.s32 %s297, 1
      %p301 = scmp.eq.s32.totalorder %s27, 1
      %p302 = scmp.ne.s32.totalorder %s297, %s299
      %p303 = scmp.eq.s32.totalorder %s27, 0
      %p304 = por %p302, %p303
      %p305 = scmp.ne.s32.totalorder %s297, %s299
      %p306 = scmp.eq.s32.totalorder %s32, 1
      %p307 = por %p305, %p306
      %p308 = scmp.ne.s32.totalorder %s299, %s300
      %p309 = scmp.eq.s32.totalorder %s32, 0
      %p310 = por %p308, %p309
      %p311 = scmp.ne.s32.totalorder %s299, %s300
      %p312 = scmp.eq.s32.totalorder %s33, 1
      %p313 = por %p311, %p312
      %p315 = scmp.ne.s32.totalorder %s300, %s314
      %p316 = scmp.eq.s32.totalorder %s33, 0
      %p317 = por %p315, %p316
      %s318 = ssub.s32 %s27, %s34
      %p319 = scmp.eq.s32.totalorder %s318, 0
      %s321 = sadd.s32 %s320, 1
      %s322 = scalar_select %p319, %s320, %s321
      %p325 = pneg %p319
      %p326 = scmp.eq.s32.totalorder %s27, 1
      %p327 = por %p325, %p326
      %p328 = scmp.ne.s32.totalorder %s320, %s323
      %p329 = scmp.eq.s32.totalorder %s27, 0
      %p330 = por %p328, %p329
      %p331 = scmp.ne.s32.totalorder %s320, %s323
      %p332 = scmp.eq.s32.totalorder %s32, 1
      %p333 = por %p331, %p332
      %p334 = scmp.ne.s32.totalorder %s323, %s324
      %p335 = scmp.eq.s32.totalorder %s32, 0
      %p336 = por %p334, %p335
      %p337 = scmp.ne.s32.totalorder %s323, %s324
      %p338 = scmp.eq.s32.totalorder %s33, 1
      %p339 = por %p337, %p338
      %p341 = scmp.ne.s32.totalorder %s324, %s340
      %p342 = scmp.eq.s32.totalorder %s33, 0
      %p343 = por %p341, %p342
      %s344 = ssub.s32 %s27, %s34
      %p345 = scmp.eq.s32.totalorder %s344, 0
      %s347 = sadd.s32 %s346, 1
      %s348 = scalar_select %p345, %s346, %s347
      %p351 = pneg %p345
      %p352 = scmp.eq.s32.totalorder %s27, 1
      %p353 = por %p351, %p352
      %p354 = scmp.ne.s32.totalorder %s346, %s349
      %p355 = scmp.eq.s32.totalorder %s27, 0
      %p356 = por %p354, %p355
      %p357 = scmp.ne.s32.totalorder %s346, %s349
      %p358 = scmp.eq.s32.totalorder %s32, 1
      %p359 = por %p357, %p358
      %p360 = scmp.ne.s32.totalorder %s349, %s350
      %p361 = scmp.eq.s32.totalorder %s32, 0
      %p362 = por %p360, %p361
      %p363 = scmp.ne.s32.totalorder %s349, %s350
      %p364 = scmp.eq.s32.totalorder %s33, 1
      %p365 = por %p363, %p364
      %p367 = scmp.ne.s32.totalorder %s350, %s366
      %p368 = scmp.eq.s32.totalorder %s33, 0
      %p369 = por %p367, %p368
      %p370 = scmp.le.s32.totalorder 1, %s27
      %p371 = scmp.lt.s32.totalorder %s27, 3
      %p372 = pnand %p370, %p371
      %p373 = pneg %p372
      // Predicated region
      $region9: #{pipeline_forward.1} parent=5 // pred_check
        _
      $region10: #{pipeline_forward.1} parent=5 // pred_check_branch
        %375 = sbr.rel (%p372) target = $region12
      $region11: #{pipeline_forward.1} parent=5 // pred_region
        %s376 = ssub.s32 %s27, 1
        // Predicated region
        $region13: #{pipeline_forward.1} parent=11 // pred_check
          %p377 = pneg %p100
        $region14: #{pipeline_forward.1} parent=11 // pred_check_branch
          %379 = sbr.rel (%p377) target = $region16
        $region15: #{pipeline_forward.1} parent=11 // pred_region
          _
        $region16: #{pipeline_forward.1} parent=11 // pred_fallthru
          _
        // Predicated region
        $region17: #{pipeline_forward.1} parent=11 // pred_check
          %p380 = pneg %p121
        $region18: #{pipeline_forward.1} parent=11 // pred_check_branch
          %382 = sbr.rel (%p380) target = $region20
        $region19: #{pipeline_forward.1} parent=11 // pred_region
          _
        $region20: #{pipeline_forward.1} parent=11 // pred_fallthru
          _
        // Predicated region
        $region21: #{pipeline_forward.1} parent=11 // pred_check
          %p383 = pneg %p142
        $region22: #{pipeline_forward.1} parent=11 // pred_check_branch
          %385 = sbr.rel (%p383) target = $region24
        $region23: #{pipeline_forward.1} parent=11 // pred_region
          _
        $region24: #{pipeline_forward.1} parent=11 // pred_fallthru
          _
        // Predicated region
        $region25: #{pipeline_forward.1} parent=11 // pred_check
          %p386 = pneg %p163
        $region26: #{pipeline_forward.1} parent=11 // pred_check_branch
          %388 = sbr.rel (%p386) target = $region28
        $region27: #{pipeline_forward.1} parent=11 // pred_region
          _
        $region28: #{pipeline_forward.1} parent=11 // pred_fallthru
          _
        // Predicated region
        $region29: #{pipeline_forward.1} parent=11 // pred_check
          %p389 = pneg %p184
        $region30: #{pipeline_forward.1} parent=11 // pred_check_branch
          %391 = sbr.rel (%p389) target = $region32
        $region31: #{pipeline_forward.1} parent=11 // pred_region
          _
        $region32: #{pipeline_forward.1} parent=11 // pred_fallthru
          _
        // Predicated region
        $region33: #{pipeline_forward.1} parent=11 // pred_check
          %p392 = pneg %p205
        $region34: #{pipeline_forward.1} parent=11 // pred_check_branch
          %394 = sbr.rel (%p392) target = $region36
        $region35: #{pipeline_forward.1} parent=11 // pred_region
          _
        $region36: #{pipeline_forward.1} parent=11 // pred_fallthru
          _
        // Predicated region
        $region37: #{pipeline_forward.1} parent=11 // pred_check
          %p395 = pneg %p226
        $region38: #{pipeline_forward.1} parent=11 // pred_check_branch
          %397 = sbr.rel (%p395) target = $region40
        $region39: #{pipeline_forward.1} parent=11 // pred_region
          _
        $region40: #{pipeline_forward.1} parent=11 // pred_fallthru
          _
        // Predicated region
        $region41: #{pipeline_forward.1} parent=11 // pred_check
          %p398 = pneg %p247
        $region42: #{pipeline_forward.1} parent=11 // pred_check_branch
          %400 = sbr.rel (%p398) target = $region44
        $region43: #{pipeline_forward.1} parent=11 // pred_region
          _
        $region44: #{pipeline_forward.1} parent=11 // pred_fallthru
          _
        // Predicated region
        $region45: #{pipeline_forward.1} parent=11 // pred_check
          %p401 = pneg %p268
        $region46: #{pipeline_forward.1} parent=11 // pred_check_branch
          %403 = sbr.rel (%p401) target = $region48
        $region47: #{pipeline_forward.1} parent=11 // pred_region
          _
        $region48: #{pipeline_forward.1} parent=11 // pred_fallthru
          _
        // Predicated region
        $region49: #{pipeline_forward.1} parent=11 // pred_check
          %p404 = pneg %p289
        $region50: #{pipeline_forward.1} parent=11 // pred_check_branch
          %406 = sbr.rel (%p404) target = $region52
        $region51: #{pipeline_forward.1} parent=11 // pred_region
          _
        $region52: #{pipeline_forward.1} parent=11 // pred_fallthru
          _
        // Predicated region
        $region53: #{pipeline_forward.1} parent=11 // pred_check
          %p407 = pneg %p310
        $region54: #{pipeline_forward.1} parent=11 // pred_check_branch
          %409 = sbr.rel (%p407) target = $region56
        $region55: #{pipeline_forward.1} parent=11 // pred_region
          _
        $region56: #{pipeline_forward.1} parent=11 // pred_fallthru
          _
      $region12: #{pipeline_forward.1} parent=5 // pred_fallthru
        _
      %p410 = scmp.lt.s32.totalorder %s27, 2
      // Predicated region
      $region57: #{pipeline_forward.1} parent=5 // pred_check
        %p411 = pneg %p410
      $region58: #{pipeline_forward.1} parent=5 // pred_check_branch
        %413 = sbr.rel (%p411) target = $region60
      $region59: #{pipeline_forward.1} parent=5 // pred_region
        // Predicated region
        $region61: #{pipeline_forward.1} parent=59 // pred_check
          %p414 = pneg %p47
        $region62: #{pipeline_forward.1} parent=59 // pred_check_branch
          %416 = sbr.rel (%p414) target = $region64
        $region63: #{pipeline_forward.1} parent=59 // pred_region
          %s417 = smul.u32 8, %s27
          %p418 = scmp.lt.s32.totalorder %s417, 15
          %s419 = scalar_select %p418, %s417, 15
          %s420 = smul.addr %s419, 2
          %s421 = smul.addr %s420, 8
          %s422 = scalar_lea.vmem %s0, %s421
          %s423 = smul.u32 8, %s27
        $region64: #{pipeline_forward.1} parent=59 // pred_fallthru
          _
        // Predicated region
        $region65: #{pipeline_forward.1} parent=59 // pred_check
          %p424 = pneg %p73
        $region66: #{pipeline_forward.1} parent=59 // pred_check_branch
          %426 = sbr.rel (%p424) target = $region68
        $region67: #{pipeline_forward.1} parent=59 // pred_region
          %s427 = smul.u32 8, %s27
          %p428 = scmp.lt.s32.totalorder %s427, 15
          %s429 = scalar_select %p428, %s427, 15
          %s430 = smul.addr %s429, 8
          %s431 = scalar_lea.vmem %s1, %s430
          %s432 = smul.u32 8, %s27
        $region68: #{pipeline_forward.1} parent=59 // pred_fallthru
          _
      $region60: #{pipeline_forward.1} parent=5 // pred_fallthru
        _
      %p433 = scmp.le.s32.totalorder 1, %s27
      %p434 = scmp.lt.s32.totalorder %s27, 3
      %p435 = pnand %p433, %p434
      %p436 = pneg %p435
      // Predicated region
      $region69: #{pipeline_forward.1} parent=5 // pred_check
        _
      $region70: #{pipeline_forward.1} parent=5 // pred_check_branch
        %438 = sbr.rel (%p435) target = $region72
      $region71: #{pipeline_forward.1} parent=5 // pred_region
        %s439 = ssub.s32 %s27, 1
        %s440 = smul.u32 8, %s32
        %p441 = scmp.lt.s32.totalorder %s440, 15
        %s442 = scalar_select %p441, %s440, 15
        %s443 = smul.addr %s442, 2
        %s444 = smul.addr %s443, 8
        %s445 = scalar_lea.vmem %s0, %s444
        %p446 = pneg %p53
        %p447 = pneg %p50
        %s448 = smul.u32 8, %s32
        %p449 = scmp.lt.s32.totalorder %s448, 15
        %s450 = scalar_select %p449, %s448, 15
        %s451 = smul.addr %s450, 8
        %s452 = scalar_lea.vmem %s1, %s451
        %p453 = pneg %p79
        %p454 = pneg %p76
        %p455 = pneg %p100
        %p456 = pneg %p97
        %p457 = pneg %p121
        %p458 = pneg %p118
        %p459 = pneg %p142
        %p460 = pneg %p139
        %p461 = pneg %p163
        %p462 = pneg %p160
        %p463 = pneg %p184
        %p464 = pneg %p181
        %p465 = pneg %p205
        %p466 = pneg %p202
        %p467 = pneg %p226
        %p468 = pneg %p223
        %p469 = pneg %p247
        %p470 = pneg %p244
        %p471 = pneg %p268
        %p472 = pneg %p265
        %p473 = pneg %p289
        %p474 = pneg %p286
        %p475 = pneg %p310
        %p476 = pneg %p307
        %p477 = pneg %p336
        %p478 = pneg %p333
        %s479 = sand.u32 %s323, 1
        %s480 = scalar_lea.sflag [#allocation3], %s479
        %s481 = sand.u32 %s323, 1
        %s482 = smul.addr %s481, 8
        %s483 = scalar_lea.vmem [#allocation2], %s482
        %p484 = pneg %p362
        %p485 = pneg %p359
        %s486 = sand.u32 %s349, 1
        %s487 = scalar_lea.sflag [#allocation5], %s486
        %s488 = sand.u32 %s349, 1
        %s489 = smul.addr %s488, 8
        %s490 = scalar_lea.vmem [#allocation4], %s489
        %s491 = smul.u32 8, %s32
        %p492 = scmp.lt.s32.totalorder %s491, 15
        %s493 = scalar_select %p492, %s491, 15
        %s494 = smul.addr %s493, 2
        %s495 = smul.addr %s494, 8
        %s496 = scalar_lea.vmem %s0, %s495
        %s497 = smul.u32 8, %s32
        %s498 = smul.u32 8, %s32
        %p499 = scmp.lt.s32.totalorder %s498, 15
        %s500 = scalar_select %p499, %s498, 15
        %s501 = smul.addr %s500, 8
        %s502 = scalar_lea.vmem %s1, %s501
        %s503 = smul.u32 8, %s32
        %v505 = vld [vmem:[%s2] sm:$0xff]
        %v506 = vld [vmem:[%s2 + $0x8] sm:$0xff]
        %v507 = vpack.c.bf16 %v506, %v505
        %v508 = vld [vmem:[%s3] sm:$0x1]
        %v509 = vld [vmem:[%s496] sm:$0xff]
        %v510 = vld [vmem:[%s496 + $0x8] sm:$0xff]
        %v511 = vld [vmem:[%s496 + $0x10] sm:$0xff]
        %v512 = vld [vmem:[%s496 + $0x18] sm:$0xff]
        %v513 = vld [vmem:[%s496 + $0x20] sm:$0xff]
        %v514 = vld [vmem:[%s496 + $0x28] sm:$0xff]
        %v515 = vld [vmem:[%s496 + $0x30] sm:$0xff]
        %v516 = vld [vmem:[%s496 + $0x38] sm:$0xff]
        %v517 = vld [vmem:[%s496 + $0x40] sm:$0xff]
        %v518 = vld [vmem:[%s496 + $0x48] sm:$0xff]
        %v519 = vld [vmem:[%s496 + $0x50] sm:$0xff]
        %v520 = vld [vmem:[%s496 + $0x58] sm:$0xff]
        %v521 = vld [vmem:[%s496 + $0x60] sm:$0xff]
        %v522 = vld [vmem:[%s496 + $0x68] sm:$0xff]
        %v523 = vld [vmem:[%s496 + $0x70] sm:$0xff]
        %v524 = vld [vmem:[%s496 + $0x78] sm:$0xff]
        %v525 = vpack.c.bf16 %v510, %v509
        %v526 = vpack.c.bf16 %v512, %v511
        %v527 = vpack.c.bf16 %v514, %v513
        %v528 = vpack.c.bf16 %v516, %v515
        %v529 = vpack.c.bf16 %v518, %v517
        %v530 = vpack.c.bf16 %v520, %v519
        %v531 = vpack.c.bf16 %v522, %v521
        %v532 = vpack.c.bf16 %v524, %v523
        %v533 = vld [vmem:[%s502] sm:$0xff]
        %v534 = vld [vmem:[%s502 + $0x8] sm:$0xff]
        %v535 = vld [vmem:[%s502 + $0x10] sm:$0xff]
        %v536 = vld [vmem:[%s502 + $0x18] sm:$0xff]
        %v537 = vld [vmem:[%s502 + $0x20] sm:$0xff]
        %v538 = vld [vmem:[%s502 + $0x28] sm:$0xff]
        %v539 = vld [vmem:[%s502 + $0x30] sm:$0xff]
        %v540 = vld [vmem:[%s502 + $0x38] sm:$0xff]
        %v541 = vpack.c.bf16 %v534, %v533
        %v542 = vpack.c.bf16 %v536, %v535
        %v543 = vpack.c.bf16 %v538, %v537
        %v544 = vpack.c.bf16 %v540, %v539
        %v546 = vlaneseq
        %v547 = vshrl.u32 %v546, 7
        %v548 = vsub.s32 0, %v547
        %v549 = vrot.slane %v508, %v548
        %vm551 = vcmask 130048
        %v553 = vsel %vm551, %v525, 0
        %v556 = vsel %vm551, %v526, 0
        %v559 = vsel %vm551, %v527, 0
        %v562 = vsel %vm551, %v528, 0
        %v565 = vsel %vm551, %v529, 0
        %v568 = vsel %vm551, %v530, 0
        %v571 = vsel %vm551, %v531, 0
        %v574 = vsel %vm551, %v532, 0
        %576 = vmatprep.subr.bf16.mxu0 0
        %577 = vmatpush1.bf16.msra.mxu0 %v507
        %578 = vmatprep.subr.bf16.mxu0 0
        %579 = vmatpush1.bf16.msra.mxu0 0
        %580 = vmatprep.subr.bf16.mxu0 0
        %581 = vmatpush1.bf16.msra.mxu0 0
        %582 = vmatprep.subr.bf16.mxu0 0
        %583 = vmatpush1.bf16.msra.mxu0 0
        %584 = vmatprep.subr.bf16.mxu0 0
        %585 = vmatpush1.bf16.msra.mxu0 0
        %586 = vmatprep.subr.bf16.mxu0 0
        %587 = vmatpush1.bf16.msra.mxu0 0
        %588 = vmatprep.subr.bf16.mxu0 0
        %589 = vmatpush1.bf16.msra.mxu0 0
        %590 = vmatprep.subr.bf16.mxu0 0
        %591 = vmatpush1.bf16.msra.mxu0 0
        %592 = vmatprep.subr.bf16.mxu0 0
        %593 = vmatpush1.bf16.msra.mxu0 0
        %594 = vmatprep.subr.bf16.mxu0 0
        %595 = vmatpush1.bf16.msra.mxu0 0
        %596 = vmatprep.subr.bf16.mxu0 0
        %597 = vmatpush1.bf16.msra.mxu0 0
        %598 = vmatprep.subr.bf16.mxu0 0
        %599 = vmatpush1.bf16.msra.mxu0 0
        %600 = vmatprep.subr.bf16.mxu0 0
        %601 = vmatpush1.bf16.msra.mxu0 0
        %602 = vmatprep.subr.bf16.mxu0 0
        %603 = vmatpush1.bf16.msra.mxu0 0
        %604 = vmatprep.subr.bf16.mxu0 0
        %605 = vmatpush1.bf16.msra.mxu0 0
        %606 = vmatprep.subr.bf16.mxu0 0
        %607 = vmatpush1.bf16.msra.mxu0 0
        %608 = vmatprep.mubr.bf16.mxu0 0
        %609 = vmatmul.mubr.bf16.gmra.mrb[0].mxu0 %v553
        %v610 = vpop.f32.mrb[0].mxu0
        %v611 = vadd.f32 %v549, %v610
        %v612 = vpop.f32.mrb[0].mxu0
        %v613 = vpop.f32.mrb[0].mxu0
        %v614 = vadd.f32 %v549, %v613
        %v615 = vpop.f32.mrb[0].mxu0
        %616 = vmatprep.mubr.bf16.mxu0 0
        %617 = vmatmul.mubr.bf16.gmra.mrb[0].mxu0 %v556
        %v618 = vpop.f32.mrb[0].mxu0
        %v619 = vadd.f32 %v549, %v618
        %v620 = vpop.f32.mrb[0].mxu0
        %v621 = vpop.f32.mrb[0].mxu0
        %v622 = vadd.f32 %v549, %v621
        %v623 = vpop.f32.mrb[0].mxu0
        %624 = vmatprep.mubr.bf16.mxu0 0
        %625 = vmatmul.mubr.bf16.gmra.mrb[0].mxu0 %v559
        %v626 = vpop.f32.mrb[0].mxu0
        %v627 = vadd.f32 %v549, %v626
        %v628 = vpop.f32.mrb[0].mxu0
        %v629 = vpop.f32.mrb[0].mxu0
        %v630 = vadd.f32 %v549, %v629
        %v631 = vpop.f32.mrb[0].mxu0
        %632 = vmatprep.mubr.bf16.mxu0 0
        %633 = vmatmul.mubr.bf16.gmra.mrb[0].mxu0 %v562
        %v634 = vpop.f32.mrb[0].mxu0
        %v635 = vadd.f32 %v549, %v634
        %v636 = vpop.f32.mrb[0].mxu0
        %v637 = vpop.f32.mrb[0].mxu0
        %v638 = vadd.f32 %v549, %v637
        %v639 = vpop.f32.mrb[0].mxu0
        %640 = vmatprep.mubr.bf16.mxu0 0
        %641 = vmatmul.mubr.bf16.gmra.mrb[0].mxu0 %v565
        %v642 = vpop.f32.mrb[0].mxu0
        %v643 = vadd.f32 %v549, %v642
        %v644 = vpop.f32.mrb[0].mxu0
        %v645 = vpop.f32.mrb[0].mxu0
        %v646 = vadd.f32 %v549, %v645
        %v647 = vpop.f32.mrb[0].mxu0
        %648 = vmatprep.mubr.bf16.mxu0 0
        %649 = vmatmul.mubr.bf16.gmra.mrb[0].mxu0 %v568
        %v650 = vpop.f32.mrb[0].mxu0
        %v651 = vadd.f32 %v549, %v650
        %v652 = vpop.f32.mrb[0].mxu0
        %v653 = vpop.f32.mrb[0].mxu0
        %v654 = vadd.f32 %v549, %v653
        %v655 = vpop.f32.mrb[0].mxu0
        %656 = vmatprep.mubr.bf16.mxu0 0
        %657 = vmatmul.mubr.bf16.gmra.mrb[0].mxu0 %v571
        %v658 = vpop.f32.mrb[0].mxu0
        %v659 = vadd.f32 %v549, %v658
        %v660 = vpop.f32.mrb[0].mxu0
        %v661 = vpop.f32.mrb[0].mxu0
        %v662 = vadd.f32 %v549, %v661
        %v663 = vpop.f32.mrb[0].mxu0
        %664 = vmatprep.mubr.bf16.mxu0 0
        %665 = vmatmul.mubr.bf16.gmra.mrb[0].mxu0 %v574
        %v666 = vpop.f32.mrb[0].mxu0
        %v667 = vadd.f32 %v549, %v666
        %v668 = vpop.f32.mrb[0].mxu0
        %v669 = vpop.f32.mrb[0].mxu0
        %v670 = vadd.f32 %v549, %v669
        %v671 = vpop.f32.mrb[0].mxu0
        %672 = vdwg.mxu0
        %v674 = vsel %vm551, %v541, 0
        %v677 = vsel %vm551, %v542, 0
        %v680 = vsel %vm551, %v543, 0
        %v683 = vsel %vm551, %v544, 0
        %685 = vmatprep.subr.bf16.mxu0 0
        %686 = vmatpush1.bf16.msra.mxu0 %v507
        %687 = vmatprep.subr.bf16.mxu0 0
        %688 = vmatpush1.bf16.msra.mxu0 0
        %689 = vmatprep.subr.bf16.mxu0 0
        %690 = vmatpush1.bf16.msra.mxu0 0
        %691 = vmatprep.subr.bf16.mxu0 0
        %692 = vmatpush1.bf16.msra.mxu0 0
        %693 = vmatprep.subr.bf16.mxu0 0
        %694 = vmatpush1.bf16.msra.mxu0 0
        %695 = vmatprep.subr.bf16.mxu0 0
        %696 = vmatpush1.bf16.msra.mxu0 0
        %697 = vmatprep.subr.bf16.mxu0 0
        %698 = vmatpush1.bf16.msra.mxu0 0
        %699 = vmatprep.subr.bf16.mxu0 0
        %700 = vmatpush1.bf16.msra.mxu0 0
        %701 = vmatprep.subr.bf16.mxu0 0
        %702 = vmatpush1.bf16.msra.mxu0 0
        %703 = vmatprep.subr.bf16.mxu0 0
        %704 = vmatpush1.bf16.msra.mxu0 0
        %705 = vmatprep.subr.bf16.mxu0 0
        %706 = vmatpush1.bf16.msra.mxu0 0
        %707 = vmatprep.subr.bf16.mxu0 0
        %708 = vmatpush1.bf16.msra.mxu0 0
        %709 = vmatprep.subr.bf16.mxu0 0
        %710 = vmatpush1.bf16.msra.mxu0 0
        %711 = vmatprep.subr.bf16.mxu0 0
        %712 = vmatpush1.bf16.msra.mxu0 0
        %713 = vmatprep.subr.bf16.mxu0 0
        %714 = vmatpush1.bf16.msra.mxu0 0
        %715 = vmatprep.subr.bf16.mxu0 0
        %716 = vmatpush1.bf16.msra.mxu0 0
        %717 = vmatprep.mubr.bf16.mxu0 0
        %718 = vmatmul.mubr.bf16.gmra.mrb[0].mxu0 %v674
        %v719 = vpop.f32.mrb[0].mxu0
        %v720 = vadd.f32 %v549, %v719
        %v721 = vpop.f32.mrb[0].mxu0
        %v722 = vpop.f32.mrb[0].mxu0
        %v723 = vadd.f32 %v549, %v722
        %v724 = vpop.f32.mrb[0].mxu0
        %725 = vmatprep.mubr.bf16.mxu0 0
        %726 = vmatmul.mubr.bf16.gmra.mrb[0].mxu0 %v677
        %v727 = vpop.f32.mrb[0].mxu0
        %v728 = vadd.f32 %v549, %v727
        %v729 = vpop.f32.mrb[0].mxu0
        %v730 = vpop.f32.mrb[0].mxu0
        %v731 = vadd.f32 %v549, %v730
        %v732 = vpop.f32.mrb[0].mxu0
        %733 = vmatprep.mubr.bf16.mxu0 0
        %734 = vmatmul.mubr.bf16.gmra.mrb[0].mxu0 %v680
        %v735 = vpop.f32.mrb[0].mxu0
        %v736 = vadd.f32 %v549, %v735
        %v737 = vpop.f32.mrb[0].mxu0
        %v738 = vpop.f32.mrb[0].mxu0
        %v739 = vadd.f32 %v549, %v738
        %v740 = vpop.f32.mrb[0].mxu0
        %741 = vmatprep.mubr.bf16.mxu0 0
        %742 = vmatmul.mubr.bf16.gmra.mrb[0].mxu0 %v683
        %v743 = vpop.f32.mrb[0].mxu0
        %v744 = vadd.f32 %v549, %v743
        %v745 = vpop.f32.mrb[0].mxu0
        %v746 = vpop.f32.mrb[0].mxu0
        %v747 = vadd.f32 %v549, %v746
        %v748 = vpop.f32.mrb[0].mxu0
        %749 = vdwg.mxu0
        %v750 = vld [vmem:[%s4] sm:$0x1]
        %v752 = vlaneseq
        %v753 = vshrl.u32 %v752, 7
        %v754 = vsub.s32 0, %v753
        %v755 = vrot.slane %v750, %v754
        %v757 = vmul.f32 %v611, %v755
        %v758 = vmul.f32 %v614, %v755
        %v759 = vmul.f32 %v619, %v755
        %v760 = vmul.f32 %v622, %v755
        %v761 = vmul.f32 %v627, %v755
        %v762 = vmul.f32 %v630, %v755
        %v763 = vmul.f32 %v635, %v755
        %v764 = vmul.f32 %v638, %v755
        %v765 = vmul.f32 %v643, %v755
        %v766 = vmul.f32 %v646, %v755
        %v767 = vmul.f32 %v651, %v755
        %v768 = vmul.f32 %v654, %v755
        %v769 = vmul.f32 %v659, %v755
        %v770 = vmul.f32 %v662, %v755
        %v771 = vmul.f32 %v667, %v755
        %v772 = vmul.f32 %v670, %v755
        %vm773 = vcmask 261120
        %v774 = vsel %vm773, %v757, 0.0
        %775 = vadd.xlane.f32.xlu0 %v774
        %v776 = vpop.xlane.xlu0 %775
        %v777 = vsel %vm773, %v758, 0.0
        %778 = vadd.xlane.f32.xlu0 %v777
        %v779 = vpop.xlane.xlu0 %778
        %v780 = vsel %vm773, %v759, 0.0
        %781 = vadd.xlane.f32.xlu0 %v780
        %v782 = vpop.xlane.xlu0 %781
        %v783 = vsel %vm773, %v760, 0.0
        %784 = vadd.xlane.f32.xlu0 %v783
        %v785 = vpop.xlane.xlu0 %784
        %v786 = vsel %vm773, %v761, 0.0
        %787 = vadd.xlane.f32.xlu0 %v786
        %v788 = vpop.xlane.xlu0 %787
        %v789 = vsel %vm773, %v762, 0.0
        %790 = vadd.xlane.f32.xlu0 %v789
        %v791 = vpop.xlane.xlu0 %790
        %v792 = vsel %vm773, %v763, 0.0
        %793 = vadd.xlane.f32.xlu0 %v792
        %v794 = vpop.xlane.xlu0 %793
        %v795 = vsel %vm773, %v764, 0.0
        %796 = vadd.xlane.f32.xlu0 %v795
        %v797 = vpop.xlane.xlu0 %796
        %v798 = vsel %vm773, %v765, 0.0
        %799 = vadd.xlane.f32.xlu0 %v798
        %v800 = vpop.xlane.xlu0 %799
        %v801 = vsel %vm773, %v766, 0.0
        %802 = vadd.xlane.f32.xlu0 %v801
        %v803 = vpop.xlane.xlu0 %802
        %v804 = vsel %vm773, %v767, 0.0
        %805 = vadd.xlane.f32.xlu0 %v804
        %v806 = vpop.xlane.xlu0 %805
        %v807 = vsel %vm773, %v768, 0.0
        %808 = vadd.xlane.f32.xlu0 %v807
        %v809 = vpop.xlane.xlu0 %808
        %v810 = vsel %vm773, %v769, 0.0
        %811 = vadd.xlane.f32.xlu0 %v810
        %v812 = vpop.xlane.xlu0 %811
        %v813 = vsel %vm773, %v770, 0.0
        %814 = vadd.xlane.f32.xlu0 %v813
        %v815 = vpop.xlane.xlu0 %814
        %v816 = vsel %vm773, %v771, 0.0
        %817 = vadd.xlane.f32.xlu0 %v816
        %v818 = vpop.xlane.xlu0 %817
        %v819 = vsel %vm773, %v772, 0.0
        %820 = vadd.xlane.f32.xlu0 %v819
        %v821 = vpop.xlane.xlu0 %820
        %v822 = vld [vmem:[%s6] sm:$0x1]
        %v824 = vlaneseq
        %v825 = vshrl.u32 %v824, 7
        %v826 = vsub.s32 0, %v825
        %v827 = vrot.slane %v822, %v826
        %v829 = vmul.f32 %v611, %v827
        %v830 = vmul.f32 %v614, %v827
        %v831 = vmul.f32 %v619, %v827
        %v832 = vmul.f32 %v622, %v827
        %v833 = vmul.f32 %v627, %v827
        %v834 = vmul.f32 %v630, %v827
        %v835 = vmul.f32 %v635, %v827
        %v836 = vmul.f32 %v638, %v827
        %v837 = vmul.f32 %v643, %v827
        %v838 = vmul.f32 %v646, %v827
        %v839 = vmul.f32 %v651, %v827
        %v840 = vmul.f32 %v654, %v827
        %v841 = vmul.f32 %v659, %v827
        %v842 = vmul.f32 %v662, %v827
        %v843 = vmul.f32 %v667, %v827
        %v844 = vmul.f32 %v670, %v827
        %v845 = vld [vmem:[%s5] sm:$0x1]
        %v847 = vlaneseq
        %v848 = vshrl.u32 %v847, 7
        %v849 = vsub.s32 0, %v848
        %v850 = vrot.slane %v845, %v849
        %v852 = vadd.f32 %v829, %v850
        %v853 = vadd.f32 %v830, %v850
        %v854 = vadd.f32 %v831, %v850
        %v855 = vadd.f32 %v832, %v850
        %v856 = vadd.f32 %v833, %v850
        %v857 = vadd.f32 %v834, %v850
        %v858 = vadd.f32 %v835, %v850
        %v859 = vadd.f32 %v836, %v850
        %v860 = vadd.f32 %v837, %v850
        %v861 = vadd.f32 %v838, %v850
        %v862 = vadd.f32 %v839, %v850
        %v863 = vadd.f32 %v840, %v850
        %v864 = vadd.f32 %v841, %v850
        %v865 = vadd.f32 %v842, %v850
        %v866 = vadd.f32 %v843, %v850
        %v867 = vadd.f32 %v844, %v850
        %v868 = vpack.c.bf16 %v853, %v852
        %v869 = vpack.c.bf16 %v855, %v854
        %v870 = vpack.c.bf16 %v857, %v856
        %v871 = vpack.c.bf16 %v859, %v858
        %v872 = vpack.c.bf16 %v861, %v860
        %v873 = vpack.c.bf16 %v863, %v862
        %v874 = vpack.c.bf16 %v865, %v864
        %v875 = vpack.c.bf16 %v867, %v866
        %v876 = vpack.c.bf16 %v720, %v720
        %v877 = vpack.c.bf16 %v723, %v723
        %v878 = vpack.c.bf16 %v728, %v728
        %v879 = vpack.c.bf16 %v731, %v731
        %v880 = vpack.c.bf16 %v736, %v736
        %v881 = vpack.c.bf16 %v739, %v739
        %v882 = vpack.c.bf16 %v744, %v744
        %v883 = vpack.c.bf16 %v747, %v747
        %v885 = vsel %vm773, %v868, 0
        %v888 = vsel %vm773, %v876, 0
        %890 = vmatprep.subr.bf16.mxu0 0
        %891 = vmatpush1.bf16.xpose.msra.mxu0 %v888
        %892 = vmatprep.subr.bf16.mxu0 0
        %893 = vmatpush1.bf16.xpose.msra.mxu0 0
        %894 = vmatprep.subr.bf16.mxu0 0
        %895 = vmatpush1.bf16.xpose.msra.mxu0 0
        %896 = vmatprep.subr.bf16.mxu0 0
        %897 = vmatpush1.bf16.xpose.msra.mxu0 0
        %898 = vmatprep.subr.bf16.mxu0 0
        %899 = vmatpush1.bf16.xpose.msra.mxu0 0
        %900 = vmatprep.subr.bf16.mxu0 0
        %901 = vmatpush1.bf16.xpose.msra.mxu0 0
        %902 = vmatprep.subr.bf16.mxu0 0
        %903 = vmatpush1.bf16.xpose.msra.mxu0 0
        %904 = vmatprep.subr.bf16.mxu0 0
        %905 = vmatpush1.bf16.xpose.msra.mxu0 0
        %906 = vmatprep.subr.bf16.mxu0 0
        %907 = vmatpush1.bf16.xpose.msra.mxu0 0
        %908 = vmatprep.subr.bf16.mxu0 0
        %909 = vmatpush1.bf16.xpose.msra.mxu0 0
        %910 = vmatprep.subr.bf16.mxu0 0
        %911 = vmatpush1.bf16.xpose.msra.mxu0 0
        %912 = vmatprep.subr.bf16.mxu0 0
        %913 = vmatpush1.bf16.xpose.msra.mxu0 0
        %914 = vmatprep.subr.bf16.mxu0 0
        %915 = vmatpush1.bf16.xpose.msra.mxu0 0
        %916 = vmatprep.subr.bf16.mxu0 0
        %917 = vmatpush1.bf16.xpose.msra.mxu0 0
        %918 = vmatprep.subr.bf16.mxu0 0
        %919 = vmatpush1.bf16.xpose.msra.mxu0 0
        %920 = vmatprep.subr.bf16.mxu0 0
        %921 = vmatpush1.bf16.xpose.msra.mxu0 0
        %922 = vmatprep.mubr.bf16.mxu0 0
        %923 = vmatmul.mubr.bf16.gmra.mrb[0].mxu0 %v885
        %v924 = vpop.f32.mrb[0].mxu0
        %v925 = vadd.f32 %v776, %v924
        %v926 = vpop.f32.mrb[0].mxu0
        %v927 = vpop.f32.mrb[0].mxu0
        %v928 = vadd.f32 %v779, %v927
        %v929 = vpop.f32.mrb[0].mxu0
        %930 = vdwg.mxu0
        %v932 = vsel %vm773, %v869, 0
        %v935 = vsel %vm773, %v877, 0
        %937 = vmatprep.subr.bf16.mxu0 0
        %938 = vmatpush1.bf16.xpose.msra.mxu0 %v935
        %939 = vmatprep.subr.bf16.mxu0 0
        %940 = vmatpush1.bf16.xpose.msra.mxu0 0
        %941 = vmatprep.subr.bf16.mxu0 0
        %942 = vmatpush1.bf16.xpose.msra.mxu0 0
        %943 = vmatprep.subr.bf16.mxu0 0
        %944 = vmatpush1.bf16.xpose.msra.mxu0 0
        %945 = vmatprep.subr.bf16.mxu0 0
        %946 = vmatpush1.bf16.xpose.msra.mxu0 0
        %947 = vmatprep.subr.bf16.mxu0 0
        %948 = vmatpush1.bf16.xpose.msra.mxu0 0
        %949 = vmatprep.subr.bf16.mxu0 0
        %950 = vmatpush1.bf16.xpose.msra.mxu0 0
        %951 = vmatprep.subr.bf16.mxu0 0
        %952 = vmatpush1.bf16.xpose.msra.mxu0 0
        %953 = vmatprep.subr.bf16.mxu0 0
        %954 = vmatpush1.bf16.xpose.msra.mxu0 0
        %955 = vmatprep.subr.bf16.mxu0 0
        %956 = vmatpush1.bf16.xpose.msra.mxu0 0
        %957 = vmatprep.subr.bf16.mxu0 0
        %958 = vmatpush1.bf16.xpose.msra.mxu0 0
        %959 = vmatprep.subr.bf16.mxu0 0
        %960 = vmatpush1.bf16.xpose.msra.mxu0 0
        %961 = vmatprep.subr.bf16.mxu0 0
        %962 = vmatpush1.bf16.xpose.msra.mxu0 0
        %963 = vmatprep.subr.bf16.mxu0 0
        %964 = vmatpush1.bf16.xpose.msra.mxu0 0
        %965 = vmatprep.subr.bf16.mxu0 0
        %966 = vmatpush1.bf16.xpose.msra.mxu0 0
        %967 = vmatprep.subr.bf16.mxu0 0
        %968 = vmatpush1.bf16.xpose.msra.mxu0 0
        %969 = vmatprep.mubr.bf16.mxu0 0
        %970 = vmatmul.mubr.bf16.gmra.mrb[0].mxu0 %v932
        %v971 = vpop.f32.mrb[0].mxu0
        %v972 = vadd.f32 %v782, %v971
        %v973 = vpop.f32.mrb[0].mxu0
        %v974 = vpop.f32.mrb[0].mxu0
        %v975 = vadd.f32 %v785, %v974
        %v976 = vpop.f32.mrb[0].mxu0
        %977 = vdwg.mxu0
        %v979 = vsel %vm773, %v870, 0
        %v982 = vsel %vm773, %v878, 0
        %984 = vmatprep.subr.bf16.mxu0 0
        %985 = vmatpush1.bf16.xpose.msra.mxu0 %v982
        %986 = vmatprep.subr.bf16.mxu0 0
        %987 = vmatpush1.bf16.xpose.msra.mxu0 0
        %988 = vmatprep.subr.bf16.mxu0 0
        %989 = vmatpush1.bf16.xpose.msra.mxu0 0
        %990 = vmatprep.subr.bf16.mxu0 0
        %991 = vmatpush1.bf16.xpose.msra.mxu0 0
        %992 = vmatprep.subr.bf16.mxu0 0
        %993 = vmatpush1.bf16.xpose.msra.mxu0 0
        %994 = vmatprep.subr.bf16.mxu0 0
        %995 = vmatpush1.bf16.xpose.msra.mxu0 0
        %996 = vmatprep.subr.bf16.mxu0 0
        %997 = vmatpush1.bf16.xpose.msra.mxu0 0
        %998 = vmatprep.subr.bf16.mxu0 0
        %999 = vmatpush1.bf16.xpose.msra.mxu0 0
        %1000 = vmatprep.subr.bf16.mxu0 0
        %1001 = vmatpush1.bf16.xpose.msra.mxu0 0
        %1002 = vmatprep.subr.bf16.mxu0 0
        %1003 = vmatpush1.bf16.xpose.msra.mxu0 0
        %1004 = vmatprep.subr.bf16.mxu0 0
        %1005 = vmatpush1.bf16.xpose.msra.mxu0 0
        %1006 = vmatprep.subr.bf16.mxu0 0
        %1007 = vmatpush1.bf16.xpose.msra.mxu0 0
        %1008 = vmatprep.subr.bf16.mxu0 0
        %1009 = vmatpush1.bf16.xpose.msra.mxu0 0
        %1010 = vmatprep.subr.bf16.mxu0 0
        %1011 = vmatpush1.bf16.xpose.msra.mxu0 0
        %1012 = vmatprep.subr.bf16.mxu0 0
        %1013 = vmatpush1.bf16.xpose.msra.mxu0 0
        %1014 = vmatprep.subr.bf16.mxu0 0
        %1015 = vmatpush1.bf16.xpose.msra.mxu0 0
        %1016 = vmatprep.mubr.bf16.mxu0 0
        %1017 = vmatmul.mubr.bf16.gmra.mrb[0].mxu0 %v979
        %v1018 = vpop.f32.mrb[0].mxu0
        %v1019 = vadd.f32 %v788, %v1018
        %v1020 = vpop.f32.mrb[0].mxu0
        %v1021 = vpop.f32.mrb[0].mxu0
        %v1022 = vadd.f32 %v791, %v1021
        %v1023 = vpop.f32.mrb[0].mxu0
        %1024 = vdwg.mxu0
        %v1026 = vsel %vm773, %v871, 0
        %v1029 = vsel %vm773, %v879, 0
        %1031 = vmatprep.subr.bf16.mxu0 0
        %1032 = vmatpush1.bf16.xpose.msra.mxu0 %v1029
        %1033 = vmatprep.subr.bf16.mxu0 0
        %1034 = vmatpush1.bf16.xpose.msra.mxu0 0
        %1035 = vmatprep.subr.bf16.mxu0 0
        %1036 = vmatpush1.bf16.xpose.msra.mxu0 0
        %1037 = vmatprep.subr.bf16.mxu0 0
        %1038 = vmatpush1.bf16.xpose.msra.mxu0 0
        %1039 = vmatprep.subr.bf16.mxu0 0
        %1040 = vmatpush1.bf16.xpose.msra.mxu0 0
        %1041 = vmatprep.subr.bf16.mxu0 0
        %1042 = vmatpush1.bf16.xpose.msra.mxu0 0
        %1043 = vmatprep.subr.bf16.mxu0 0
        %1044 = vmatpush1.bf16.xpose.msra.mxu0 0
        %1045 = vmatprep.subr.bf16.mxu0 0
        %1046 = vmatpush1.bf16.xpose.msra.mxu0 0
        %1047 = vmatprep.subr.bf16.mxu0 0
        %1048 = vmatpush1.bf16.xpose.msra.mxu0 0
        %1049 = vmatprep.subr.bf16.mxu0 0
        %1050 = vmatpush1.bf16.xpose.msra.mxu0 0
        %1051 = vmatprep.subr.bf16.mxu0 0
        %1052 = vmatpush1.bf16.xpose.msra.mxu0 0
        %1053 = vmatprep.subr.bf16.mxu0 0
        %1054 = vmatpush1.bf16.xpose.msra.mxu0 0
        %1055 = vmatprep.subr.bf16.mxu0 0
        %1056 = vmatpush1.bf16.xpose.msra.mxu0 0
        %1057 = vmatprep.subr.bf16.mxu0 0
        %1058 = vmatpush1.bf16.xpose.msra.mxu0 0
        %1059 = vmatprep.subr.bf16.mxu0 0
        %1060 = vmatpush1.bf16.xpose.msra.mxu0 0
        %1061 = vmatprep.subr.bf16.mxu0 0
        %1062 = vmatpush1.bf16.xpose.msra.mxu0 0
        %1063 = vmatprep.mubr.bf16.mxu0 0
        %1064 = vmatmul.mubr.bf16.gmra.mrb[0].mxu0 %v1026
        %v1065 = vpop.f32.mrb[0].mxu0
        %v1066 = vadd.f32 %v794, %v1065
        %v1067 = vpop.f32.mrb[0].mxu0
        %v1068 = vpop.f32.mrb[0].mxu0
        %v1069 = vadd.f32 %v797, %v1068
        %v1070 = vpop.f32.mrb[0].mxu0
        %1071 = vdwg.mxu0
        %v1073 = vsel %vm773, %v872, 0
        %v1076 = vsel %vm773, %v880, 0
        %1078 = vmatprep.subr.bf16.mxu0 0
        %1079 = vmatpush1.bf16.xpose.msra.mxu0 %v1076
        %1080 = vmatprep.subr.bf16.mxu0 0
        %1081 = vmatpush1.bf16.xpose.msra.mxu0 0
        %1082 = vmatprep.subr.bf16.mxu0 0
        %1083 = vmatpush1.bf16.xpose.msra.mxu0 0
        %1084 = vmatprep.subr.bf16.mxu0 0
        %1085 = vmatpush1.bf16.xpose.msra.mxu0 0
        %1086 = vmatprep.subr.bf16.mxu0 0
        %1087 = vmatpush1.bf16.xpose.msra.mxu0 0
        %1088 = vmatprep.subr.bf16.mxu0 0
        %1089 = vmatpush1.bf16.xpose.msra.mxu0 0
        %1090 = vmatprep.subr.bf16.mxu0 0
        %1091 = vmatpush1.bf16.xpose.msra.mxu0 0
        %1092 = vmatprep.subr.bf16.mxu0 0
        %1093 = vmatpush1.bf16.xpose.msra.mxu0 0
        %1094 = vmatprep.subr.bf16.mxu0 0
        %1095 = vmatpush1.bf16.xpose.msra.mxu0 0
        %1096 = vmatprep.subr.bf16.mxu0 0
        %1097 = vmatpush1.bf16.xpose.msra.mxu0 0
        %1098 = vmatprep.subr.bf16.mxu0 0
        %1099 = vmatpush1.bf16.xpose.msra.mxu0 0
        %1100 = vmatprep.subr.bf16.mxu0 0
        %1101 = vmatpush1.bf16.xpose.msra.mxu0 0
        %1102 = vmatprep.subr.bf16.mxu0 0
        %1103 = vmatpush1.bf16.xpose.msra.mxu0 0
        %1104 = vmatprep.subr.bf16.mxu0 0
        %1105 = vmatpush1.bf16.xpose.msra.mxu0 0
        %1106 = vmatprep.subr.bf16.mxu0 0
        %1107 = vmatpush1.bf16.xpose.msra.mxu0 0
        %1108 = vmatprep.subr.bf16.mxu0 0
        %1109 = vmatpush1.bf16.xpose.msra.mxu0 0
        %1110 = vmatprep.mubr.bf16.mxu0 0
        %1111 = vmatmul.mubr.bf16.gmra.mrb[0].mxu0 %v1073
        %v1112 = vpop.f32.mrb[0].mxu0
        %v1113 = vadd.f32 %v800, %v1112
        %v1114 = vpop.f32.mrb[0].mxu0
        %v1115 = vpop.f32.mrb[0].mxu0
        %v1116 = vadd.f32 %v803, %v1115
        %v1117 = vpop.f32.mrb[0].mxu0
        %1118 = vdwg.mxu0
        %v1120 = vsel %vm773, %v873, 0
        %v1123 = vsel %vm773, %v881, 0
        %1125 = vmatprep.subr.bf16.mxu0 0
        %1126 = vmatpush1.bf16.xpose.msra.mxu0 %v1123
        %1127 = vmatprep.subr.bf16.mxu0 0
        %1128 = vmatpush1.bf16.xpose.msra.mxu0 0
        %1129 = vmatprep.subr.bf16.mxu0 0
        %1130 = vmatpush1.bf16.xpose.msra.mxu0 0
        %1131 = vmatprep.subr.bf16.mxu0 0
        %1132 = vmatpush1.bf16.xpose.msra.mxu0 0
        %1133 = vmatprep.subr.bf16.mxu0 0
        %1134 = vmatpush1.bf16.xpose.msra.mxu0 0
        %1135 = vmatprep.subr.bf16.mxu0 0
        %1136 = vmatpush1.bf16.xpose.msra.mxu0 0
        %1137 = vmatprep.subr.bf16.mxu0 0
        %1138 = vmatpush1.bf16.xpose.msra.mxu0 0
        %1139 = vmatprep.subr.bf16.mxu0 0
        %1140 = vmatpush1.bf16.xpose.msra.mxu0 0
        %1141 = vmatprep.subr.bf16.mxu0 0
        %1142 = vmatpush1.bf16.xpose.msra.mxu0 0
        %1143 = vmatprep.subr.bf16.mxu0 0
        %1144 = vmatpush1.bf16.xpose.msra.mxu0 0
        %1145 = vmatprep.subr.bf16.mxu0 0
        %1146 = vmatpush1.bf16.xpose.msra.mxu0 0
        %1147 = vmatprep.subr.bf16.mxu0 0
        %1148 = vmatpush1.bf16.xpose.msra.mxu0 0
        %1149 = vmatprep.subr.bf16.mxu0 0
        %1150 = vmatpush1.bf16.xpose.msra.mxu0 0
        %1151 = vmatprep.subr.bf16.mxu0 0
        %1152 = vmatpush1.bf16.xpose.msra.mxu0 0
        %1153 = vmatprep.subr.bf16.mxu0 0
        %1154 = vmatpush1.bf16.xpose.msra.mxu0 0
        %1155 = vmatprep.subr.bf16.mxu0 0
        %1156 = vmatpush1.bf16.xpose.msra.mxu0 0
        %1157 = vmatprep.mubr.bf16.mxu0 0
        %1158 = vmatmul.mubr.bf16.gmra.mrb[0].mxu0 %v1120
        %v1159 = vpop.f32.mrb[0].mxu0
        %v1160 = vadd.f32 %v806, %v1159
        %v1161 = vpop.f32.mrb[0].mxu0
        %v1162 = vpop.f32.mrb[0].mxu0
        %v1163 = vadd.f32 %v809, %v1162
        %v1164 = vpop.f32.mrb[0].mxu0
        %1165 = vdwg.mxu0
        %v1167 = vsel %vm773, %v874, 0
        %v1170 = vsel %vm773, %v882, 0
        %1172 = vmatprep.subr.bf16.mxu0 0
        %1173 = vmatpush1.bf16.xpose.msra.mxu0 %v1170
        %1174 = vmatprep.subr.bf16.mxu0 0
        %1175 = vmatpush1.bf16.xpose.msra.mxu0 0
        %1176 = vmatprep.subr.bf16.mxu0 0
        %1177 = vmatpush1.bf16.xpose.msra.mxu0 0
        %1178 = vmatprep.subr.bf16.mxu0 0
        %1179 = vmatpush1.bf16.xpose.msra.mxu0 0
        %1180 = vmatprep.subr.bf16.mxu0 0
        %1181 = vmatpush1.bf16.xpose.msra.mxu0 0
        %1182 = vmatprep.subr.bf16.mxu0 0
        %1183 = vmatpush1.bf16.xpose.msra.mxu0 0
        %1184 = vmatprep.subr.bf16.mxu0 0
        %1185 = vmatpush1.bf16.xpose.msra.mxu0 0
        %1186 = vmatprep.subr.bf16.mxu0 0
        %1187 = vmatpush1.bf16.xpose.msra.mxu0 0
        %1188 = vmatprep.subr.bf16.mxu0 0
        %1189 = vmatpush1.bf16.xpose.msra.mxu0 0
        %1190 = vmatprep.subr.bf16.mxu0 0
        %1191 = vmatpush1.bf16.xpose.msra.mxu0 0
        %1192 = vmatprep.subr.bf16.mxu0 0
        %1193 = vmatpush1.bf16.xpose.msra.mxu0 0
        %1194 = vmatprep.subr.bf16.mxu0 0
        %1195 = vmatpush1.bf16.xpose.msra.mxu0 0
        %1196 = vmatprep.subr.bf16.mxu0 0
        %1197 = vmatpush1.bf16.xpose.msra.mxu0 0
        %1198 = vmatprep.subr.bf16.mxu0 0
        %1199 = vmatpush1.bf16.xpose.msra.mxu0 0
        %1200 = vmatprep.subr.bf16.mxu0 0
        %1201 = vmatpush1.bf16.xpose.msra.mxu0 0
        %1202 = vmatprep.subr.bf16.mxu0 0
        %1203 = vmatpush1.bf16.xpose.msra.mxu0 0
        %1204 = vmatprep.mubr.bf16.mxu0 0
        %1205 = vmatmul.mubr.bf16.gmra.mrb[0].mxu0 %v1167
        %v1206 = vpop.f32.mrb[0].mxu0
        %v1207 = vadd.f32 %v812, %v1206
        %v1208 = vpop.f32.mrb[0].mxu0
        %v1209 = vpop.f32.mrb[0].mxu0
        %v1210 = vadd.f32 %v815, %v1209
        %v1211 = vpop.f32.mrb[0].mxu0
        %1212 = vdwg.mxu0
        %v1214 = vsel %vm773, %v875, 0
        %v1217 = vsel %vm773, %v883, 0
        %1219 = vmatprep.subr.bf16.mxu0 0
        %1220 = vmatpush1.bf16.xpose.msra.mxu0 %v1217
        %1221 = vmatprep.subr.bf16.mxu0 0
        %1222 = vmatpush1.bf16.xpose.msra.mxu0 0
        %1223 = vmatprep.subr.bf16.mxu0 0
        %1224 = vmatpush1.bf16.xpose.msra.mxu0 0
        %1225 = vmatprep.subr.bf16.mxu0 0
        %1226 = vmatpush1.bf16.xpose.msra.mxu0 0
        %1227 = vmatprep.subr.bf16.mxu0 0
        %1228 = vmatpush1.bf16.xpose.msra.mxu0 0
        %1229 = vmatprep.subr.bf16.mxu0 0
        %1230 = vmatpush1.bf16.xpose.msra.mxu0 0
        %1231 = vmatprep.subr.bf16.mxu0 0
        %1232 = vmatpush1.bf16.xpose.msra.mxu0 0
        %1233 = vmatprep.subr.bf16.mxu0 0
        %1234 = vmatpush1.bf16.xpose.msra.mxu0 0
        %1235 = vmatprep.subr.bf16.mxu0 0
        %1236 = vmatpush1.bf16.xpose.msra.mxu0 0
        %1237 = vmatprep.subr.bf16.mxu0 0
        %1238 = vmatpush1.bf16.xpose.msra.mxu0 0
        %1239 = vmatprep.subr.bf16.mxu0 0
        %1240 = vmatpush1.bf16.xpose.msra.mxu0 0
        %1241 = vmatprep.subr.bf16.mxu0 0
        %1242 = vmatpush1.bf16.xpose.msra.mxu0 0
        %1243 = vmatprep.subr.bf16.mxu0 0
        %1244 = vmatpush1.bf16.xpose.msra.mxu0 0
        %1245 = vmatprep.subr.bf16.mxu0 0
        %1246 = vmatpush1.bf16.xpose.msra.mxu0 0
        %1247 = vmatprep.subr.bf16.mxu0 0
        %1248 = vmatpush1.bf16.xpose.msra.mxu0 0
        %1249 = vmatprep.subr.bf16.mxu0 0
        %1250 = vmatpush1.bf16.xpose.msra.mxu0 0
        %1251 = vmatprep.mubr.bf16.mxu0 0
        %1252 = vmatmul.mubr.bf16.gmra.mrb[0].mxu0 %v1214
        %v1253 = vpop.f32.mrb[0].mxu0
        %v1254 = vadd.f32 %v818, %v1253
        %v1255 = vpop.f32.mrb[0].mxu0
        %v1256 = vpop.f32.mrb[0].mxu0
        %v1257 = vadd.f32 %v821, %v1256
        %v1258 = vpop.f32.mrb[0].mxu0
        %1259 = vdwg.mxu0
        %vm1260 = vcmask 64512
        %v1261 = vsel %vm1260, %v925, -inf
        %1262 = vmax.xlane.f32.xlu0 %v1261
        %v1263 = vpop.xlane.xlu0 %1262
        %v1264 = vsel %vm1260, %v928, -inf
        %1265 = vmax.xlane.f32.xlu0 %v1264
        %v1266 = vpop.xlane.xlu0 %1265
        %v1267 = vsel %vm1260, %v972, -inf
        %1268 = vmax.xlane.f32.xlu0 %v1267
        %v1269 = vpop.xlane.xlu0 %1268
        %v1270 = vsel %vm1260, %v975, -inf
        %1271 = vmax.xlane.f32.xlu0 %v1270
        %v1272 = vpop.xlane.xlu0 %1271
        %v1273 = vsel %vm1260, %v1019, -inf
        %1274 = vmax.xlane.f32.xlu0 %v1273
        %v1275 = vpop.xlane.xlu0 %1274
        %v1276 = vsel %vm1260, %v1022, -inf
        %1277 = vmax.xlane.f32.xlu0 %v1276
        %v1278 = vpop.xlane.xlu0 %1277
        %v1279 = vsel %vm1260, %v1066, -inf
        %1280 = vmax.xlane.f32.xlu0 %v1279
        %v1281 = vpop.xlane.xlu0 %1280
        %v1282 = vsel %vm1260, %v1069, -inf
        %1283 = vmax.xlane.f32.xlu0 %v1282
        %v1284 = vpop.xlane.xlu0 %1283
        %v1285 = vsel %vm1260, %v1113, -inf
        %1286 = vmax.xlane.f32.xlu0 %v1285
        %v1287 = vpop.xlane.xlu0 %1286
        %v1288 = vsel %vm1260, %v1116, -inf
        %1289 = vmax.xlane.f32.xlu0 %v1288
        %v1290 = vpop.xlane.xlu0 %1289
        %v1291 = vsel %vm1260, %v1160, -inf
        %1292 = vmax.xlane.f32.xlu0 %v1291
        %v1293 = vpop.xlane.xlu0 %1292
        %v1294 = vsel %vm1260, %v1163, -inf
        %1295 = vmax.xlane.f32.xlu0 %v1294
        %v1296 = vpop.xlane.xlu0 %1295
        %v1297 = vsel %vm1260, %v1207, -inf
        %1298 = vmax.xlane.f32.xlu0 %v1297
        %v1299 = vpop.xlane.xlu0 %1298
        %v1300 = vsel %vm1260, %v1210, -inf
        %1301 = vmax.xlane.f32.xlu0 %v1300
        %v1302 = vpop.xlane.xlu0 %1301
        %v1303 = vsel %vm1260, %v1254, -inf
        %1304 = vmax.xlane.f32.xlu0 %v1303
        %v1305 = vpop.xlane.xlu0 %1304
        %v1306 = vsel %vm1260, %v1257, -inf
        %1307 = vmax.xlane.f32.xlu0 %v1306
        %v1308 = vpop.xlane.xlu0 %1307
        %v1309 = vsub.f32 %v925, %v1263
        %v1310 = vsub.f32 %v928, %v1266
        %v1311 = vsub.f32 %v972, %v1269
        %v1312 = vsub.f32 %v975, %v1272
        %v1313 = vsub.f32 %v1019, %v1275
        %v1314 = vsub.f32 %v1022, %v1278
        %v1315 = vsub.f32 %v1066, %v1281
        %v1316 = vsub.f32 %v1069, %v1284
        %v1317 = vsub.f32 %v1113, %v1287
        %v1318 = vsub.f32 %v1116, %v1290
        %v1319 = vsub.f32 %v1160, %v1293
        %v1320 = vsub.f32 %v1163, %v1296
        %v1321 = vsub.f32 %v1207, %v1299
        %v1322 = vsub.f32 %v1210, %v1302
        %v1323 = vsub.f32 %v1254, %v1305
        %v1324 = vsub.f32 %v1257, %v1308
        %v1325 = vmul.f32 %v1309, 1.442695
        %v1326 = vpow.pop %v1325
        %v1327 = vmul.f32 %v1310, 1.442695
        %v1328 = vpow.pop %v1327
        %v1329 = vmul.f32 %v1311, 1.442695
        %v1330 = vpow.pop %v1329
        %v1331 = vmul.f32 %v1312, 1.442695
        %v1332 = vpow.pop %v1331
        %v1333 = vmul.f32 %v1313, 1.442695
        %v1334 = vpow.pop %v1333
        %v1335 = vmul.f32 %v1314, 1.442695
        %v1336 = vpow.pop %v1335
        %v1337 = vmul.f32 %v1315, 1.442695
        %v1338 = vpow.pop %v1337
        %v1339 = vmul.f32 %v1316, 1.442695
        %v1340 = vpow.pop %v1339
        %v1341 = vmul.f32 %v1317, 1.442695
        %v1342 = vpow.pop %v1341
        %v1343 = vmul.f32 %v1318, 1.442695
        %v1344 = vpow.pop %v1343
        %v1345 = vmul.f32 %v1319, 1.442695
        %v1346 = vpow.pop %v1345
        %v1347 = vmul.f32 %v1320, 1.442695
        %v1348 = vpow.pop %v1347
        %v1349 = vmul.f32 %v1321, 1.442695
        %v1350 = vpow.pop %v1349
        %v1351 = vmul.f32 %v1322, 1.442695
        %v1352 = vpow.pop %v1351
        %v1353 = vmul.f32 %v1323, 1.442695
        %v1354 = vpow.pop %v1353
        %v1355 = vmul.f32 %v1324, 1.442695
        %v1356 = vpow.pop %v1355
        %v1357 = vsel %vm1260, %v1326, 0.0
        %1358 = vadd.xlane.f32.xlu0 %v1357
        %v1359 = vpop.xlane.xlu0 %1358
        %v1360 = vsel %vm1260, %v1328, 0.0
        %1361 = vadd.xlane.f32.xlu0 %v1360
        %v1362 = vpop.xlane.xlu0 %1361
        %v1363 = vsel %vm1260, %v1330, 0.0
        %1364 = vadd.xlane.f32.xlu0 %v1363
        %v1365 = vpop.xlane.xlu0 %1364
        %v1366 = vsel %vm1260, %v1332, 0.0
        %1367 = vadd.xlane.f32.xlu0 %v1366
        %v1368 = vpop.xlane.xlu0 %1367
        %v1369 = vsel %vm1260, %v1334, 0.0
        %1370 = vadd.xlane.f32.xlu0 %v1369
        %v1371 = vpop.xlane.xlu0 %1370
        %v1372 = vsel %vm1260, %v1336, 0.0
        %1373 = vadd.xlane.f32.xlu0 %v1372
        %v1374 = vpop.xlane.xlu0 %1373
        %v1375 = vsel %vm1260, %v1338, 0.0
        %1376 = vadd.xlane.f32.xlu0 %v1375
        %v1377 = vpop.xlane.xlu0 %1376
        %v1378 = vsel %vm1260, %v1340, 0.0
        %1379 = vadd.xlane.f32.xlu0 %v1378
        %v1380 = vpop.xlane.xlu0 %1379
        %v1381 = vsel %vm1260, %v1342, 0.0
        %1382 = vadd.xlane.f32.xlu0 %v1381
        %v1383 = vpop.xlane.xlu0 %1382
        %v1384 = vsel %vm1260, %v1344, 0.0
        %1385 = vadd.xlane.f32.xlu0 %v1384
        %v1386 = vpop.xlane.xlu0 %1385
        %v1387 = vsel %vm1260, %v1346, 0.0
        %1388 = vadd.xlane.f32.xlu0 %v1387
        %v1389 = vpop.xlane.xlu0 %1388
        %v1390 = vsel %vm1260, %v1348, 0.0
        %1391 = vadd.xlane.f32.xlu0 %v1390
        %v1392 = vpop.xlane.xlu0 %1391
        %v1393 = vsel %vm1260, %v1350, 0.0
        %1394 = vadd.xlane.f32.xlu0 %v1393
        %v1395 = vpop.xlane.xlu0 %1394
        %v1396 = vsel %vm1260, %v1352, 0.0
        %1397 = vadd.xlane.f32.xlu0 %v1396
        %v1398 = vpop.xlane.xlu0 %1397
        %v1399 = vsel %vm1260, %v1354, 0.0
        %1400 = vadd.xlane.f32.xlu0 %v1399
        %v1401 = vpop.xlane.xlu0 %1400
        %v1402 = vsel %vm1260, %v1356, 0.0
        %1403 = vadd.xlane.f32.xlu0 %v1402
        %v1404 = vpop.xlane.xlu0 %1403
        %v1405 = vrcp.pop %v1359
        %v1406 = vrcp.pop %v1362
        %v1407 = vrcp.pop %v1365
        %v1408 = vrcp.pop %v1368
        %v1409 = vrcp.pop %v1371
        %v1410 = vrcp.pop %v1374
        %v1411 = vrcp.pop %v1377
        %v1412 = vrcp.pop %v1380
        %v1413 = vrcp.pop %v1383
        %v1414 = vrcp.pop %v1386
        %v1415 = vrcp.pop %v1389
        %v1416 = vrcp.pop %v1392
        %v1417 = vrcp.pop %v1395
        %v1418 = vrcp.pop %v1398
        %v1419 = vrcp.pop %v1401
        %v1420 = vrcp.pop %v1404
        %v1421 = vmul.f32 %v1326, %v1405
        %v1422 = vmul.f32 %v1328, %v1406
        %v1423 = vmul.f32 %v1330, %v1407
        %v1424 = vmul.f32 %v1332, %v1408
        %v1425 = vmul.f32 %v1334, %v1409
        %v1426 = vmul.f32 %v1336, %v1410
        %v1427 = vmul.f32 %v1338, %v1411
        %v1428 = vmul.f32 %v1340, %v1412
        %v1429 = vmul.f32 %v1342, %v1413
        %v1430 = vmul.f32 %v1344, %v1414
        %v1431 = vmul.f32 %v1346, %v1415
        %v1432 = vmul.f32 %v1348, %v1416
        %v1433 = vmul.f32 %v1350, %v1417
        %v1434 = vmul.f32 %v1352, %v1418
        %v1435 = vmul.f32 %v1354, %v1419
        %v1436 = vmul.f32 %v1356, %v1420
        %v1437 = vpack.c.bf16 %v1422, %v1421
        %v1438 = vpack.c.bf16 %v1424, %v1423
        %v1439 = vpack.c.bf16 %v1426, %v1425
        %v1440 = vpack.c.bf16 %v1428, %v1427
        %v1441 = vpack.c.bf16 %v1430, %v1429
        %v1442 = vpack.c.bf16 %v1432, %v1431
        %v1443 = vpack.c.bf16 %v1434, %v1433
        %v1444 = vpack.c.bf16 %v1436, %v1435
        %v1446 = vsel %vm1260, %v1437, 0
        %vm1448 = vcmask 1043456
        %v1449 = vsel %vm1448, %v876, 0
        %1451 = vmatprep.subr.bf16.mxu0 0
        %1452 = vmatpush1.bf16.msra.mxu0 %v1449
        %1453 = vmatprep.subr.bf16.mxu0 0
        %1454 = vmatpush1.bf16.msra.mxu0 0
        %1455 = vmatprep.subr.bf16.mxu0 0
        %1456 = vmatpush1.bf16.msra.mxu0 0
        %1457 = vmatprep.subr.bf16.mxu0 0
        %1458 = vmatpush1.bf16.msra.mxu0 0
        %1459 = vmatprep.subr.bf16.mxu0 0
        %1460 = vmatpush1.bf16.msra.mxu0 0
        %1461 = vmatprep.subr.bf16.mxu0 0
        %1462 = vmatpush1.bf16.msra.mxu0 0
        %1463 = vmatprep.subr.bf16.mxu0 0
        %1464 = vmatpush1.bf16.msra.mxu0 0
        %1465 = vmatprep.subr.bf16.mxu0 0
        %1466 = vmatpush1.bf16.msra.mxu0 0
        %1467 = vmatprep.subr.bf16.mxu0 0
        %1468 = vmatpush1.bf16.msra.mxu0 0
        %1469 = vmatprep.subr.bf16.mxu0 0
        %1470 = vmatpush1.bf16.msra.mxu0 0
        %1471 = vmatprep.subr.bf16.mxu0 0
        %1472 = vmatpush1.bf16.msra.mxu0 0
        %1473 = vmatprep.subr.bf16.mxu0 0
        %1474 = vmatpush1.bf16.msra.mxu0 0
        %1475 = vmatprep.subr.bf16.mxu0 0
        %1476 = vmatpush1.bf16.msra.mxu0 0
        %1477 = vmatprep.subr.bf16.mxu0 0
        %1478 = vmatpush1.bf16.msra.mxu0 0
        %1479 = vmatprep.subr.bf16.mxu0 0
        %1480 = vmatpush1.bf16.msra.mxu0 0
        %1481 = vmatprep.subr.bf16.mxu0 0
        %1482 = vmatpush1.bf16.msra.mxu0 0
        %1483 = vmatprep.mubr.bf16.mxu0 0
        %1484 = vmatmul.mubr.bf16.gmra.mrb[0].mxu0 %v1446
        %v1485 = vpop.f32.mrb[0].mxu0
        %v1486 = vadd.f32 0.0, %v1485
        %v1487 = vpop.f32.mrb[0].mxu0
        %v1488 = vpop.f32.mrb[0].mxu0
        %v1489 = vadd.f32 0.0, %v1488
        %v1490 = vpop.f32.mrb[0].mxu0
        %1491 = vdwg.mxu0
        %v1493 = vsel %vm1260, %v1438, 0
        %v1495 = vsel %vm1448, %v877, 0
        %1497 = vmatprep.subr.bf16.mxu0 0
        %1498 = vmatpush1.bf16.msra.mxu0 %v1495
        %1499 = vmatprep.subr.bf16.mxu0 0
        %1500 = vmatpush1.bf16.msra.mxu0 0
        %1501 = vmatprep.subr.bf16.mxu0 0
        %1502 = vmatpush1.bf16.msra.mxu0 0
        %1503 = vmatprep.subr.bf16.mxu0 0
        %1504 = vmatpush1.bf16.msra.mxu0 0
        %1505 = vmatprep.subr.bf16.mxu0 0
        %1506 = vmatpush1.bf16.msra.mxu0 0
        %1507 = vmatprep.subr.bf16.mxu0 0
        %1508 = vmatpush1.bf16.msra.mxu0 0
        %1509 = vmatprep.subr.bf16.mxu0 0
        %1510 = vmatpush1.bf16.msra.mxu0 0
        %1511 = vmatprep.subr.bf16.mxu0 0
        %1512 = vmatpush1.bf16.msra.mxu0 0
        %1513 = vmatprep.subr.bf16.mxu0 0
        %1514 = vmatpush1.bf16.msra.mxu0 0
        %1515 = vmatprep.subr.bf16.mxu0 0
        %1516 = vmatpush1.bf16.msra.mxu0 0
        %1517 = vmatprep.subr.bf16.mxu0 0
        %1518 = vmatpush1.bf16.msra.mxu0 0
        %1519 = vmatprep.subr.bf16.mxu0 0
        %1520 = vmatpush1.bf16.msra.mxu0 0
        %1521 = vmatprep.subr.bf16.mxu0 0
        %1522 = vmatpush1.bf16.msra.mxu0 0
        %1523 = vmatprep.subr.bf16.mxu0 0
        %1524 = vmatpush1.bf16.msra.mxu0 0
        %1525 = vmatprep.subr.bf16.mxu0 0
        %1526 = vmatpush1.bf16.msra.mxu0 0
        %1527 = vmatprep.subr.bf16.mxu0 0
        %1528 = vmatpush1.bf16.msra.mxu0 0
        %1529 = vmatprep.mubr.bf16.mxu0 0
        %1530 = vmatmul.mubr.bf16.gmra.mrb[0].mxu0 %v1493
        %v1531 = vpop.f32.mrb[0].mxu0
        %v1532 = vadd.f32 0.0, %v1531
        %v1533 = vpop.f32.mrb[0].mxu0
        %v1534 = vpop.f32.mrb[0].mxu0
        %v1535 = vadd.f32 0.0, %v1534
        %v1536 = vpop.f32.mrb[0].mxu0
        %1537 = vdwg.mxu0
        %v1539 = vsel %vm1260, %v1439, 0
        %v1541 = vsel %vm1448, %v878, 0
        %1543 = vmatprep.subr.bf16.mxu0 0
        %1544 = vmatpush1.bf16.msra.mxu0 %v1541
        %1545 = vmatprep.subr.bf16.mxu0 0
        %1546 = vmatpush1.bf16.msra.mxu0 0
        %1547 = vmatprep.subr.bf16.mxu0 0
        %1548 = vmatpush1.bf16.msra.mxu0 0
        %1549 = vmatprep.subr.bf16.mxu0 0
        %1550 = vmatpush1.bf16.msra.mxu0 0
        %1551 = vmatprep.subr.bf16.mxu0 0
        %1552 = vmatpush1.bf16.msra.mxu0 0
        %1553 = vmatprep.subr.bf16.mxu0 0
        %1554 = vmatpush1.bf16.msra.mxu0 0
        %1555 = vmatprep.subr.bf16.mxu0 0
        %1556 = vmatpush1.bf16.msra.mxu0 0
        %1557 = vmatprep.subr.bf16.mxu0 0
        %1558 = vmatpush1.bf16.msra.mxu0 0
        %1559 = vmatprep.subr.bf16.mxu0 0
        %1560 = vmatpush1.bf16.msra.mxu0 0
        %1561 = vmatprep.subr.bf16.mxu0 0
        %1562 = vmatpush1.bf16.msra.mxu0 0
        %1563 = vmatprep.subr.bf16.mxu0 0
        %1564 = vmatpush1.bf16.msra.mxu0 0
        %1565 = vmatprep.subr.bf16.mxu0 0
        %1566 = vmatpush1.bf16.msra.mxu0 0
        %1567 = vmatprep.subr.bf16.mxu0 0
        %1568 = vmatpush1.bf16.msra.mxu0 0
        %1569 = vmatprep.subr.bf16.mxu0 0
        %1570 = vmatpush1.bf16.msra.mxu0 0
        %1571 = vmatprep.subr.bf16.mxu0 0
        %1572 = vmatpush1.bf16.msra.mxu0 0
        %1573 = vmatprep.subr.bf16.mxu0 0
        %1574 = vmatpush1.bf16.msra.mxu0 0
        %1575 = vmatprep.mubr.bf16.mxu0 0
        %1576 = vmatmul.mubr.bf16.gmra.mrb[0].mxu0 %v1539
        %v1577 = vpop.f32.mrb[0].mxu0
        %v1578 = vadd.f32 0.0, %v1577
        %v1579 = vpop.f32.mrb[0].mxu0
        %v1580 = vpop.f32.mrb[0].mxu0
        %v1581 = vadd.f32 0.0, %v1580
        %v1582 = vpop.f32.mrb[0].mxu0
        %1583 = vdwg.mxu0
        %v1585 = vsel %vm1260, %v1440, 0
        %v1587 = vsel %vm1448, %v879, 0
        %1589 = vmatprep.subr.bf16.mxu0 0
        %1590 = vmatpush1.bf16.msra.mxu0 %v1587
        %1591 = vmatprep.subr.bf16.mxu0 0
        %1592 = vmatpush1.bf16.msra.mxu0 0
        %1593 = vmatprep.subr.bf16.mxu0 0
        %1594 = vmatpush1.bf16.msra.mxu0 0
        %1595 = vmatprep.subr.bf16.mxu0 0
        %1596 = vmatpush1.bf16.msra.mxu0 0
        %1597 = vmatprep.subr.bf16.mxu0 0
        %1598 = vmatpush1.bf16.msra.mxu0 0
        %1599 = vmatprep.subr.bf16.mxu0 0
        %1600 = vmatpush1.bf16.msra.mxu0 0
        %1601 = vmatprep.subr.bf16.mxu0 0
        %1602 = vmatpush1.bf16.msra.mxu0 0
        %1603 = vmatprep.subr.bf16.mxu0 0
        %1604 = vmatpush1.bf16.msra.mxu0 0
        %1605 = vmatprep.subr.bf16.mxu0 0
        %1606 = vmatpush1.bf16.msra.mxu0 0
        %1607 = vmatprep.subr.bf16.mxu0 0
        %1608 = vmatpush1.bf16.msra.mxu0 0
        %1609 = vmatprep.subr.bf16.mxu0 0
        %1610 = vmatpush1.bf16.msra.mxu0 0
        %1611 = vmatprep.subr.bf16.mxu0 0
        %1612 = vmatpush1.bf16.msra.mxu0 0
        %1613 = vmatprep.subr.bf16.mxu0 0
        %1614 = vmatpush1.bf16.msra.mxu0 0
        %1615 = vmatprep.subr.bf16.mxu0 0
        %1616 = vmatpush1.bf16.msra.mxu0 0
        %1617 = vmatprep.subr.bf16.mxu0 0
        %1618 = vmatpush1.bf16.msra.mxu0 0
        %1619 = vmatprep.subr.bf16.mxu0 0
        %1620 = vmatpush1.bf16.msra.mxu0 0
        %1621 = vmatprep.mubr.bf16.mxu0 0
        %1622 = vmatmul.mubr.bf16.gmra.mrb[0].mxu0 %v1585
        %v1623 = vpop.f32.mrb[0].mxu0
        %v1624 = vadd.f32 0.0, %v1623
        %v1625 = vpop.f32.mrb[0].mxu0
        %v1626 = vpop.f32.mrb[0].mxu0
        %v1627 = vadd.f32 0.0, %v1626
        %v1628 = vpop.f32.mrb[0].mxu0
        %1629 = vdwg.mxu0
        %v1631 = vsel %vm1260, %v1441, 0
        %v1633 = vsel %vm1448, %v880, 0
        %1635 = vmatprep.subr.bf16.mxu0 0
        %1636 = vmatpush1.bf16.msra.mxu0 %v1633
        %1637 = vmatprep.subr.bf16.mxu0 0
        %1638 = vmatpush1.bf16.msra.mxu0 0
        %1639 = vmatprep.subr.bf16.mxu0 0
        %1640 = vmatpush1.bf16.msra.mxu0 0
        %1641 = vmatprep.subr.bf16.mxu0 0
        %1642 = vmatpush1.bf16.msra.mxu0 0
        %1643 = vmatprep.subr.bf16.mxu0 0
        %1644 = vmatpush1.bf16.msra.mxu0 0
        %1645 = vmatprep.subr.bf16.mxu0 0
        %1646 = vmatpush1.bf16.msra.mxu0 0
        %1647 = vmatprep.subr.bf16.mxu0 0
        %1648 = vmatpush1.bf16.msra.mxu0 0
        %1649 = vmatprep.subr.bf16.mxu0 0
        %1650 = vmatpush1.bf16.msra.mxu0 0
        %1651 = vmatprep.subr.bf16.mxu0 0
        %1652 = vmatpush1.bf16.msra.mxu0 0
        %1653 = vmatprep.subr.bf16.mxu0 0
        %1654 = vmatpush1.bf16.msra.mxu0 0
        %1655 = vmatprep.subr.bf16.mxu0 0
        %1656 = vmatpush1.bf16.msra.mxu0 0
        %1657 = vmatprep.subr.bf16.mxu0 0
        %1658 = vmatpush1.bf16.msra.mxu0 0
        %1659 = vmatprep.subr.bf16.mxu0 0
        %1660 = vmatpush1.bf16.msra.mxu0 0
        %1661 = vmatprep.subr.bf16.mxu0 0
        %1662 = vmatpush1.bf16.msra.mxu0 0
        %1663 = vmatprep.subr.bf16.mxu0 0
        %1664 = vmatpush1.bf16.msra.mxu0 0
        %1665 = vmatprep.subr.bf16.mxu0 0
        %1666 = vmatpush1.bf16.msra.mxu0 0
        %1667 = vmatprep.mubr.bf16.mxu0 0
        %1668 = vmatmul.mubr.bf16.gmra.mrb[0].mxu0 %v1631
        %v1669 = vpop.f32.mrb[0].mxu0
        %v1670 = vadd.f32 0.0, %v1669
        %v1671 = vpop.f32.mrb[0].mxu0
        %v1672 = vpop.f32.mrb[0].mxu0
        %v1673 = vadd.f32 0.0, %v1672
        %v1674 = vpop.f32.mrb[0].mxu0
        %1675 = vdwg.mxu0
        %v1677 = vsel %vm1260, %v1442, 0
        %v1679 = vsel %vm1448, %v881, 0
        %1681 = vmatprep.subr.bf16.mxu0 0
        %1682 = vmatpush1.bf16.msra.mxu0 %v1679
        %1683 = vmatprep.subr.bf16.mxu0 0
        %1684 = vmatpush1.bf16.msra.mxu0 0
        %1685 = vmatprep.subr.bf16.mxu0 0
        %1686 = vmatpush1.bf16.msra.mxu0 0
        %1687 = vmatprep.subr.bf16.mxu0 0
        %1688 = vmatpush1.bf16.msra.mxu0 0
        %1689 = vmatprep.subr.bf16.mxu0 0
        %1690 = vmatpush1.bf16.msra.mxu0 0
        %1691 = vmatprep.subr.bf16.mxu0 0
        %1692 = vmatpush1.bf16.msra.mxu0 0
        %1693 = vmatprep.subr.bf16.mxu0 0
        %1694 = vmatpush1.bf16.msra.mxu0 0
        %1695 = vmatprep.subr.bf16.mxu0 0
        %1696 = vmatpush1.bf16.msra.mxu0 0
        %1697 = vmatprep.subr.bf16.mxu0 0
        %1698 = vmatpush1.bf16.msra.mxu0 0
        %1699 = vmatprep.subr.bf16.mxu0 0
        %1700 = vmatpush1.bf16.msra.mxu0 0
        %1701 = vmatprep.subr.bf16.mxu0 0
        %1702 = vmatpush1.bf16.msra.mxu0 0
        %1703 = vmatprep.subr.bf16.mxu0 0
        %1704 = vmatpush1.bf16.msra.mxu0 0
        %1705 = vmatprep.subr.bf16.mxu0 0
        %1706 = vmatpush1.bf16.msra.mxu0 0
        %1707 = vmatprep.subr.bf16.mxu0 0
        %1708 = vmatpush1.bf16.msra.mxu0 0
        %1709 = vmatprep.subr.bf16.mxu0 0
        %1710 = vmatpush1.bf16.msra.mxu0 0
        %1711 = vmatprep.subr.bf16.mxu0 0
        %1712 = vmatpush1.bf16.msra.mxu0 0
        %1713 = vmatprep.mubr.bf16.mxu0 0
        %1714 = vmatmul.mubr.bf16.gmra.mrb[0].mxu0 %v1677
        %v1715 = vpop.f32.mrb[0].mxu0
        %v1716 = vadd.f32 0.0, %v1715
        %v1717 = vpop.f32.mrb[0].mxu0
        %v1718 = vpop.f32.mrb[0].mxu0
        %v1719 = vadd.f32 0.0, %v1718
        %v1720 = vpop.f32.mrb[0].mxu0
        %1721 = vdwg.mxu0
        %v1723 = vsel %vm1260, %v1443, 0
        %v1725 = vsel %vm1448, %v882, 0
        %1727 = vmatprep.subr.bf16.mxu0 0
        %1728 = vmatpush1.bf16.msra.mxu0 %v1725
        %1729 = vmatprep.subr.bf16.mxu0 0
        %1730 = vmatpush1.bf16.msra.mxu0 0
        %1731 = vmatprep.subr.bf16.mxu0 0
        %1732 = vmatpush1.bf16.msra.mxu0 0
        %1733 = vmatprep.subr.bf16.mxu0 0
        %1734 = vmatpush1.bf16.msra.mxu0 0
        %1735 = vmatprep.subr.bf16.mxu0 0
        %1736 = vmatpush1.bf16.msra.mxu0 0
        %1737 = vmatprep.subr.bf16.mxu0 0
        %1738 = vmatpush1.bf16.msra.mxu0 0
        %1739 = vmatprep.subr.bf16.mxu0 0
        %1740 = vmatpush1.bf16.msra.mxu0 0
        %1741 = vmatprep.subr.bf16.mxu0 0
        %1742 = vmatpush1.bf16.msra.mxu0 0
        %1743 = vmatprep.subr.bf16.mxu0 0
        %1744 = vmatpush1.bf16.msra.mxu0 0
        %1745 = vmatprep.subr.bf16.mxu0 0
        %1746 = vmatpush1.bf16.msra.mxu0 0
        %1747 = vmatprep.subr.bf16.mxu0 0
        %1748 = vmatpush1.bf16.msra.mxu0 0
        %1749 = vmatprep.subr.bf16.mxu0 0
        %1750 = vmatpush1.bf16.msra.mxu0 0
        %1751 = vmatprep.subr.bf16.mxu0 0
        %1752 = vmatpush1.bf16.msra.mxu0 0
        %1753 = vmatprep.subr.bf16.mxu0 0
        %1754 = vmatpush1.bf16.msra.mxu0 0
        %1755 = vmatprep.subr.bf16.mxu0 0
        %1756 = vmatpush1.bf16.msra.mxu0 0
        %1757 = vmatprep.subr.bf16.mxu0 0
        %1758 = vmatpush1.bf16.msra.mxu0 0
        %1759 = vmatprep.mubr.bf16.mxu0 0
        %1760 = vmatmul.mubr.bf16.gmra.mrb[0].mxu0 %v1723
        %v1761 = vpop.f32.mrb[0].mxu0
        %v1762 = vadd.f32 0.0, %v1761
        %v1763 = vpop.f32.mrb[0].mxu0
        %v1764 = vpop.f32.mrb[0].mxu0
        %v1765 = vadd.f32 0.0, %v1764
        %v1766 = vpop.f32.mrb[0].mxu0
        %1767 = vdwg.mxu0
        %v1769 = vsel %vm1260, %v1444, 0
        %v1771 = vsel %vm1448, %v883, 0
        %1773 = vmatprep.subr.bf16.mxu0 0
        %1774 = vmatpush1.bf16.msra.mxu0 %v1771
        %1775 = vmatprep.subr.bf16.mxu0 0
        %1776 = vmatpush1.bf16.msra.mxu0 0
        %1777 = vmatprep.subr.bf16.mxu0 0
        %1778 = vmatpush1.bf16.msra.mxu0 0
        %1779 = vmatprep.subr.bf16.mxu0 0
        %1780 = vmatpush1.bf16.msra.mxu0 0
        %1781 = vmatprep.subr.bf16.mxu0 0
        %1782 = vmatpush1.bf16.msra.mxu0 0
        %1783 = vmatprep.subr.bf16.mxu0 0
        %1784 = vmatpush1.bf16.msra.mxu0 0
        %1785 = vmatprep.subr.bf16.mxu0 0
        %1786 = vmatpush1.bf16.msra.mxu0 0
        %1787 = vmatprep.subr.bf16.mxu0 0
        %1788 = vmatpush1.bf16.msra.mxu0 0
        %1789 = vmatprep.subr.bf16.mxu0 0
        %1790 = vmatpush1.bf16.msra.mxu0 0
        %1791 = vmatprep.subr.bf16.mxu0 0
        %1792 = vmatpush1.bf16.msra.mxu0 0
        %1793 = vmatprep.subr.bf16.mxu0 0
        %1794 = vmatpush1.bf16.msra.mxu0 0
        %1795 = vmatprep.subr.bf16.mxu0 0
        %1796 = vmatpush1.bf16.msra.mxu0 0
        %1797 = vmatprep.subr.bf16.mxu0 0
        %1798 = vmatpush1.bf16.msra.mxu0 0
        %1799 = vmatprep.subr.bf16.mxu0 0
        %1800 = vmatpush1.bf16.msra.mxu0 0
        %1801 = vmatprep.subr.bf16.mxu0 0
        %1802 = vmatpush1.bf16.msra.mxu0 0
        %1803 = vmatprep.subr.bf16.mxu0 0
        %1804 = vmatpush1.bf16.msra.mxu0 0
        %1805 = vmatprep.mubr.bf16.mxu0 0
        %1806 = vmatmul.mubr.bf16.gmra.mrb[0].mxu0 %v1769
        %v1807 = vpop.f32.mrb[0].mxu0
        %v1808 = vadd.f32 0.0, %v1807
        %v1809 = vpop.f32.mrb[0].mxu0
        %v1810 = vpop.f32.mrb[0].mxu0
        %v1811 = vadd.f32 0.0, %v1810
        %v1812 = vpop.f32.mrb[0].mxu0
        %1813 = vdwg.mxu0
        %v1814 = vmax.f32 %v1263, %v1266
        %v1815 = vrot.slane %v1814, 4
        %v1816 = vmax.f32 %v1814, %v1815
        %v1817 = vrot.slane %v1816, 2
        %v1818 = vmax.f32 %v1816, %v1817
        %v1819 = vrot.slane %v1818, 1
        %v1820 = vmax.f32 %v1818, %v1819
        %v1821 = vmax.f32 %v1269, %v1272
        %v1822 = vrot.slane %v1821, 4
        %v1823 = vmax.f32 %v1821, %v1822
        %v1824 = vrot.slane %v1823, 2
        %v1825 = vmax.f32 %v1823, %v1824
        %v1826 = vrot.slane %v1825, 1
        %v1827 = vmax.f32 %v1825, %v1826
        %v1828 = vmax.f32 %v1275, %v1278
        %v1829 = vrot.slane %v1828, 4
        %v1830 = vmax.f32 %v1828, %v1829
        %v1831 = vrot.slane %v1830, 2
        %v1832 = vmax.f32 %v1830, %v1831
        %v1833 = vrot.slane %v1832, 1
        %v1834 = vmax.f32 %v1832, %v1833
        %v1835 = vmax.f32 %v1281, %v1284
        %v1836 = vrot.slane %v1835, 4
        %v1837 = vmax.f32 %v1835, %v1836
        %v1838 = vrot.slane %v1837, 2
        %v1839 = vmax.f32 %v1837, %v1838
        %v1840 = vrot.slane %v1839, 1
        %v1841 = vmax.f32 %v1839, %v1840
        %v1842 = vmax.f32 %v1287, %v1290
        %v1843 = vrot.slane %v1842, 4
        %v1844 = vmax.f32 %v1842, %v1843
        %v1845 = vrot.slane %v1844, 2
        %v1846 = vmax.f32 %v1844, %v1845
        %v1847 = vrot.slane %v1846, 1
        %v1848 = vmax.f32 %v1846, %v1847
        %v1849 = vmax.f32 %v1293, %v1296
        %v1850 = vrot.slane %v1849, 4
        %v1851 = vmax.f32 %v1849, %v1850
        %v1852 = vrot.slane %v1851, 2
        %v1853 = vmax.f32 %v1851, %v1852
        %v1854 = vrot.slane %v1853, 1
        %v1855 = vmax.f32 %v1853, %v1854
        %v1856 = vmax.f32 %v1299, %v1302
        %v1857 = vrot.slane %v1856, 4
        %v1858 = vmax.f32 %v1856, %v1857
        %v1859 = vrot.slane %v1858, 2
        %v1860 = vmax.f32 %v1858, %v1859
        %v1861 = vrot.slane %v1860, 1
        %v1862 = vmax.f32 %v1860, %v1861
        %v1863 = vmax.f32 %v1305, %v1308
        %v1864 = vrot.slane %v1863, 4
        %v1865 = vmax.f32 %v1863, %v1864
        %v1866 = vrot.slane %v1865, 2
        %v1867 = vmax.f32 %v1865, %v1866
        %v1868 = vrot.slane %v1867, 1
        %v1869 = vmax.f32 %v1867, %v1868
        %v1870 = vsub.f32 %v1263, %v1820
        %v1871 = vsub.f32 %v1266, %v1820
        %v1872 = vsub.f32 %v1269, %v1827
        %v1873 = vsub.f32 %v1272, %v1827
        %v1874 = vsub.f32 %v1275, %v1834
        %v1875 = vsub.f32 %v1278, %v1834
        %v1876 = vsub.f32 %v1281, %v1841
        %v1877 = vsub.f32 %v1284, %v1841
        %v1878 = vsub.f32 %v1287, %v1848
        %v1879 = vsub.f32 %v1290, %v1848
        %v1880 = vsub.f32 %v1293, %v1855
        %v1881 = vsub.f32 %v1296, %v1855
        %v1882 = vsub.f32 %v1299, %v1862
        %v1883 = vsub.f32 %v1302, %v1862
        %v1884 = vsub.f32 %v1305, %v1869
        %v1885 = vsub.f32 %v1308, %v1869
        %v1886 = vmul.f32 %v1870, 1.442695
        %v1887 = vpow.pop %v1886
        %v1888 = vmul.f32 %v1871, 1.442695
        %v1889 = vpow.pop %v1888
        %v1890 = vmul.f32 %v1872, 1.442695
        %v1891 = vpow.pop %v1890
        %v1892 = vmul.f32 %v1873, 1.442695
        %v1893 = vpow.pop %v1892
        %v1894 = vmul.f32 %v1874, 1.442695
        %v1895 = vpow.pop %v1894
        %v1896 = vmul.f32 %v1875, 1.442695
        %v1897 = vpow.pop %v1896
        %v1898 = vmul.f32 %v1876, 1.442695
        %v1899 = vpow.pop %v1898
        %v1900 = vmul.f32 %v1877, 1.442695
        %v1901 = vpow.pop %v1900
        %v1902 = vmul.f32 %v1878, 1.442695
        %v1903 = vpow.pop %v1902
        %v1904 = vmul.f32 %v1879, 1.442695
        %v1905 = vpow.pop %v1904
        %v1906 = vmul.f32 %v1880, 1.442695
        %v1907 = vpow.pop %v1906
        %v1908 = vmul.f32 %v1881, 1.442695
        %v1909 = vpow.pop %v1908
        %v1910 = vmul.f32 %v1882, 1.442695
        %v1911 = vpow.pop %v1910
        %v1912 = vmul.f32 %v1883, 1.442695
        %v1913 = vpow.pop %v1912
        %v1914 = vmul.f32 %v1884, 1.442695
        %v1915 = vpow.pop %v1914
        %v1916 = vmul.f32 %v1885, 1.442695
        %v1917 = vpow.pop %v1916
        %v1918 = vadd.f32 %v1887, %v1889
        %v1919 = vrot.slane %v1918, 4
        %v1920 = vadd.f32 %v1918, %v1919
        %v1921 = vrot.slane %v1920, 2
        %v1922 = vadd.f32 %v1920, %v1921
        %v1923 = vrot.slane %v1922, 1
        %v1924 = vadd.f32 %v1922, %v1923
        %v1925 = vadd.f32 %v1891, %v1893
        %v1926 = vrot.slane %v1925, 4
        %v1927 = vadd.f32 %v1925, %v1926
        %v1928 = vrot.slane %v1927, 2
        %v1929 = vadd.f32 %v1927, %v1928
        %v1930 = vrot.slane %v1929, 1
        %v1931 = vadd.f32 %v1929, %v1930
        %v1932 = vadd.f32 %v1895, %v1897
        %v1933 = vrot.slane %v1932, 4
        %v1934 = vadd.f32 %v1932, %v1933
        %v1935 = vrot.slane %v1934, 2
        %v1936 = vadd.f32 %v1934, %v1935
        %v1937 = vrot.slane %v1936, 1
        %v1938 = vadd.f32 %v1936, %v1937
        %v1939 = vadd.f32 %v1899, %v1901
        %v1940 = vrot.slane %v1939, 4
        %v1941 = vadd.f32 %v1939, %v1940
        %v1942 = vrot.slane %v1941, 2
        %v1943 = vadd.f32 %v1941, %v1942
        %v1944 = vrot.slane %v1943, 1
        %v1945 = vadd.f32 %v1943, %v1944
        %v1946 = vadd.f32 %v1903, %v1905
        %v1947 = vrot.slane %v1946, 4
        %v1948 = vadd.f32 %v1946, %v1947
        %v1949 = vrot.slane %v1948, 2
        %v1950 = vadd.f32 %v1948, %v1949
        %v1951 = vrot.slane %v1950, 1
        %v1952 = vadd.f32 %v1950, %v1951
        %v1953 = vadd.f32 %v1907, %v1909
        %v1954 = vrot.slane %v1953, 4
        %v1955 = vadd.f32 %v1953, %v1954
        %v1956 = vrot.slane %v1955, 2
        %v1957 = vadd.f32 %v1955, %v1956
        %v1958 = vrot.slane %v1957, 1
        %v1959 = vadd.f32 %v1957, %v1958
        %v1960 = vadd.f32 %v1911, %v1913
        %v1961 = vrot.slane %v1960, 4
        %v1962 = vadd.f32 %v1960, %v1961
        %v1963 = vrot.slane %v1962, 2
        %v1964 = vadd.f32 %v1962, %v1963
        %v1965 = vrot.slane %v1964, 1
        %v1966 = vadd.f32 %v1964, %v1965
        %v1967 = vadd.f32 %v1915, %v1917
        %v1968 = vrot.slane %v1967, 4
        %v1969 = vadd.f32 %v1967, %v1968
        %v1970 = vrot.slane %v1969, 2
        %v1971 = vadd.f32 %v1969, %v1970
        %v1972 = vrot.slane %v1971, 1
        %v1973 = vadd.f32 %v1971, %v1972
        %v1974 = vrcp.pop %v1924
        %v1975 = vrcp.pop %v1931
        %v1976 = vrcp.pop %v1938
        %v1977 = vrcp.pop %v1945
        %v1978 = vrcp.pop %v1952
        %v1979 = vrcp.pop %v1959
        %v1980 = vrcp.pop %v1966
        %v1981 = vrcp.pop %v1973
        %v1982 = vmul.f32 %v1887, %v1974
        %v1983 = vmul.f32 %v1889, %v1974
        %v1984 = vmul.f32 %v1891, %v1975
        %v1985 = vmul.f32 %v1893, %v1975
        %v1986 = vmul.f32 %v1895, %v1976
        %v1987 = vmul.f32 %v1897, %v1976
        %v1988 = vmul.f32 %v1899, %v1977
        %v1989 = vmul.f32 %v1901, %v1977
        %v1990 = vmul.f32 %v1903, %v1978
        %v1991 = vmul.f32 %v1905, %v1978
        %v1992 = vmul.f32 %v1907, %v1979
        %v1993 = vmul.f32 %v1909, %v1979
        %v1994 = vmul.f32 %v1911, %v1980
        %v1995 = vmul.f32 %v1913, %v1980
        %v1996 = vmul.f32 %v1915, %v1981
        %v1997 = vmul.f32 %v1917, %v1981
        %v1998 = vpack.c.bf16 %v1983, %v1982
        %v1999 = vpack.c.bf16 %v1985, %v1984
        %v2000 = vpack.c.bf16 %v1987, %v1986
        %v2001 = vpack.c.bf16 %v1989, %v1988
        %v2002 = vpack.c.bf16 %v1991, %v1990
        %v2003 = vpack.c.bf16 %v1993, %v1992
        %v2004 = vpack.c.bf16 %v1995, %v1994
        %v2005 = vpack.c.bf16 %v1997, %v1996
        %v2006 = vpack.c.bf16 %v614, %v611
        %v2007 = vpack.c.bf16 %v622, %v619
        %v2008 = vpack.c.bf16 %v630, %v627
        %v2009 = vpack.c.bf16 %v638, %v635
        %v2010 = vpack.c.bf16 %v646, %v643
        %v2011 = vpack.c.bf16 %v654, %v651
        %v2012 = vpack.c.bf16 %v662, %v659
        %v2013 = vpack.c.bf16 %v670, %v667
        %2014 = vxpose.xlu0.c.b16.start [1/8] %v1998, 128
        %2015 = vxpose.xlu0.c.b16.cont [2/8] 0, 128
        %2016 = vxpose.xlu0.c.b16.cont [3/8] 0, 128
        %2017 = vxpose.xlu0.c.b16.cont [4/8] 0, 128
        %2018 = vxpose.xlu0.c.b16.cont [5/8] 0, 128
        %2019 = vxpose.xlu0.c.b16.cont [6/8] 0, 128
        %2020 = vxpose.xlu0.c.b16.cont [7/8] 0, 128
        %2021 = vxpose.xlu0.c.b16.end [8/8] 0, 128
        %v2022 = vpop.trf.xlu0
        %v2023 = vpop.trf.xlu0
        %v2024 = vpop.trf.xlu0
        %v2025 = vpop.trf.xlu0
        %v2026 = vpop.trf.xlu0
        %v2027 = vpop.trf.xlu0
        %v2028 = vpop.trf.xlu0
        %v2029 = vpop.trf.xlu0
        %v2031 = vsel %vm551, %v2022, 0
        %2033 = vmatprep.subr.bf16.mxu0 0
        %2034 = vmatpush1.bf16.msra.mxu0 %v2006
        %2035 = vmatprep.subr.bf16.mxu0 0
        %2036 = vmatpush1.bf16.msra.mxu0 0
        %2037 = vmatprep.subr.bf16.mxu0 0
        %2038 = vmatpush1.bf16.msra.mxu0 0
        %2039 = vmatprep.subr.bf16.mxu0 0
        %2040 = vmatpush1.bf16.msra.mxu0 0
        %2041 = vmatprep.subr.bf16.mxu0 0
        %2042 = vmatpush1.bf16.msra.mxu0 0
        %2043 = vmatprep.subr.bf16.mxu0 0
        %2044 = vmatpush1.bf16.msra.mxu0 0
        %2045 = vmatprep.subr.bf16.mxu0 0
        %2046 = vmatpush1.bf16.msra.mxu0 0
        %2047 = vmatprep.subr.bf16.mxu0 0
        %2048 = vmatpush1.bf16.msra.mxu0 0
        %2049 = vmatprep.subr.bf16.mxu0 0
        %2050 = vmatpush1.bf16.msra.mxu0 0
        %2051 = vmatprep.subr.bf16.mxu0 0
        %2052 = vmatpush1.bf16.msra.mxu0 0
        %2053 = vmatprep.subr.bf16.mxu0 0
        %2054 = vmatpush1.bf16.msra.mxu0 0
        %2055 = vmatprep.subr.bf16.mxu0 0
        %2056 = vmatpush1.bf16.msra.mxu0 0
        %2057 = vmatprep.subr.bf16.mxu0 0
        %2058 = vmatpush1.bf16.msra.mxu0 0
        %2059 = vmatprep.subr.bf16.mxu0 0
        %2060 = vmatpush1.bf16.msra.mxu0 0
        %2061 = vmatprep.subr.bf16.mxu0 0
        %2062 = vmatpush1.bf16.msra.mxu0 0
        %2063 = vmatprep.subr.bf16.mxu0 0
        %2064 = vmatpush1.bf16.msra.mxu0 0
        %2065 = vmatprep.mubr.bf16.mxu0 0
        %2066 = vmatmul.mubr.bf16.gmra.mrb[0].mxu0 %v2031
        %v2067 = vpop.f32.mrb[0].mxu0
        %v2068 = vadd.f32 0.0, %v2067
        %v2069 = vpop.f32.mrb[0].mxu0
        %v2070 = vpop.f32.mrb[0].mxu0
        %v2071 = vpop.f32.mrb[0].mxu0
        %2072 = vdwg.mxu0
        %2073 = vxpose.xlu0.c.b16.start [1/8] %v1999, 128
        %2074 = vxpose.xlu0.c.b16.cont [2/8] 0, 128
        %2075 = vxpose.xlu0.c.b16.cont [3/8] 0, 128
        %2076 = vxpose.xlu0.c.b16.cont [4/8] 0, 128
        %2077 = vxpose.xlu0.c.b16.cont [5/8] 0, 128
        %2078 = vxpose.xlu0.c.b16.cont [6/8] 0, 128
        %2079 = vxpose.xlu0.c.b16.cont [7/8] 0, 128
        %2080 = vxpose.xlu0.c.b16.end [8/8] 0, 128
        %v2081 = vpop.trf.xlu0
        %v2082 = vpop.trf.xlu0
        %v2083 = vpop.trf.xlu0
        %v2084 = vpop.trf.xlu0
        %v2085 = vpop.trf.xlu0
        %v2086 = vpop.trf.xlu0
        %v2087 = vpop.trf.xlu0
        %v2088 = vpop.trf.xlu0
        %v2090 = vsel %vm551, %v2081, 0
        %2092 = vmatprep.subr.bf16.mxu0 0
        %2093 = vmatpush1.bf16.msra.mxu0 %v2007
        %2094 = vmatprep.subr.bf16.mxu0 0
        %2095 = vmatpush1.bf16.msra.mxu0 0
        %2096 = vmatprep.subr.bf16.mxu0 0
        %2097 = vmatpush1.bf16.msra.mxu0 0
        %2098 = vmatprep.subr.bf16.mxu0 0
        %2099 = vmatpush1.bf16.msra.mxu0 0
        %2100 = vmatprep.subr.bf16.mxu0 0
        %2101 = vmatpush1.bf16.msra.mxu0 0
        %2102 = vmatprep.subr.bf16.mxu0 0
        %2103 = vmatpush1.bf16.msra.mxu0 0
        %2104 = vmatprep.subr.bf16.mxu0 0
        %2105 = vmatpush1.bf16.msra.mxu0 0
        %2106 = vmatprep.subr.bf16.mxu0 0
        %2107 = vmatpush1.bf16.msra.mxu0 0
        %2108 = vmatprep.subr.bf16.mxu0 0
        %2109 = vmatpush1.bf16.msra.mxu0 0
        %2110 = vmatprep.subr.bf16.mxu0 0
        %2111 = vmatpush1.bf16.msra.mxu0 0
        %2112 = vmatprep.subr.bf16.mxu0 0
        %2113 = vmatpush1.bf16.msra.mxu0 0
        %2114 = vmatprep.subr.bf16.mxu0 0
        %2115 = vmatpush1.bf16.msra.mxu0 0
        %2116 = vmatprep.subr.bf16.mxu0 0
        %2117 = vmatpush1.bf16.msra.mxu0 0
        %2118 = vmatprep.subr.bf16.mxu0 0
        %2119 = vmatpush1.bf16.msra.mxu0 0
        %2120 = vmatprep.subr.bf16.mxu0 0
        %2121 = vmatpush1.bf16.msra.mxu0 0
        %2122 = vmatprep.subr.bf16.mxu0 0
        %2123 = vmatpush1.bf16.msra.mxu0 0
        %2124 = vmatprep.mubr.bf16.mxu0 0
        %2125 = vmatmul.mubr.bf16.gmra.mrb[0].mxu0 %v2090
        %v2126 = vpop.f32.mrb[0].mxu0
        %v2127 = vadd.f32 0.0, %v2126
        %v2128 = vpop.f32.mrb[0].mxu0
        %v2129 = vpop.f32.mrb[0].mxu0
        %v2130 = vpop.f32.mrb[0].mxu0
        %2131 = vdwg.mxu0
        %2132 = vxpose.xlu0.c.b16.start [1/8] %v2000, 128
        %2133 = vxpose.xlu0.c.b16.cont [2/8] 0, 128
        %2134 = vxpose.xlu0.c.b16.cont [3/8] 0, 128
        %2135 = vxpose.xlu0.c.b16.cont [4/8] 0, 128
        %2136 = vxpose.xlu0.c.b16.cont [5/8] 0, 128
        %2137 = vxpose.xlu0.c.b16.cont [6/8] 0, 128
        %2138 = vxpose.xlu0.c.b16.cont [7/8] 0, 128
        %2139 = vxpose.xlu0.c.b16.end [8/8] 0, 128
        %v2140 = vpop.trf.xlu0
        %v2141 = vpop.trf.xlu0
        %v2142 = vpop.trf.xlu0
        %v2143 = vpop.trf.xlu0
        %v2144 = vpop.trf.xlu0
        %v2145 = vpop.trf.xlu0
        %v2146 = vpop.trf.xlu0
        %v2147 = vpop.trf.xlu0
        %v2149 = vsel %vm551, %v2140, 0
        %2151 = vmatprep.subr.bf16.mxu0 0
        %2152 = vmatpush1.bf16.msra.mxu0 %v2008
        %2153 = vmatprep.subr.bf16.mxu0 0
        %2154 = vmatpush1.bf16.msra.mxu0 0
        %2155 = vmatprep.subr.bf16.mxu0 0
        %2156 = vmatpush1.bf16.msra.mxu0 0
        %2157 = vmatprep.subr.bf16.mxu0 0
        %2158 = vmatpush1.bf16.msra.mxu0 0
        %2159 = vmatprep.subr.bf16.mxu0 0
        %2160 = vmatpush1.bf16.msra.mxu0 0
        %2161 = vmatprep.subr.bf16.mxu0 0
        %2162 = vmatpush1.bf16.msra.mxu0 0
        %2163 = vmatprep.subr.bf16.mxu0 0
        %2164 = vmatpush1.bf16.msra.mxu0 0
        %2165 = vmatprep.subr.bf16.mxu0 0
        %2166 = vmatpush1.bf16.msra.mxu0 0
        %2167 = vmatprep.subr.bf16.mxu0 0
        %2168 = vmatpush1.bf16.msra.mxu0 0
        %2169 = vmatprep.subr.bf16.mxu0 0
        %2170 = vmatpush1.bf16.msra.mxu0 0
        %2171 = vmatprep.subr.bf16.mxu0 0
        %2172 = vmatpush1.bf16.msra.mxu0 0
        %2173 = vmatprep.subr.bf16.mxu0 0
        %2174 = vmatpush1.bf16.msra.mxu0 0
        %2175 = vmatprep.subr.bf16.mxu0 0
        %2176 = vmatpush1.bf16.msra.mxu0 0
        %2177 = vmatprep.subr.bf16.mxu0 0
        %2178 = vmatpush1.bf16.msra.mxu0 0
        %2179 = vmatprep.subr.bf16.mxu0 0
        %2180 = vmatpush1.bf16.msra.mxu0 0
        %2181 = vmatprep.subr.bf16.mxu0 0
        %2182 = vmatpush1.bf16.msra.mxu0 0
        %2183 = vmatprep.mubr.bf16.mxu0 0
        %2184 = vmatmul.mubr.bf16.gmra.mrb[0].mxu0 %v2149
        %v2185 = vpop.f32.mrb[0].mxu0
        %v2186 = vadd.f32 0.0, %v2185
        %v2187 = vpop.f32.mrb[0].mxu0
        %v2188 = vpop.f32.mrb[0].mxu0
        %v2189 = vpop.f32.mrb[0].mxu0
        %2190 = vdwg.mxu0
        %2191 = vxpose.xlu0.c.b16.start [1/8] %v2001, 128
        %2192 = vxpose.xlu0.c.b16.cont [2/8] 0, 128
        %2193 = vxpose.xlu0.c.b16.cont [3/8] 0, 128
        %2194 = vxpose.xlu0.c.b16.cont [4/8] 0, 128
        %2195 = vxpose.xlu0.c.b16.cont [5/8] 0, 128
        %2196 = vxpose.xlu0.c.b16.cont [6/8] 0, 128
        %2197 = vxpose.xlu0.c.b16.cont [7/8] 0, 128
        %2198 = vxpose.xlu0.c.b16.end [8/8] 0, 128
        %v2199 = vpop.trf.xlu0
        %v2200 = vpop.trf.xlu0
        %v2201 = vpop.trf.xlu0
        %v2202 = vpop.trf.xlu0
        %v2203 = vpop.trf.xlu0
        %v2204 = vpop.trf.xlu0
        %v2205 = vpop.trf.xlu0
        %v2206 = vpop.trf.xlu0
        %v2208 = vsel %vm551, %v2199, 0
        %2210 = vmatprep.subr.bf16.mxu0 0
        %2211 = vmatpush1.bf16.msra.mxu0 %v2009
        %2212 = vmatprep.subr.bf16.mxu0 0
        %2213 = vmatpush1.bf16.msra.mxu0 0
        %2214 = vmatprep.subr.bf16.mxu0 0
        %2215 = vmatpush1.bf16.msra.mxu0 0
        %2216 = vmatprep.subr.bf16.mxu0 0
        %2217 = vmatpush1.bf16.msra.mxu0 0
        %2218 = vmatprep.subr.bf16.mxu0 0
        %2219 = vmatpush1.bf16.msra.mxu0 0
        %2220 = vmatprep.subr.bf16.mxu0 0
        %2221 = vmatpush1.bf16.msra.mxu0 0
        %2222 = vmatprep.subr.bf16.mxu0 0
        %2223 = vmatpush1.bf16.msra.mxu0 0
        %2224 = vmatprep.subr.bf16.mxu0 0
        %2225 = vmatpush1.bf16.msra.mxu0 0
        %2226 = vmatprep.subr.bf16.mxu0 0
        %2227 = vmatpush1.bf16.msra.mxu0 0
        %2228 = vmatprep.subr.bf16.mxu0 0
        %2229 = vmatpush1.bf16.msra.mxu0 0
        %2230 = vmatprep.subr.bf16.mxu0 0
        %2231 = vmatpush1.bf16.msra.mxu0 0
        %2232 = vmatprep.subr.bf16.mxu0 0
        %2233 = vmatpush1.bf16.msra.mxu0 0
        %2234 = vmatprep.subr.bf16.mxu0 0
        %2235 = vmatpush1.bf16.msra.mxu0 0
        %2236 = vmatprep.subr.bf16.mxu0 0
        %2237 = vmatpush1.bf16.msra.mxu0 0
        %2238 = vmatprep.subr.bf16.mxu0 0
        %2239 = vmatpush1.bf16.msra.mxu0 0
        %2240 = vmatprep.subr.bf16.mxu0 0
        %2241 = vmatpush1.bf16.msra.mxu0 0
        %2242 = vmatprep.mubr.bf16.mxu0 0
        %2243 = vmatmul.mubr.bf16.gmra.mrb[0].mxu0 %v2208
        %v2244 = vpop.f32.mrb[0].mxu0
        %v2245 = vadd.f32 0.0, %v2244
        %v2246 = vpop.f32.mrb[0].mxu0
        %v2247 = vpop.f32.mrb[0].mxu0
        %v2248 = vpop.f32.mrb[0].mxu0
        %2249 = vdwg.mxu0
        %2250 = vxpose.xlu0.c.b16.start [1/8] %v2002, 128
        %2251 = vxpose.xlu0.c.b16.cont [2/8] 0, 128
        %2252 = vxpose.xlu0.c.b16.cont [3/8] 0, 128
        %2253 = vxpose.xlu0.c.b16.cont [4/8] 0, 128
        %2254 = vxpose.xlu0.c.b16.cont [5/8] 0, 128
        %2255 = vxpose.xlu0.c.b16.cont [6/8] 0, 128
        %2256 = vxpose.xlu0.c.b16.cont [7/8] 0, 128
        %2257 = vxpose.xlu0.c.b16.end [8/8] 0, 128
        %v2258 = vpop.trf.xlu0
        %v2259 = vpop.trf.xlu0
        %v2260 = vpop.trf.xlu0
        %v2261 = vpop.trf.xlu0
        %v2262 = vpop.trf.xlu0
        %v2263 = vpop.trf.xlu0
        %v2264 = vpop.trf.xlu0
        %v2265 = vpop.trf.xlu0
        %v2267 = vsel %vm551, %v2258, 0
        %2269 = vmatprep.subr.bf16.mxu0 0
        %2270 = vmatpush1.bf16.msra.mxu0 %v2010
        %2271 = vmatprep.subr.bf16.mxu0 0
        %2272 = vmatpush1.bf16.msra.mxu0 0
        %2273 = vmatprep.subr.bf16.mxu0 0
        %2274 = vmatpush1.bf16.msra.mxu0 0
        %2275 = vmatprep.subr.bf16.mxu0 0
        %2276 = vmatpush1.bf16.msra.mxu0 0
        %2277 = vmatprep.subr.bf16.mxu0 0
        %2278 = vmatpush1.bf16.msra.mxu0 0
        %2279 = vmatprep.subr.bf16.mxu0 0
        %2280 = vmatpush1.bf16.msra.mxu0 0
        %2281 = vmatprep.subr.bf16.mxu0 0
        %2282 = vmatpush1.bf16.msra.mxu0 0
        %2283 = vmatprep.subr.bf16.mxu0 0
        %2284 = vmatpush1.bf16.msra.mxu0 0
        %2285 = vmatprep.subr.bf16.mxu0 0
        %2286 = vmatpush1.bf16.msra.mxu0 0
        %2287 = vmatprep.subr.bf16.mxu0 0
        %2288 = vmatpush1.bf16.msra.mxu0 0
        %2289 = vmatprep.subr.bf16.mxu0 0
        %2290 = vmatpush1.bf16.msra.mxu0 0
        %2291 = vmatprep.subr.bf16.mxu0 0
        %2292 = vmatpush1.bf16.msra.mxu0 0
        %2293 = vmatprep.subr.bf16.mxu0 0
        %2294 = vmatpush1.bf16.msra.mxu0 0
        %2295 = vmatprep.subr.bf16.mxu0 0
        %2296 = vmatpush1.bf16.msra.mxu0 0
        %2297 = vmatprep.subr.bf16.mxu0 0
        %2298 = vmatpush1.bf16.msra.mxu0 0
        %2299 = vmatprep.subr.bf16.mxu0 0
        %2300 = vmatpush1.bf16.msra.mxu0 0
        %2301 = vmatprep.mubr.bf16.mxu0 0
        %2302 = vmatmul.mubr.bf16.gmra.mrb[0].mxu0 %v2267
        %v2303 = vpop.f32.mrb[0].mxu0
        %v2304 = vadd.f32 0.0, %v2303
        %v2305 = vpop.f32.mrb[0].mxu0
        %v2306 = vpop.f32.mrb[0].mxu0
        %v2307 = vpop.f32.mrb[0].mxu0
        %2308 = vdwg.mxu0
        %2309 = vxpose.xlu0.c.b16.start [1/8] %v2003, 128
        %2310 = vxpose.xlu0.c.b16.cont [2/8] 0, 128
        %2311 = vxpose.xlu0.c.b16.cont [3/8] 0, 128
        %2312 = vxpose.xlu0.c.b16.cont [4/8] 0, 128
        %2313 = vxpose.xlu0.c.b16.cont [5/8] 0, 128
        %2314 = vxpose.xlu0.c.b16.cont [6/8] 0, 128
        %2315 = vxpose.xlu0.c.b16.cont [7/8] 0, 128
        %2316 = vxpose.xlu0.c.b16.end [8/8] 0, 128
        %v2317 = vpop.trf.xlu0
        %v2318 = vpop.trf.xlu0
        %v2319 = vpop.trf.xlu0
        %v2320 = vpop.trf.xlu0
        %v2321 = vpop.trf.xlu0
        %v2322 = vpop.trf.xlu0
        %v2323 = vpop.trf.xlu0
        %v2324 = vpop.trf.xlu0
        %v2326 = vsel %vm551, %v2317, 0
        %2328 = vmatprep.subr.bf16.mxu0 0
        %2329 = vmatpush1.bf16.msra.mxu0 %v2011
        %2330 = vmatprep.subr.bf16.mxu0 0
        %2331 = vmatpush1.bf16.msra.mxu0 0
        %2332 = vmatprep.subr.bf16.mxu0 0
        %2333 = vmatpush1.bf16.msra.mxu0 0
        %2334 = vmatprep.subr.bf16.mxu0 0
        %2335 = vmatpush1.bf16.msra.mxu0 0
        %2336 = vmatprep.subr.bf16.mxu0 0
        %2337 = vmatpush1.bf16.msra.mxu0 0
        %2338 = vmatprep.subr.bf16.mxu0 0
        %2339 = vmatpush1.bf16.msra.mxu0 0
        %2340 = vmatprep.subr.bf16.mxu0 0
        %2341 = vmatpush1.bf16.msra.mxu0 0
        %2342 = vmatprep.subr.bf16.mxu0 0
        %2343 = vmatpush1.bf16.msra.mxu0 0
        %2344 = vmatprep.subr.bf16.mxu0 0
        %2345 = vmatpush1.bf16.msra.mxu0 0
        %2346 = vmatprep.subr.bf16.mxu0 0
        %2347 = vmatpush1.bf16.msra.mxu0 0
        %2348 = vmatprep.subr.bf16.mxu0 0
        %2349 = vmatpush1.bf16.msra.mxu0 0
        %2350 = vmatprep.subr.bf16.mxu0 0
        %2351 = vmatpush1.bf16.msra.mxu0 0
        %2352 = vmatprep.subr.bf16.mxu0 0
        %2353 = vmatpush1.bf16.msra.mxu0 0
        %2354 = vmatprep.subr.bf16.mxu0 0
        %2355 = vmatpush1.bf16.msra.mxu0 0
        %2356 = vmatprep.subr.bf16.mxu0 0
        %2357 = vmatpush1.bf16.msra.mxu0 0
        %2358 = vmatprep.subr.bf16.mxu0 0
        %2359 = vmatpush1.bf16.msra.mxu0 0
        %2360 = vmatprep.mubr.bf16.mxu0 0
        %2361 = vmatmul.mubr.bf16.gmra.mrb[0].mxu0 %v2326
        %v2362 = vpop.f32.mrb[0].mxu0
        %v2363 = vadd.f32 0.0, %v2362
        %v2364 = vpop.f32.mrb[0].mxu0
        %v2365 = vpop.f32.mrb[0].mxu0
        %v2366 = vpop.f32.mrb[0].mxu0
        %2367 = vdwg.mxu0
        %2368 = vxpose.xlu0.c.b16.start [1/8] %v2004, 128
        %2369 = vxpose.xlu0.c.b16.cont [2/8] 0, 128
        %2370 = vxpose.xlu0.c.b16.cont [3/8] 0, 128
        %2371 = vxpose.xlu0.c.b16.cont [4/8] 0, 128
        %2372 = vxpose.xlu0.c.b16.cont [5/8] 0, 128
        %2373 = vxpose.xlu0.c.b16.cont [6/8] 0, 128
        %2374 = vxpose.xlu0.c.b16.cont [7/8] 0, 128
        %2375 = vxpose.xlu0.c.b16.end [8/8] 0, 128
        %v2376 = vpop.trf.xlu0
        %v2377 = vpop.trf.xlu0
        %v2378 = vpop.trf.xlu0
        %v2379 = vpop.trf.xlu0
        %v2380 = vpop.trf.xlu0
        %v2381 = vpop.trf.xlu0
        %v2382 = vpop.trf.xlu0
        %v2383 = vpop.trf.xlu0
        %v2385 = vsel %vm551, %v2376, 0
        %2387 = vmatprep.subr.bf16.mxu0 0
        %2388 = vmatpush1.bf16.msra.mxu0 %v2012
        %2389 = vmatprep.subr.bf16.mxu0 0
        %2390 = vmatpush1.bf16.msra.mxu0 0
        %2391 = vmatprep.subr.bf16.mxu0 0
        %2392 = vmatpush1.bf16.msra.mxu0 0
        %2393 = vmatprep.subr.bf16.mxu0 0
        %2394 = vmatpush1.bf16.msra.mxu0 0
        %2395 = vmatprep.subr.bf16.mxu0 0
        %2396 = vmatpush1.bf16.msra.mxu0 0
        %2397 = vmatprep.subr.bf16.mxu0 0
        %2398 = vmatpush1.bf16.msra.mxu0 0
        %2399 = vmatprep.subr.bf16.mxu0 0
        %2400 = vmatpush1.bf16.msra.mxu0 0
        %2401 = vmatprep.subr.bf16.mxu0 0
        %2402 = vmatpush1.bf16.msra.mxu0 0
        %2403 = vmatprep.subr.bf16.mxu0 0
        %2404 = vmatpush1.bf16.msra.mxu0 0
        %2405 = vmatprep.subr.bf16.mxu0 0
        %2406 = vmatpush1.bf16.msra.mxu0 0
        %2407 = vmatprep.subr.bf16.mxu0 0
        %2408 = vmatpush1.bf16.msra.mxu0 0
        %2409 = vmatprep.subr.bf16.mxu0 0
        %2410 = vmatpush1.bf16.msra.mxu0 0
        %2411 = vmatprep.subr.bf16.mxu0 0
        %2412 = vmatpush1.bf16.msra.mxu0 0
        %2413 = vmatprep.subr.bf16.mxu0 0
        %2414 = vmatpush1.bf16.msra.mxu0 0
        %2415 = vmatprep.subr.bf16.mxu0 0
        %2416 = vmatpush1.bf16.msra.mxu0 0
        %2417 = vmatprep.subr.bf16.mxu0 0
        %2418 = vmatpush1.bf16.msra.mxu0 0
        %2419 = vmatprep.mubr.bf16.mxu0 0
        %2420 = vmatmul.mubr.bf16.gmra.mrb[0].mxu0 %v2385
        %v2421 = vpop.f32.mrb[0].mxu0
        %v2422 = vadd.f32 0.0, %v2421
        %v2423 = vpop.f32.mrb[0].mxu0
        %v2424 = vpop.f32.mrb[0].mxu0
        %v2425 = vpop.f32.mrb[0].mxu0
        %2426 = vdwg.mxu0
        %2427 = vxpose.xlu0.c.b16.start [1/8] %v2005, 128
        %2428 = vxpose.xlu0.c.b16.cont [2/8] 0, 128
        %2429 = vxpose.xlu0.c.b16.cont [3/8] 0, 128
        %2430 = vxpose.xlu0.c.b16.cont [4/8] 0, 128
        %2431 = vxpose.xlu0.c.b16.cont [5/8] 0, 128
        %2432 = vxpose.xlu0.c.b16.cont [6/8] 0, 128
        %2433 = vxpose.xlu0.c.b16.cont [7/8] 0, 128
        %2434 = vxpose.xlu0.c.b16.end [8/8] 0, 128
        %v2435 = vpop.trf.xlu0
        %v2436 = vpop.trf.xlu0
        %v2437 = vpop.trf.xlu0
        %v2438 = vpop.trf.xlu0
        %v2439 = vpop.trf.xlu0
        %v2440 = vpop.trf.xlu0
        %v2441 = vpop.trf.xlu0
        %v2442 = vpop.trf.xlu0
        %v2444 = vsel %vm551, %v2435, 0
        %2446 = vmatprep.subr.bf16.mxu0 0
        %2447 = vmatpush1.bf16.msra.mxu0 %v2013
        %2448 = vmatprep.subr.bf16.mxu0 0
        %2449 = vmatpush1.bf16.msra.mxu0 0
        %2450 = vmatprep.subr.bf16.mxu0 0
        %2451 = vmatpush1.bf16.msra.mxu0 0
        %2452 = vmatprep.subr.bf16.mxu0 0
        %2453 = vmatpush1.bf16.msra.mxu0 0
        %2454 = vmatprep.subr.bf16.mxu0 0
        %2455 = vmatpush1.bf16.msra.mxu0 0
        %2456 = vmatprep.subr.bf16.mxu0 0
        %2457 = vmatpush1.bf16.msra.mxu0 0
        %2458 = vmatprep.subr.bf16.mxu0 0
        %2459 = vmatpush1.bf16.msra.mxu0 0
        %2460 = vmatprep.subr.bf16.mxu0 0
        %2461 = vmatpush1.bf16.msra.mxu0 0
        %2462 = vmatprep.subr.bf16.mxu0 0
        %2463 = vmatpush1.bf16.msra.mxu0 0
        %2464 = vmatprep.subr.bf16.mxu0 0
        %2465 = vmatpush1.bf16.msra.mxu0 0
        %2466 = vmatprep.subr.bf16.mxu0 0
        %2467 = vmatpush1.bf16.msra.mxu0 0
        %2468 = vmatprep.subr.bf16.mxu0 0
        %2469 = vmatpush1.bf16.msra.mxu0 0
        %2470 = vmatprep.subr.bf16.mxu0 0
        %2471 = vmatpush1.bf16.msra.mxu0 0
        %2472 = vmatprep.subr.bf16.mxu0 0
        %2473 = vmatpush1.bf16.msra.mxu0 0
        %2474 = vmatprep.subr.bf16.mxu0 0
        %2475 = vmatpush1.bf16.msra.mxu0 0
        %2476 = vmatprep.subr.bf16.mxu0 0
        %2477 = vmatpush1.bf16.msra.mxu0 0
        %2478 = vmatprep.mubr.bf16.mxu0 0
        %2479 = vmatmul.mubr.bf16.gmra.mrb[0].mxu0 %v2444
        %v2480 = vpop.f32.mrb[0].mxu0
        %v2481 = vadd.f32 0.0, %v2480
        %v2482 = vpop.f32.mrb[0].mxu0
        %v2483 = vpop.f32.mrb[0].mxu0
        %v2484 = vpop.f32.mrb[0].mxu0
        %2485 = vdwg.mxu0
        %v2486 = vmul.f32 %v611, %v1486
        %v2487 = vmul.f32 %v614, %v1489
        %v2488 = vmul.f32 %v619, %v1532
        %v2489 = vmul.f32 %v622, %v1535
        %v2490 = vmul.f32 %v627, %v1578
        %v2491 = vmul.f32 %v630, %v1581
        %v2492 = vmul.f32 %v635, %v1624
        %v2493 = vmul.f32 %v638, %v1627
        %v2494 = vmul.f32 %v643, %v1670
        %v2495 = vmul.f32 %v646, %v1673
        %v2496 = vmul.f32 %v651, %v1716
        %v2497 = vmul.f32 %v654, %v1719
        %v2498 = vmul.f32 %v659, %v1762
        %v2499 = vmul.f32 %v662, %v1765
        %v2500 = vmul.f32 %v667, %v1808
        %v2501 = vmul.f32 %v670, %v1811
        %v2502 = vlaneseq
        %v2503 = vshrl.u32 %v2502, 7
        %v2504 = vsub.s32 0, %v2503
        %v2505 = vrot.slane %v2068, %v2504
        %v2506 = vlaneseq
        %v2507 = vshrl.u32 %v2506, 7
        %v2508 = vsub.s32 0, %v2507
        %v2509 = vrot.slane %v2127, %v2508
        %v2510 = vlaneseq
        %v2511 = vshrl.u32 %v2510, 7
        %v2512 = vsub.s32 0, %v2511
        %v2513 = vrot.slane %v2186, %v2512
        %v2514 = vlaneseq
        %v2515 = vshrl.u32 %v2514, 7
        %v2516 = vsub.s32 0, %v2515
        %v2517 = vrot.slane %v2245, %v2516
        %v2518 = vlaneseq
        %v2519 = vshrl.u32 %v2518, 7
        %v2520 = vsub.s32 0, %v2519
        %v2521 = vrot.slane %v2304, %v2520
        %v2522 = vlaneseq
        %v2523 = vshrl.u32 %v2522, 7
        %v2524 = vsub.s32 0, %v2523
        %v2525 = vrot.slane %v2363, %v2524
        %v2526 = vlaneseq
        %v2527 = vshrl.u32 %v2526, 7
        %v2528 = vsub.s32 0, %v2527
        %v2529 = vrot.slane %v2422, %v2528
        %v2530 = vlaneseq
        %v2531 = vshrl.u32 %v2530, 7
        %v2532 = vsub.s32 0, %v2531
        %v2533 = vrot.slane %v2481, %v2532
        %v2534 = vmul.f32 %v611, %v2505
        %v2535 = vmul.f32 %v614, %v2505
        %v2536 = vmul.f32 %v619, %v2509
        %v2537 = vmul.f32 %v622, %v2509
        %v2538 = vmul.f32 %v627, %v2513
        %v2539 = vmul.f32 %v630, %v2513
        %v2540 = vmul.f32 %v635, %v2517
        %v2541 = vmul.f32 %v638, %v2517
        %v2542 = vmul.f32 %v643, %v2521
        %v2543 = vmul.f32 %v646, %v2521
        %v2544 = vmul.f32 %v651, %v2525
        %v2545 = vmul.f32 %v654, %v2525
        %v2546 = vmul.f32 %v659, %v2529
        %v2547 = vmul.f32 %v662, %v2529
        %v2548 = vmul.f32 %v667, %v2533
        %v2549 = vmul.f32 %v670, %v2533
        %v2550 = vld [vmem:[%s7] sm:$0xff]
        %v2551 = vld [vmem:[%s7 + $0x8] sm:$0xff]
        %v2552 = vld [vmem:[%s7 + $0x10] sm:$0xff]
        %v2553 = vld [vmem:[%s7 + $0x18] sm:$0xff]
        %v2554 = vpack.c.bf16 %v2551, %v2550
        %v2555 = vpack.c.bf16 %v2553, %v2552
        %v2556 = vpack.c.bf16 %v1489, %v1486
        %v2557 = vpack.c.bf16 %v1535, %v1532
        %v2558 = vpack.c.bf16 %v1581, %v1578
        %v2559 = vpack.c.bf16 %v1627, %v1624
        %v2560 = vpack.c.bf16 %v1673, %v1670
        %v2561 = vpack.c.bf16 %v1719, %v1716
        %v2562 = vpack.c.bf16 %v1765, %v1762
        %v2563 = vpack.c.bf16 %v1811, %v1808
        %s2564 = scalar_lea.vmem %s7, 32
        %v2565 = vld [vmem:[%s2564] sm:$0xff]
        %v2566 = vld [vmem:[%s2564 + $0x8] sm:$0xff]
        %v2567 = vld [vmem:[%s2564 + $0x10] sm:$0xff]
        %v2568 = vld [vmem:[%s2564 + $0x18] sm:$0xff]
        %v2569 = vpack.c.bf16 %v2566, %v2565
        %v2570 = vpack.c.bf16 %v2568, %v2567
        %v2572 = vsel %vm773, %v2556, 0
        %v2575 = vsel %vm773, %v2557, 0
        %v2578 = vsel %vm773, %v2558, 0
        %v2581 = vsel %vm773, %v2559, 0
        %v2584 = vsel %vm773, %v2560, 0
        %v2587 = vsel %vm773, %v2561, 0
        %v2590 = vsel %vm773, %v2562, 0
        %v2593 = vsel %vm773, %v2563, 0
        %2595 = vmatprep.subr.bf16.mxu0 0
        %2596 = vmatpush1.bf16.msra.mxu0 %v2569
        %2597 = vmatprep.subr.bf16.mxu0 0
        %2598 = vmatpush1.bf16.msra.mxu0 %v2570
        %2599 = vmatprep.subr.bf16.mxu0 0
        %2600 = vmatpush1.bf16.msra.mxu0 0
        %2601 = vmatprep.subr.bf16.mxu0 0
        %2602 = vmatpush1.bf16.msra.mxu0 0
        %2603 = vmatprep.subr.bf16.mxu0 0
        %2604 = vmatpush1.bf16.msra.mxu0 0
        %2605 = vmatprep.subr.bf16.mxu0 0
        %2606 = vmatpush1.bf16.msra.mxu0 0
        %2607 = vmatprep.subr.bf16.mxu0 0
        %2608 = vmatpush1.bf16.msra.mxu0 0
        %2609 = vmatprep.subr.bf16.mxu0 0
        %2610 = vmatpush1.bf16.msra.mxu0 0
        %2611 = vmatprep.subr.bf16.mxu0 0
        %2612 = vmatpush1.bf16.msra.mxu0 0
        %2613 = vmatprep.subr.bf16.mxu0 0
        %2614 = vmatpush1.bf16.msra.mxu0 0
        %2615 = vmatprep.subr.bf16.mxu0 0
        %2616 = vmatpush1.bf16.msra.mxu0 0
        %2617 = vmatprep.subr.bf16.mxu0 0
        %2618 = vmatpush1.bf16.msra.mxu0 0
        %2619 = vmatprep.subr.bf16.mxu0 0
        %2620 = vmatpush1.bf16.msra.mxu0 0
        %2621 = vmatprep.subr.bf16.mxu0 0
        %2622 = vmatpush1.bf16.msra.mxu0 0
        %2623 = vmatprep.subr.bf16.mxu0 0
        %2624 = vmatpush1.bf16.msra.mxu0 0
        %2625 = vmatprep.subr.bf16.mxu0 0
        %2626 = vmatpush1.bf16.msra.mxu0 0
        %2627 = vmatprep.mubr.bf16.mxu0 0
        %2628 = vmatmul.mubr.bf16.gmra.mrb[0].mxu0 %v2572
        %v2629 = vpop.f32.mrb[0].mxu0
        %v2630 = vadd.f32 0.0, %v2629
        %v2631 = vpop.f32.mrb[0].mxu0
        %v2632 = vpop.f32.mrb[0].mxu0
        %v2633 = vadd.f32 0.0, %v2632
        %v2634 = vpop.f32.mrb[0].mxu0
        %2635 = vmatprep.mubr.bf16.mxu0 0
        %2636 = vmatmul.mubr.bf16.gmra.mrb[0].mxu0 %v2575
        %v2637 = vpop.f32.mrb[0].mxu0
        %v2638 = vadd.f32 0.0, %v2637
        %v2639 = vpop.f32.mrb[0].mxu0
        %v2640 = vpop.f32.mrb[0].mxu0
        %v2641 = vadd.f32 0.0, %v2640
        %v2642 = vpop.f32.mrb[0].mxu0
        %2643 = vmatprep.mubr.bf16.mxu0 0
        %2644 = vmatmul.mubr.bf16.gmra.mrb[0].mxu0 %v2578
        %v2645 = vpop.f32.mrb[0].mxu0
        %v2646 = vadd.f32 0.0, %v2645
        %v2647 = vpop.f32.mrb[0].mxu0
        %v2648 = vpop.f32.mrb[0].mxu0
        %v2649 = vadd.f32 0.0, %v2648
        %v2650 = vpop.f32.mrb[0].mxu0
        %2651 = vmatprep.mubr.bf16.mxu0 0
        %2652 = vmatmul.mubr.bf16.gmra.mrb[0].mxu0 %v2581
        %v2653 = vpop.f32.mrb[0].mxu0
        %v2654 = vadd.f32 0.0, %v2653
        %v2655 = vpop.f32.mrb[0].mxu0
        %v2656 = vpop.f32.mrb[0].mxu0
        %v2657 = vadd.f32 0.0, %v2656
        %v2658 = vpop.f32.mrb[0].mxu0
        %2659 = vmatprep.mubr.bf16.mxu0 0
        %2660 = vmatmul.mubr.bf16.gmra.mrb[0].mxu0 %v2584
        %v2661 = vpop.f32.mrb[0].mxu0
        %v2662 = vadd.f32 0.0, %v2661
        %v2663 = vpop.f32.mrb[0].mxu0
        %v2664 = vpop.f32.mrb[0].mxu0
        %v2665 = vadd.f32 0.0, %v2664
        %v2666 = vpop.f32.mrb[0].mxu0
        %2667 = vmatprep.mubr.bf16.mxu0 0
        %2668 = vmatmul.mubr.bf16.gmra.mrb[0].mxu0 %v2587
        %v2669 = vpop.f32.mrb[0].mxu0
        %v2670 = vadd.f32 0.0, %v2669
        %v2671 = vpop.f32.mrb[0].mxu0
        %v2672 = vpop.f32.mrb[0].mxu0
        %v2673 = vadd.f32 0.0, %v2672
        %v2674 = vpop.f32.mrb[0].mxu0
        %2675 = vmatprep.mubr.bf16.mxu0 0
        %2676 = vmatmul.mubr.bf16.gmra.mrb[0].mxu0 %v2590
        %v2677 = vpop.f32.mrb[0].mxu0
        %v2678 = vadd.f32 0.0, %v2677
        %v2679 = vpop.f32.mrb[0].mxu0
        %v2680 = vpop.f32.mrb[0].mxu0
        %v2681 = vadd.f32 0.0, %v2680
        %v2682 = vpop.f32.mrb[0].mxu0
        %2683 = vmatprep.mubr.bf16.mxu0 0
        %2684 = vmatmul.mubr.bf16.gmra.mrb[0].mxu0 %v2593
        %v2685 = vpop.f32.mrb[0].mxu0
        %v2686 = vadd.f32 0.0, %v2685
        %v2687 = vpop.f32.mrb[0].mxu0
        %v2688 = vpop.f32.mrb[0].mxu0
        %v2689 = vadd.f32 0.0, %v2688
        %v2690 = vpop.f32.mrb[0].mxu0
        %2691 = vdwg.mxu0
        %v2693 = vsel %vm773, %v2006, 0
        %v2696 = vsel %vm773, %v2007, 0
        %v2699 = vsel %vm773, %v2008, 0
        %v2702 = vsel %vm773, %v2009, 0
        %v2705 = vsel %vm773, %v2010, 0
        %v2708 = vsel %vm773, %v2011, 0
        %v2711 = vsel %vm773, %v2012, 0
        %v2714 = vsel %vm773, %v2013, 0
        %2716 = vmatprep.subr.bf16.mxu0 0
        %2717 = vmatpush1.bf16.msra.mxu0 %v2554
        %2718 = vmatprep.subr.bf16.mxu0 0
        %2719 = vmatpush1.bf16.msra.mxu0 %v2555
        %2720 = vmatprep.subr.bf16.mxu0 0
        %2721 = vmatpush1.bf16.msra.mxu0 0
        %2722 = vmatprep.subr.bf16.mxu0 0
        %2723 = vmatpush1.bf16.msra.mxu0 0
        %2724 = vmatprep.subr.bf16.mxu0 0
        %2725 = vmatpush1.bf16.msra.mxu0 0
        %2726 = vmatprep.subr.bf16.mxu0 0
        %2727 = vmatpush1.bf16.msra.mxu0 0
        %2728 = vmatprep.subr.bf16.mxu0 0
        %2729 = vmatpush1.bf16.msra.mxu0 0
        %2730 = vmatprep.subr.bf16.mxu0 0
        %2731 = vmatpush1.bf16.msra.mxu0 0
        %2732 = vmatprep.subr.bf16.mxu0 0
        %2733 = vmatpush1.bf16.msra.mxu0 0
        %2734 = vmatprep.subr.bf16.mxu0 0
        %2735 = vmatpush1.bf16.msra.mxu0 0
        %2736 = vmatprep.subr.bf16.mxu0 0
        %2737 = vmatpush1.bf16.msra.mxu0 0
        %2738 = vmatprep.subr.bf16.mxu0 0
        %2739 = vmatpush1.bf16.msra.mxu0 0
        %2740 = vmatprep.subr.bf16.mxu0 0
        %2741 = vmatpush1.bf16.msra.mxu0 0
        %2742 = vmatprep.subr.bf16.mxu0 0
        %2743 = vmatpush1.bf16.msra.mxu0 0
        %2744 = vmatprep.subr.bf16.mxu0 0
        %2745 = vmatpush1.bf16.msra.mxu0 0
        %2746 = vmatprep.subr.bf16.mxu0 0
        %2747 = vmatpush1.bf16.msra.mxu0 0
        %2748 = vmatprep.mubr.bf16.mxu0 0
        %2749 = vmatmul.mubr.bf16.gmra.mrb[0].mxu0 %v2693
        %v2750 = vpop.f32.mrb[0].mxu0
        %v2751 = vadd.f32 %v2630, %v2750
        %v2752 = vpop.f32.mrb[0].mxu0
        %v2753 = vpop.f32.mrb[0].mxu0
        %v2754 = vadd.f32 %v2633, %v2753
        %v2755 = vpop.f32.mrb[0].mxu0
        %2756 = vmatprep.mubr.bf16.mxu0 0
        %2757 = vmatmul.mubr.bf16.gmra.mrb[0].mxu0 %v2696
        %v2758 = vpop.f32.mrb[0].mxu0
        %v2759 = vadd.f32 %v2638, %v2758
        %v2760 = vpop.f32.mrb[0].mxu0
        %v2761 = vpop.f32.mrb[0].mxu0
        %v2762 = vadd.f32 %v2641, %v2761
        %v2763 = vpop.f32.mrb[0].mxu0
        %2764 = vmatprep.mubr.bf16.mxu0 0
        %2765 = vmatmul.mubr.bf16.gmra.mrb[0].mxu0 %v2699
        %v2766 = vpop.f32.mrb[0].mxu0
        %v2767 = vadd.f32 %v2646, %v2766
        %v2768 = vpop.f32.mrb[0].mxu0
        %v2769 = vpop.f32.mrb[0].mxu0
        %v2770 = vadd.f32 %v2649, %v2769
        %v2771 = vpop.f32.mrb[0].mxu0
        %2772 = vmatprep.mubr.bf16.mxu0 0
        %2773 = vmatmul.mubr.bf16.gmra.mrb[0].mxu0 %v2702
        %v2774 = vpop.f32.mrb[0].mxu0
        %v2775 = vadd.f32 %v2654, %v2774
        %v2776 = vpop.f32.mrb[0].mxu0
        %v2777 = vpop.f32.mrb[0].mxu0
        %v2778 = vadd.f32 %v2657, %v2777
        %v2779 = vpop.f32.mrb[0].mxu0
        %2780 = vmatprep.mubr.bf16.mxu0 0
        %2781 = vmatmul.mubr.bf16.gmra.mrb[0].mxu0 %v2705
        %v2782 = vpop.f32.mrb[0].mxu0
        %v2783 = vadd.f32 %v2662, %v2782
        %v2784 = vpop.f32.mrb[0].mxu0
        %v2785 = vpop.f32.mrb[0].mxu0
        %v2786 = vadd.f32 %v2665, %v2785
        %v2787 = vpop.f32.mrb[0].mxu0
        %2788 = vmatprep.mubr.bf16.mxu0 0
        %2789 = vmatmul.mubr.bf16.gmra.mrb[0].mxu0 %v2708
        %v2790 = vpop.f32.mrb[0].mxu0
        %v2791 = vadd.f32 %v2670, %v2790
        %v2792 = vpop.f32.mrb[0].mxu0
        %v2793 = vpop.f32.mrb[0].mxu0
        %v2794 = vadd.f32 %v2673, %v2793
        %v2795 = vpop.f32.mrb[0].mxu0
        %2796 = vmatprep.mubr.bf16.mxu0 0
        %2797 = vmatmul.mubr.bf16.gmra.mrb[0].mxu0 %v2711
        %v2798 = vpop.f32.mrb[0].mxu0
        %v2799 = vadd.f32 %v2678, %v2798
        %v2800 = vpop.f32.mrb[0].mxu0
        %v2801 = vpop.f32.mrb[0].mxu0
        %v2802 = vadd.f32 %v2681, %v2801
        %v2803 = vpop.f32.mrb[0].mxu0
        %2804 = vmatprep.mubr.bf16.mxu0 0
        %2805 = vmatmul.mubr.bf16.gmra.mrb[0].mxu0 %v2714
        %v2806 = vpop.f32.mrb[0].mxu0
        %v2807 = vadd.f32 %v2686, %v2806
        %v2808 = vpop.f32.mrb[0].mxu0
        %v2809 = vpop.f32.mrb[0].mxu0
        %v2810 = vadd.f32 %v2689, %v2809
        %v2811 = vpop.f32.mrb[0].mxu0
        %2812 = vdwg.mxu0
        %v2813 = vpack.c.bf16 %v2487, %v2486
        %v2814 = vpack.c.bf16 %v2489, %v2488
        %v2815 = vpack.c.bf16 %v2491, %v2490
        %v2816 = vpack.c.bf16 %v2493, %v2492
        %v2817 = vpack.c.bf16 %v2495, %v2494
        %v2818 = vpack.c.bf16 %v2497, %v2496
        %v2819 = vpack.c.bf16 %v2499, %v2498
        %v2820 = vpack.c.bf16 %v2501, %v2500
        %s2821 = scalar_lea.vmem %s7, 64
        %v2822 = vld [vmem:[%s2821] sm:$0xff]
        %v2823 = vld [vmem:[%s2821 + $0x8] sm:$0xff]
        %v2824 = vld [vmem:[%s2821 + $0x10] sm:$0xff]
        %v2825 = vld [vmem:[%s2821 + $0x18] sm:$0xff]
        %v2826 = vpack.c.bf16 %v2823, %v2822
        %v2827 = vpack.c.bf16 %v2825, %v2824
        %v2829 = vsel %vm773, %v2813, 0
        %v2832 = vsel %vm773, %v2814, 0
        %v2835 = vsel %vm773, %v2815, 0
        %v2838 = vsel %vm773, %v2816, 0
        %v2841 = vsel %vm773, %v2817, 0
        %v2844 = vsel %vm773, %v2818, 0
        %v2847 = vsel %vm773, %v2819, 0
        %v2850 = vsel %vm773, %v2820, 0
        %2852 = vmatprep.subr.bf16.mxu0 0
        %2853 = vmatpush1.bf16.msra.mxu0 %v2826
        %2854 = vmatprep.subr.bf16.mxu0 0
        %2855 = vmatpush1.bf16.msra.mxu0 %v2827
        %2856 = vmatprep.subr.bf16.mxu0 0
        %2857 = vmatpush1.bf16.msra.mxu0 0
        %2858 = vmatprep.subr.bf16.mxu0 0
        %2859 = vmatpush1.bf16.msra.mxu0 0
        %2860 = vmatprep.subr.bf16.mxu0 0
        %2861 = vmatpush1.bf16.msra.mxu0 0
        %2862 = vmatprep.subr.bf16.mxu0 0
        %2863 = vmatpush1.bf16.msra.mxu0 0
        %2864 = vmatprep.subr.bf16.mxu0 0
        %2865 = vmatpush1.bf16.msra.mxu0 0
        %2866 = vmatprep.subr.bf16.mxu0 0
        %2867 = vmatpush1.bf16.msra.mxu0 0
        %2868 = vmatprep.subr.bf16.mxu0 0
        %2869 = vmatpush1.bf16.msra.mxu0 0
        %2870 = vmatprep.subr.bf16.mxu0 0
        %2871 = vmatpush1.bf16.msra.mxu0 0
        %2872 = vmatprep.subr.bf16.mxu0 0
        %2873 = vmatpush1.bf16.msra.mxu0 0
        %2874 = vmatprep.subr.bf16.mxu0 0
        %2875 = vmatpush1.bf16.msra.mxu0 0
        %2876 = vmatprep.subr.bf16.mxu0 0
        %2877 = vmatpush1.bf16.msra.mxu0 0
        %2878 = vmatprep.subr.bf16.mxu0 0
        %2879 = vmatpush1.bf16.msra.mxu0 0
        %2880 = vmatprep.subr.bf16.mxu0 0
        %2881 = vmatpush1.bf16.msra.mxu0 0
        %2882 = vmatprep.subr.bf16.mxu0 0
        %2883 = vmatpush1.bf16.msra.mxu0 0
        %2884 = vmatprep.mubr.bf16.mxu0 0
        %2885 = vmatmul.mubr.bf16.gmra.mrb[0].mxu0 %v2829
        %v2886 = vpop.f32.mrb[0].mxu0
        %v2887 = vadd.f32 0.0, %v2886
        %v2888 = vpop.f32.mrb[0].mxu0
        %v2889 = vpop.f32.mrb[0].mxu0
        %v2890 = vadd.f32 0.0, %v2889
        %v2891 = vpop.f32.mrb[0].mxu0
        %2892 = vmatprep.mubr.bf16.mxu0 0
        %2893 = vmatmul.mubr.bf16.gmra.mrb[0].mxu0 %v2832
        %v2894 = vpop.f32.mrb[0].mxu0
        %v2895 = vadd.f32 0.0, %v2894
        %v2896 = vpop.f32.mrb[0].mxu0
        %v2897 = vpop.f32.mrb[0].mxu0
        %v2898 = vadd.f32 0.0, %v2897
        %v2899 = vpop.f32.mrb[0].mxu0
        %2900 = vmatprep.mubr.bf16.mxu0 0
        %2901 = vmatmul.mubr.bf16.gmra.mrb[0].mxu0 %v2835
        %v2902 = vpop.f32.mrb[0].mxu0
        %v2903 = vadd.f32 0.0, %v2902
        %v2904 = vpop.f32.mrb[0].mxu0
        %v2905 = vpop.f32.mrb[0].mxu0
        %v2906 = vadd.f32 0.0, %v2905
        %v2907 = vpop.f32.mrb[0].mxu0
        %2908 = vmatprep.mubr.bf16.mxu0 0
        %2909 = vmatmul.mubr.bf16.gmra.mrb[0].mxu0 %v2838
        %v2910 = vpop.f32.mrb[0].mxu0
        %v2911 = vadd.f32 0.0, %v2910
        %v2912 = vpop.f32.mrb[0].mxu0
        %v2913 = vpop.f32.mrb[0].mxu0
        %v2914 = vadd.f32 0.0, %v2913
        %v2915 = vpop.f32.mrb[0].mxu0
        %2916 = vmatprep.mubr.bf16.mxu0 0
        %2917 = vmatmul.mubr.bf16.gmra.mrb[0].mxu0 %v2841
        %v2918 = vpop.f32.mrb[0].mxu0
        %v2919 = vadd.f32 0.0, %v2918
        %v2920 = vpop.f32.mrb[0].mxu0
        %v2921 = vpop.f32.mrb[0].mxu0
        %v2922 = vadd.f32 0.0, %v2921
        %v2923 = vpop.f32.mrb[0].mxu0
        %2924 = vmatprep.mubr.bf16.mxu0 0
        %2925 = vmatmul.mubr.bf16.gmra.mrb[0].mxu0 %v2844
        %v2926 = vpop.f32.mrb[0].mxu0
        %v2927 = vadd.f32 0.0, %v2926
        %v2928 = vpop.f32.mrb[0].mxu0
        %v2929 = vpop.f32.mrb[0].mxu0
        %v2930 = vadd.f32 0.0, %v2929
        %v2931 = vpop.f32.mrb[0].mxu0
        %2932 = vmatprep.mubr.bf16.mxu0 0
        %2933 = vmatmul.mubr.bf16.gmra.mrb[0].mxu0 %v2847
        %v2934 = vpop.f32.mrb[0].mxu0
        %v2935 = vadd.f32 0.0, %v2934
        %v2936 = vpop.f32.mrb[0].mxu0
        %v2937 = vpop.f32.mrb[0].mxu0
        %v2938 = vadd.f32 0.0, %v2937
        %v2939 = vpop.f32.mrb[0].mxu0
        %2940 = vmatprep.mubr.bf16.mxu0 0
        %2941 = vmatmul.mubr.bf16.gmra.mrb[0].mxu0 %v2850
        %v2942 = vpop.f32.mrb[0].mxu0
        %v2943 = vadd.f32 0.0, %v2942
        %v2944 = vpop.f32.mrb[0].mxu0
        %v2945 = vpop.f32.mrb[0].mxu0
        %v2946 = vadd.f32 0.0, %v2945
        %v2947 = vpop.f32.mrb[0].mxu0
        %2948 = vdwg.mxu0
        %v2949 = vadd.f32 %v2751, %v2887
        %v2950 = vadd.f32 %v2754, %v2890
        %v2951 = vadd.f32 %v2759, %v2895
        %v2952 = vadd.f32 %v2762, %v2898
        %v2953 = vadd.f32 %v2767, %v2903
        %v2954 = vadd.f32 %v2770, %v2906
        %v2955 = vadd.f32 %v2775, %v2911
        %v2956 = vadd.f32 %v2778, %v2914
        %v2957 = vadd.f32 %v2783, %v2919
        %v2958 = vadd.f32 %v2786, %v2922
        %v2959 = vadd.f32 %v2791, %v2927
        %v2960 = vadd.f32 %v2794, %v2930
        %v2961 = vadd.f32 %v2799, %v2935
        %v2962 = vadd.f32 %v2802, %v2938
        %v2963 = vadd.f32 %v2807, %v2943
        %v2964 = vadd.f32 %v2810, %v2946
        %v2965 = vpack.c.bf16 %v2535, %v2534
        %v2966 = vpack.c.bf16 %v2537, %v2536
        %v2967 = vpack.c.bf16 %v2539, %v2538
        %v2968 = vpack.c.bf16 %v2541, %v2540
        %v2969 = vpack.c.bf16 %v2543, %v2542
        %v2970 = vpack.c.bf16 %v2545, %v2544
        %v2971 = vpack.c.bf16 %v2547, %v2546
        %v2972 = vpack.c.bf16 %v2549, %v2548
        %s2973 = scalar_lea.vmem %s7, 96
        %v2974 = vld [vmem:[%s2973] sm:$0xff]
        %v2975 = vld [vmem:[%s2973 + $0x8] sm:$0xff]
        %v2976 = vld [vmem:[%s2973 + $0x10] sm:$0xff]
        %v2977 = vld [vmem:[%s2973 + $0x18] sm:$0xff]
        %v2978 = vpack.c.bf16 %v2975, %v2974
        %v2979 = vpack.c.bf16 %v2977, %v2976
        %v2981 = vsel %vm773, %v2965, 0
        %v2984 = vsel %vm773, %v2966, 0
        %v2987 = vsel %vm773, %v2967, 0
        %v2990 = vsel %vm773, %v2968, 0
        %v2993 = vsel %vm773, %v2969, 0
        %v2996 = vsel %vm773, %v2970, 0
        %v2999 = vsel %vm773, %v2971, 0
        %v3002 = vsel %vm773, %v2972, 0
        %3004 = vmatprep.subr.bf16.mxu0 0
        %3005 = vmatpush1.bf16.msra.mxu0 %v2978
        %3006 = vmatprep.subr.bf16.mxu0 0
        %3007 = vmatpush1.bf16.msra.mxu0 %v2979
        %3008 = vmatprep.subr.bf16.mxu0 0
        %3009 = vmatpush1.bf16.msra.mxu0 0
        %3010 = vmatprep.subr.bf16.mxu0 0
        %3011 = vmatpush1.bf16.msra.mxu0 0
        %3012 = vmatprep.subr.bf16.mxu0 0
        %3013 = vmatpush1.bf16.msra.mxu0 0
        %3014 = vmatprep.subr.bf16.mxu0 0
        %3015 = vmatpush1.bf16.msra.mxu0 0
        %3016 = vmatprep.subr.bf16.mxu0 0
        %3017 = vmatpush1.bf16.msra.mxu0 0
        %3018 = vmatprep.subr.bf16.mxu0 0
        %3019 = vmatpush1.bf16.msra.mxu0 0
        %3020 = vmatprep.subr.bf16.mxu0 0
        %3021 = vmatpush1.bf16.msra.mxu0 0
        %3022 = vmatprep.subr.bf16.mxu0 0
        %3023 = vmatpush1.bf16.msra.mxu0 0
        %3024 = vmatprep.subr.bf16.mxu0 0
        %3025 = vmatpush1.bf16.msra.mxu0 0
        %3026 = vmatprep.subr.bf16.mxu0 0
        %3027 = vmatpush1.bf16.msra.mxu0 0
        %3028 = vmatprep.subr.bf16.mxu0 0
        %3029 = vmatpush1.bf16.msra.mxu0 0
        %3030 = vmatprep.subr.bf16.mxu0 0
        %3031 = vmatpush1.bf16.msra.mxu0 0
        %3032 = vmatprep.subr.bf16.mxu0 0
        %3033 = vmatpush1.bf16.msra.mxu0 0
        %3034 = vmatprep.subr.bf16.mxu0 0
        %3035 = vmatpush1.bf16.msra.mxu0 0
        %3036 = vmatprep.mubr.bf16.mxu0 0
        %3037 = vmatmul.mubr.bf16.gmra.mrb[0].mxu0 %v2981
        %v3038 = vpop.f32.mrb[0].mxu0
        %v3039 = vadd.f32 0.0, %v3038
        %v3040 = vpop.f32.mrb[0].mxu0
        %v3041 = vpop.f32.mrb[0].mxu0
        %v3042 = vadd.f32 0.0, %v3041
        %v3043 = vpop.f32.mrb[0].mxu0
        %3044 = vmatprep.mubr.bf16.mxu0 0
        %3045 = vmatmul.mubr.bf16.gmra.mrb[0].mxu0 %v2984
        %v3046 = vpop.f32.mrb[0].mxu0
        %v3047 = vadd.f32 0.0, %v3046
        %v3048 = vpop.f32.mrb[0].mxu0
        %v3049 = vpop.f32.mrb[0].mxu0
        %v3050 = vadd.f32 0.0, %v3049
        %v3051 = vpop.f32.mrb[0].mxu0
        %3052 = vmatprep.mubr.bf16.mxu0 0
        %3053 = vmatmul.mubr.bf16.gmra.mrb[0].mxu0 %v2987
        %v3054 = vpop.f32.mrb[0].mxu0
        %v3055 = vadd.f32 0.0, %v3054
        %v3056 = vpop.f32.mrb[0].mxu0
        %v3057 = vpop.f32.mrb[0].mxu0
        %v3058 = vadd.f32 0.0, %v3057
        %v3059 = vpop.f32.mrb[0].mxu0
        %3060 = vmatprep.mubr.bf16.mxu0 0
        %3061 = vmatmul.mubr.bf16.gmra.mrb[0].mxu0 %v2990
        %v3062 = vpop.f32.mrb[0].mxu0
        %v3063 = vadd.f32 0.0, %v3062
        %v3064 = vpop.f32.mrb[0].mxu0
        %v3065 = vpop.f32.mrb[0].mxu0
        %v3066 = vadd.f32 0.0, %v3065
        %v3067 = vpop.f32.mrb[0].mxu0
        %3068 = vmatprep.mubr.bf16.mxu0 0
        %3069 = vmatmul.mubr.bf16.gmra.mrb[0].mxu0 %v2993
        %v3070 = vpop.f32.mrb[0].mxu0
        %v3071 = vadd.f32 0.0, %v3070
        %v3072 = vpop.f32.mrb[0].mxu0
        %v3073 = vpop.f32.mrb[0].mxu0
        %v3074 = vadd.f32 0.0, %v3073
        %v3075 = vpop.f32.mrb[0].mxu0
        %3076 = vmatprep.mubr.bf16.mxu0 0
        %3077 = vmatmul.mubr.bf16.gmra.mrb[0].mxu0 %v2996
        %v3078 = vpop.f32.mrb[0].mxu0
        %v3079 = vadd.f32 0.0, %v3078
        %v3080 = vpop.f32.mrb[0].mxu0
        %v3081 = vpop.f32.mrb[0].mxu0
        %v3082 = vadd.f32 0.0, %v3081
        %v3083 = vpop.f32.mrb[0].mxu0
        %3084 = vmatprep.mubr.bf16.mxu0 0
        %3085 = vmatmul.mubr.bf16.gmra.mrb[0].mxu0 %v2999
        %v3086 = vpop.f32.mrb[0].mxu0
        %v3087 = vadd.f32 0.0, %v3086
        %v3088 = vpop.f32.mrb[0].mxu0
        %v3089 = vpop.f32.mrb[0].mxu0
        %v3090 = vadd.f32 0.0, %v3089
        %v3091 = vpop.f32.mrb[0].mxu0
        %3092 = vmatprep.mubr.bf16.mxu0 0
        %3093 = vmatmul.mubr.bf16.gmra.mrb[0].mxu0 %v3002
        %v3094 = vpop.f32.mrb[0].mxu0
        %v3095 = vadd.f32 0.0, %v3094
        %v3096 = vpop.f32.mrb[0].mxu0
        %v3097 = vpop.f32.mrb[0].mxu0
        %v3098 = vadd.f32 0.0, %v3097
        %v3099 = vpop.f32.mrb[0].mxu0
        %3100 = vdwg.mxu0
        %v3101 = vadd.f32 %v2949, %v3039
        %v3102 = vadd.f32 %v2950, %v3042
        %v3103 = vadd.f32 %v2951, %v3047
        %v3104 = vadd.f32 %v2952, %v3050
        %v3105 = vadd.f32 %v2953, %v3055
        %v3106 = vadd.f32 %v2954, %v3058
        %v3107 = vadd.f32 %v2955, %v3063
        %v3108 = vadd.f32 %v2956, %v3066
        %v3109 = vadd.f32 %v2957, %v3071
        %v3110 = vadd.f32 %v2958, %v3074
        %v3111 = vadd.f32 %v2959, %v3079
        %v3112 = vadd.f32 %v2960, %v3082
        %v3113 = vadd.f32 %v2961, %v3087
        %v3114 = vadd.f32 %v2962, %v3090
        %v3115 = vadd.f32 %v2963, %v3095
        %v3116 = vadd.f32 %v2964, %v3098
        %v3117 = vld [vmem:[%s8] sm:$0x1]
        %v3119 = vlaneseq
        %v3120 = vshrl.u32 %v3119, 7
        %v3121 = vsub.s32 0, %v3120
        %v3122 = vrot.slane %v3117, %v3121
        %v3124 = vadd.f32 %v3101, %v3122
        %v3125 = vadd.f32 %v3102, %v3122
        %v3126 = vadd.f32 %v3103, %v3122
        %v3127 = vadd.f32 %v3104, %v3122
        %v3128 = vadd.f32 %v3105, %v3122
        %v3129 = vadd.f32 %v3106, %v3122
        %v3130 = vadd.f32 %v3107, %v3122
        %v3131 = vadd.f32 %v3108, %v3122
        %v3132 = vadd.f32 %v3109, %v3122
        %v3133 = vadd.f32 %v3110, %v3122
        %v3134 = vadd.f32 %v3111, %v3122
        %v3135 = vadd.f32 %v3112, %v3122
        %v3136 = vadd.f32 %v3113, %v3122
        %v3137 = vadd.f32 %v3114, %v3122
        %v3138 = vadd.f32 %v3115, %v3122
        %v3139 = vadd.f32 %v3116, %v3122
        %v3140 = vpack.c.bf16 %v3125, %v3124
        %v3141 = vpack.c.bf16 %v3127, %v3126
        %v3142 = vpack.c.bf16 %v3129, %v3128
        %v3143 = vpack.c.bf16 %v3131, %v3130
        %v3144 = vpack.c.bf16 %v3133, %v3132
        %v3145 = vpack.c.bf16 %v3135, %v3134
        %v3146 = vpack.c.bf16 %v3137, %v3136
        %v3147 = vpack.c.bf16 %v3139, %v3138
        %v3148 = vld [vmem:[%s9] sm:$0xff]
        %v3149 = vld [vmem:[%s9 + $0x8] sm:$0xff]
        %v3150 = vld [vmem:[%s9 + $0x10] sm:$0xff]
        %v3151 = vld [vmem:[%s9 + $0x18] sm:$0xff]
        %v3152 = vpack.c.bf16 %v3149, %v3148
        %v3153 = vpack.c.bf16 %v3151, %v3150
        %v3154 = vld [vmem:[%s10] sm:$0x1]
        %v3156 = vlaneseq
        %v3157 = vshrl.u32 %v3156, 7
        %v3158 = vsub.s32 0, %v3157
        %v3159 = vrot.slane %v3154, %v3158
        %v3162 = vsel %vm773, %v3140, 0
        %v3165 = vsel %vm773, %v3141, 0
        %v3168 = vsel %vm773, %v3142, 0
        %v3171 = vsel %vm773, %v3143, 0
        %v3174 = vsel %vm773, %v3144, 0
        %v3177 = vsel %vm773, %v3145, 0
        %v3180 = vsel %vm773, %v3146, 0
        %v3183 = vsel %vm773, %v3147, 0
        %3185 = vmatprep.subr.bf16.mxu0 0
        %3186 = vmatpush1.bf16.msra.mxu0 %v3152
        %3187 = vmatprep.subr.bf16.mxu0 0
        %3188 = vmatpush1.bf16.msra.mxu0 %v3153
        %3189 = vmatprep.subr.bf16.mxu0 0
        %3190 = vmatpush1.bf16.msra.mxu0 0
        %3191 = vmatprep.subr.bf16.mxu0 0
        %3192 = vmatpush1.bf16.msra.mxu0 0
        %3193 = vmatprep.subr.bf16.mxu0 0
        %3194 = vmatpush1.bf16.msra.mxu0 0
        %3195 = vmatprep.subr.bf16.mxu0 0
        %3196 = vmatpush1.bf16.msra.mxu0 0
        %3197 = vmatprep.subr.bf16.mxu0 0
        %3198 = vmatpush1.bf16.msra.mxu0 0
        %3199 = vmatprep.subr.bf16.mxu0 0
        %3200 = vmatpush1.bf16.msra.mxu0 0
        %3201 = vmatprep.subr.bf16.mxu0 0
        %3202 = vmatpush1.bf16.msra.mxu0 0
        %3203 = vmatprep.subr.bf16.mxu0 0
        %3204 = vmatpush1.bf16.msra.mxu0 0
        %3205 = vmatprep.subr.bf16.mxu0 0
        %3206 = vmatpush1.bf16.msra.mxu0 0
        %3207 = vmatprep.subr.bf16.mxu0 0
        %3208 = vmatpush1.bf16.msra.mxu0 0
        %3209 = vmatprep.subr.bf16.mxu0 0
        %3210 = vmatpush1.bf16.msra.mxu0 0
        %3211 = vmatprep.subr.bf16.mxu0 0
        %3212 = vmatpush1.bf16.msra.mxu0 0
        %3213 = vmatprep.subr.bf16.mxu0 0
        %3214 = vmatpush1.bf16.msra.mxu0 0
        %3215 = vmatprep.subr.bf16.mxu0 0
        %3216 = vmatpush1.bf16.msra.mxu0 0
        %3217 = vmatprep.mubr.bf16.mxu0 0
        %3218 = vmatmul.mubr.bf16.gmra.mrb[0].mxu0 %v3162
        %v3219 = vpop.f32.mrb[0].mxu0
        %v3220 = vadd.f32 %v3159, %v3219
        %v3221 = vpop.f32.mrb[0].mxu0
        %v3222 = vpop.f32.mrb[0].mxu0
        %v3223 = vadd.f32 %v3159, %v3222
        %v3224 = vpop.f32.mrb[0].mxu0
        %3225 = vmatprep.mubr.bf16.mxu0 0
        %3226 = vmatmul.mubr.bf16.gmra.mrb[0].mxu0 %v3165
        %v3227 = vpop.f32.mrb[0].mxu0
        %v3228 = vadd.f32 %v3159, %v3227
        %v3229 = vpop.f32.mrb[0].mxu0
        %v3230 = vpop.f32.mrb[0].mxu0
        %v3231 = vadd.f32 %v3159, %v3230
        %v3232 = vpop.f32.mrb[0].mxu0
        %3233 = vmatprep.mubr.bf16.mxu0 0
        %3234 = vmatmul.mubr.bf16.gmra.mrb[0].mxu0 %v3168
        %v3235 = vpop.f32.mrb[0].mxu0
        %v3236 = vadd.f32 %v3159, %v3235
        %v3237 = vpop.f32.mrb[0].mxu0
        %v3238 = vpop.f32.mrb[0].mxu0
        %v3239 = vadd.f32 %v3159, %v3238
        %v3240 = vpop.f32.mrb[0].mxu0
        %3241 = vmatprep.mubr.bf16.mxu0 0
        %3242 = vmatmul.mubr.bf16.gmra.mrb[0].mxu0 %v3171
        %v3243 = vpop.f32.mrb[0].mxu0
        %v3244 = vadd.f32 %v3159, %v3243
        %v3245 = vpop.f32.mrb[0].mxu0
        %v3246 = vpop.f32.mrb[0].mxu0
        %v3247 = vadd.f32 %v3159, %v3246
        %v3248 = vpop.f32.mrb[0].mxu0
        %3249 = vmatprep.mubr.bf16.mxu0 0
        %3250 = vmatmul.mubr.bf16.gmra.mrb[0].mxu0 %v3174
        %v3251 = vpop.f32.mrb[0].mxu0
        %v3252 = vadd.f32 %v3159, %v3251
        %v3253 = vpop.f32.mrb[0].mxu0
        %v3254 = vpop.f32.mrb[0].mxu0
        %v3255 = vadd.f32 %v3159, %v3254
        %v3256 = vpop.f32.mrb[0].mxu0
        %3257 = vmatprep.mubr.bf16.mxu0 0
        %3258 = vmatmul.mubr.bf16.gmra.mrb[0].mxu0 %v3177
        %v3259 = vpop.f32.mrb[0].mxu0
        %v3260 = vadd.f32 %v3159, %v3259
        %v3261 = vpop.f32.mrb[0].mxu0
        %v3262 = vpop.f32.mrb[0].mxu0
        %v3263 = vadd.f32 %v3159, %v3262
        %v3264 = vpop.f32.mrb[0].mxu0
        %3265 = vmatprep.mubr.bf16.mxu0 0
        %3266 = vmatmul.mubr.bf16.gmra.mrb[0].mxu0 %v3180
        %v3267 = vpop.f32.mrb[0].mxu0
        %v3268 = vadd.f32 %v3159, %v3267
        %v3269 = vpop.f32.mrb[0].mxu0
        %v3270 = vpop.f32.mrb[0].mxu0
        %v3271 = vadd.f32 %v3159, %v3270
        %v3272 = vpop.f32.mrb[0].mxu0
        %3273 = vmatprep.mubr.bf16.mxu0 0
        %3274 = vmatmul.mubr.bf16.gmra.mrb[0].mxu0 %v3183
        %v3275 = vpop.f32.mrb[0].mxu0
        %v3276 = vadd.f32 %v3159, %v3275
        %v3277 = vpop.f32.mrb[0].mxu0
        %v3278 = vpop.f32.mrb[0].mxu0
        %v3279 = vadd.f32 %v3159, %v3278
        %v3280 = vpop.f32.mrb[0].mxu0
        %3281 = vdwg.mxu0
        %v3282 = vld [vmem:[%s11] sm:$0x1f]
        %v3283 = vld [vmem:[%s12] sm:$0x1f]
        %v3284 = vlaneseq
        %v3285 = vshrl.u32 %v3284, 7
        %v3286 = vsub.s32 0, %v3285
        %v3287 = vrot.slane %v3282, %v3286
        %v3288 = vmul.f32 %v611, %v3287
        %v3289 = vmul.f32 %v614, %v3287
        %v3290 = vmul.f32 %v619, %v3287
        %v3291 = vmul.f32 %v622, %v3287
        %v3292 = vmul.f32 %v627, %v3287
        %v3293 = vmul.f32 %v630, %v3287
        %v3294 = vmul.f32 %v635, %v3287
        %v3295 = vmul.f32 %v638, %v3287
        %v3296 = vmul.f32 %v643, %v3287
        %v3297 = vmul.f32 %v646, %v3287
        %v3298 = vmul.f32 %v651, %v3287
        %v3299 = vmul.f32 %v654, %v3287
        %v3300 = vmul.f32 %v659, %v3287
        %v3301 = vmul.f32 %v662, %v3287
        %v3302 = vmul.f32 %v667, %v3287
        %v3303 = vmul.f32 %v670, %v3287
        %v3304 = vlaneseq
        %v3305 = vshrl.u32 %v3304, 7
        %v3306 = vsub.s32 1, %v3305
        %v3307 = vrot.slane %v3282, %v3306
        %v3308 = vmul.f32 %v1486, %v3307
        %v3309 = vmul.f32 %v1489, %v3307
        %v3310 = vmul.f32 %v1532, %v3307
        %v3311 = vmul.f32 %v1535, %v3307
        %v3312 = vmul.f32 %v1578, %v3307
        %v3313 = vmul.f32 %v1581, %v3307
        %v3314 = vmul.f32 %v1624, %v3307
        %v3315 = vmul.f32 %v1627, %v3307
        %v3316 = vmul.f32 %v1670, %v3307
        %v3317 = vmul.f32 %v1673, %v3307
        %v3318 = vmul.f32 %v1716, %v3307
        %v3319 = vmul.f32 %v1719, %v3307
        %v3320 = vmul.f32 %v1762, %v3307
        %v3321 = vmul.f32 %v1765, %v3307
        %v3322 = vmul.f32 %v1808, %v3307
        %v3323 = vmul.f32 %v1811, %v3307
        %v3324 = vadd.f32 %v3288, %v3308
        %v3325 = vadd.f32 %v3289, %v3309
        %v3326 = vadd.f32 %v3290, %v3310
        %v3327 = vadd.f32 %v3291, %v3311
        %v3328 = vadd.f32 %v3292, %v3312
        %v3329 = vadd.f32 %v3293, %v3313
        %v3330 = vadd.f32 %v3294, %v3314
        %v3331 = vadd.f32 %v3295, %v3315
        %v3332 = vadd.f32 %v3296, %v3316
        %v3333 = vadd.f32 %v3297, %v3317
        %v3334 = vadd.f32 %v3298, %v3318
        %v3335 = vadd.f32 %v3299, %v3319
        %v3336 = vadd.f32 %v3300, %v3320
        %v3337 = vadd.f32 %v3301, %v3321
        %v3338 = vadd.f32 %v3302, %v3322
        %v3339 = vadd.f32 %v3303, %v3323
        %v3340 = vlaneseq
        %v3341 = vshrl.u32 %v3340, 7
        %v3342 = vsub.s32 2, %v3341
        %v3343 = vrot.slane %v3282, %v3342
        %v3344 = vmul.f32 %v2486, %v3343
        %v3345 = vmul.f32 %v2487, %v3343
        %v3346 = vmul.f32 %v2488, %v3343
        %v3347 = vmul.f32 %v2489, %v3343
        %v3348 = vmul.f32 %v2490, %v3343
        %v3349 = vmul.f32 %v2491, %v3343
        %v3350 = vmul.f32 %v2492, %v3343
        %v3351 = vmul.f32 %v2493, %v3343
        %v3352 = vmul.f32 %v2494, %v3343
        %v3353 = vmul.f32 %v2495, %v3343
        %v3354 = vmul.f32 %v2496, %v3343
        %v3355 = vmul.f32 %v2497, %v3343
        %v3356 = vmul.f32 %v2498, %v3343
        %v3357 = vmul.f32 %v2499, %v3343
        %v3358 = vmul.f32 %v2500, %v3343
        %v3359 = vmul.f32 %v2501, %v3343
        %v3360 = vadd.f32 %v3324, %v3344
        %v3361 = vadd.f32 %v3325, %v3345
        %v3362 = vadd.f32 %v3326, %v3346
        %v3363 = vadd.f32 %v3327, %v3347
        %v3364 = vadd.f32 %v3328, %v3348
        %v3365 = vadd.f32 %v3329, %v3349
        %v3366 = vadd.f32 %v3330, %v3350
        %v3367 = vadd.f32 %v3331, %v3351
        %v3368 = vadd.f32 %v3332, %v3352
        %v3369 = vadd.f32 %v3333, %v3353
        %v3370 = vadd.f32 %v3334, %v3354
        %v3371 = vadd.f32 %v3335, %v3355
        %v3372 = vadd.f32 %v3336, %v3356
        %v3373 = vadd.f32 %v3337, %v3357
        %v3374 = vadd.f32 %v3338, %v3358
        %v3375 = vadd.f32 %v3339, %v3359
        %v3376 = vlaneseq
        %v3377 = vshrl.u32 %v3376, 7
        %v3378 = vsub.s32 3, %v3377
        %v3379 = vrot.slane %v3282, %v3378
        %v3380 = vmul.f32 %v2534, %v3379
        %v3381 = vmul.f32 %v2535, %v3379
        %v3382 = vmul.f32 %v2536, %v3379
        %v3383 = vmul.f32 %v2537, %v3379
        %v3384 = vmul.f32 %v2538, %v3379
        %v3385 = vmul.f32 %v2539, %v3379
        %v3386 = vmul.f32 %v2540, %v3379
        %v3387 = vmul.f32 %v2541, %v3379
        %v3388 = vmul.f32 %v2542, %v3379
        %v3389 = vmul.f32 %v2543, %v3379
        %v3390 = vmul.f32 %v2544, %v3379
        %v3391 = vmul.f32 %v2545, %v3379
        %v3392 = vmul.f32 %v2546, %v3379
        %v3393 = vmul.f32 %v2547, %v3379
        %v3394 = vmul.f32 %v2548, %v3379
        %v3395 = vmul.f32 %v2549, %v3379
        %v3396 = vadd.f32 %v3360, %v3380
        %v3397 = vadd.f32 %v3361, %v3381
        %v3398 = vadd.f32 %v3362, %v3382
        %v3399 = vadd.f32 %v3363, %v3383
        %v3400 = vadd.f32 %v3364, %v3384
        %v3401 = vadd.f32 %v3365, %v3385
        %v3402 = vadd.f32 %v3366, %v3386
        %v3403 = vadd.f32 %v3367, %v3387
        %v3404 = vadd.f32 %v3368, %v3388
        %v3405 = vadd.f32 %v3369, %v3389
        %v3406 = vadd.f32 %v3370, %v3390
        %v3407 = vadd.f32 %v3371, %v3391
        %v3408 = vadd.f32 %v3372, %v3392
        %v3409 = vadd.f32 %v3373, %v3393
        %v3410 = vadd.f32 %v3374, %v3394
        %v3411 = vadd.f32 %v3375, %v3395
        %v3412 = vlaneseq
        %v3413 = vshrl.u32 %v3412, 7
        %v3414 = vsub.s32 4, %v3413
        %v3415 = vrot.slane %v3282, %v3414
        %v3416 = vmul.f32 %v3124, %v3415
        %v3417 = vmul.f32 %v3125, %v3415
        %v3418 = vmul.f32 %v3126, %v3415
        %v3419 = vmul.f32 %v3127, %v3415
        %v3420 = vmul.f32 %v3128, %v3415
        %v3421 = vmul.f32 %v3129, %v3415
        %v3422 = vmul.f32 %v3130, %v3415
        %v3423 = vmul.f32 %v3131, %v3415
        %v3424 = vmul.f32 %v3132, %v3415
        %v3425 = vmul.f32 %v3133, %v3415
        %v3426 = vmul.f32 %v3134, %v3415
        %v3427 = vmul.f32 %v3135, %v3415
        %v3428 = vmul.f32 %v3136, %v3415
        %v3429 = vmul.f32 %v3137, %v3415
        %v3430 = vmul.f32 %v3138, %v3415
        %v3431 = vmul.f32 %v3139, %v3415
        %v3432 = vadd.f32 %v3396, %v3416
        %v3433 = vadd.f32 %v3397, %v3417
        %v3434 = vadd.f32 %v3398, %v3418
        %v3435 = vadd.f32 %v3399, %v3419
        %v3436 = vadd.f32 %v3400, %v3420
        %v3437 = vadd.f32 %v3401, %v3421
        %v3438 = vadd.f32 %v3402, %v3422
        %v3439 = vadd.f32 %v3403, %v3423
        %v3440 = vadd.f32 %v3404, %v3424
        %v3441 = vadd.f32 %v3405, %v3425
        %v3442 = vadd.f32 %v3406, %v3426
        %v3443 = vadd.f32 %v3407, %v3427
        %v3444 = vadd.f32 %v3408, %v3428
        %v3445 = vadd.f32 %v3409, %v3429
        %v3446 = vadd.f32 %v3410, %v3430
        %v3447 = vadd.f32 %v3411, %v3431
        %v3448 = vsel %vm773, %v3432, 0.0
        %3449 = vadd.xlane.f32.xlu0 %v3448
        %v3450 = vpop.xlane.xlu0 %3449
        %v3451 = vsel %vm773, %v3433, 0.0
        %3452 = vadd.xlane.f32.xlu0 %v3451
        %v3453 = vpop.xlane.xlu0 %3452
        %v3454 = vsel %vm773, %v3434, 0.0
        %3455 = vadd.xlane.f32.xlu0 %v3454
        %v3456 = vpop.xlane.xlu0 %3455
        %v3457 = vsel %vm773, %v3435, 0.0
        %3458 = vadd.xlane.f32.xlu0 %v3457
        %v3459 = vpop.xlane.xlu0 %3458
        %v3460 = vsel %vm773, %v3436, 0.0
        %3461 = vadd.xlane.f32.xlu0 %v3460
        %v3462 = vpop.xlane.xlu0 %3461
        %v3463 = vsel %vm773, %v3437, 0.0
        %3464 = vadd.xlane.f32.xlu0 %v3463
        %v3465 = vpop.xlane.xlu0 %3464
        %v3466 = vsel %vm773, %v3438, 0.0
        %3467 = vadd.xlane.f32.xlu0 %v3466
        %v3468 = vpop.xlane.xlu0 %3467
        %v3469 = vsel %vm773, %v3439, 0.0
        %3470 = vadd.xlane.f32.xlu0 %v3469
        %v3471 = vpop.xlane.xlu0 %3470
        %v3472 = vsel %vm773, %v3440, 0.0
        %3473 = vadd.xlane.f32.xlu0 %v3472
        %v3474 = vpop.xlane.xlu0 %3473
        %v3475 = vsel %vm773, %v3441, 0.0
        %3476 = vadd.xlane.f32.xlu0 %v3475
        %v3477 = vpop.xlane.xlu0 %3476
        %v3478 = vsel %vm773, %v3442, 0.0
        %3479 = vadd.xlane.f32.xlu0 %v3478
        %v3480 = vpop.xlane.xlu0 %3479
        %v3481 = vsel %vm773, %v3443, 0.0
        %3482 = vadd.xlane.f32.xlu0 %v3481
        %v3483 = vpop.xlane.xlu0 %3482
        %v3484 = vsel %vm773, %v3444, 0.0
        %3485 = vadd.xlane.f32.xlu0 %v3484
        %v3486 = vpop.xlane.xlu0 %3485
        %v3487 = vsel %vm773, %v3445, 0.0
        %3488 = vadd.xlane.f32.xlu0 %v3487
        %v3489 = vpop.xlane.xlu0 %3488
        %v3490 = vsel %vm773, %v3446, 0.0
        %3491 = vadd.xlane.f32.xlu0 %v3490
        %v3492 = vpop.xlane.xlu0 %3491
        %v3493 = vsel %vm773, %v3447, 0.0
        %3494 = vadd.xlane.f32.xlu0 %v3493
        %v3495 = vpop.xlane.xlu0 %3494
        %v3512 = vlaneseq
        %v3513 = vand.u32 %v3512, 127
        %v3514 = vlaneseq
        %v3515 = vshrl.u32 %v3514, 7
        %v3516 = vsub.s32 %v3513, %v3515
        %v3517 = vrot.slane %v3450, %v3516
        %v3518 = vadd.s32 %v3513, 4294967288
        %v3519 = vlaneseq
        %v3520 = vshrl.u32 %v3519, 7
        %v3521 = vsub.s32 %v3518, %v3520
        %v3522 = vrot.slane %v3453, %v3521
        %vm3523 = vcmask 130112
        %v3524 = vsel %vm3523, %v3522, %v3517
        %v3525 = vlaneseq
        %v3526 = vshrl.u32 %v3525, 7
        %v3527 = vsub.s32 %v3513, %v3526
        %v3528 = vrot.slane %v3456, %v3527
        %v3529 = vlaneseq
        %v3530 = vshrl.u32 %v3529, 7
        %v3531 = vsub.s32 %v3518, %v3530
        %v3532 = vrot.slane %v3459, %v3531
        %v3533 = vsel %vm3523, %v3532, %v3528
        %v3534 = vlaneseq
        %v3535 = vshrl.u32 %v3534, 7
        %v3536 = vsub.s32 %v3513, %v3535
        %v3537 = vrot.slane %v3462, %v3536
        %v3538 = vlaneseq
        %v3539 = vshrl.u32 %v3538, 7
        %v3540 = vsub.s32 %v3518, %v3539
        %v3541 = vrot.slane %v3465, %v3540
        %v3542 = vsel %vm3523, %v3541, %v3537
        %v3543 = vlaneseq
        %v3544 = vshrl.u32 %v3543, 7
        %v3545 = vsub.s32 %v3513, %v3544
        %v3546 = vrot.slane %v3468, %v3545
        %v3547 = vlaneseq
        %v3548 = vshrl.u32 %v3547, 7
        %v3549 = vsub.s32 %v3518, %v3548
        %v3550 = vrot.slane %v3471, %v3549
        %v3551 = vsel %vm3523, %v3550, %v3546
        %v3552 = vlaneseq
        %v3553 = vshrl.u32 %v3552, 7
        %v3554 = vsub.s32 %v3513, %v3553
        %v3555 = vrot.slane %v3474, %v3554
        %v3556 = vlaneseq
        %v3557 = vshrl.u32 %v3556, 7
        %v3558 = vsub.s32 %v3518, %v3557
        %v3559 = vrot.slane %v3477, %v3558
        %v3560 = vsel %vm3523, %v3559, %v3555
        %v3561 = vlaneseq
        %v3562 = vshrl.u32 %v3561, 7
        %v3563 = vsub.s32 %v3513, %v3562
        %v3564 = vrot.slane %v3480, %v3563
        %v3565 = vlaneseq
        %v3566 = vshrl.u32 %v3565, 7
        %v3567 = vsub.s32 %v3518, %v3566
        %v3568 = vrot.slane %v3483, %v3567
        %v3569 = vsel %vm3523, %v3568, %v3564
        %v3570 = vlaneseq
        %v3571 = vshrl.u32 %v3570, 7
        %v3572 = vsub.s32 %v3513, %v3571
        %v3573 = vrot.slane %v3486, %v3572
        %v3574 = vlaneseq
        %v3575 = vshrl.u32 %v3574, 7
        %v3576 = vsub.s32 %v3518, %v3575
        %v3577 = vrot.slane %v3489, %v3576
        %v3578 = vsel %vm3523, %v3577, %v3573
        %v3579 = vlaneseq
        %v3580 = vshrl.u32 %v3579, 7
        %v3581 = vsub.s32 %v3513, %v3580
        %v3582 = vrot.slane %v3492, %v3581
        %v3583 = vlaneseq
        %v3584 = vshrl.u32 %v3583, 7
        %v3585 = vsub.s32 %v3518, %v3584
        %v3586 = vrot.slane %v3495, %v3585
        %v3587 = vsel %vm3523, %v3586, %v3582
        %vm3588 = vcmask 1041409
        %v3589 = vsel %vm3588, %v3533, %v3524
        %vm3590 = vcmask 1042434
        %v3591 = vsel %vm3590, %v3542, %v3589
        %vm3592 = vcmask 1043459
        %v3593 = vsel %vm3592, %v3551, %v3591
        %vm3594 = vcmask 1044484
        %v3595 = vsel %vm3594, %v3560, %v3593
        %vm3596 = vcmask 1045509
        %v3597 = vsel %vm3596, %v3569, %v3595
        %vm3598 = vcmask 1046534
        %v3599 = vsel %vm3598, %v3578, %v3597
        %vm3600 = vcmask 1047559
        %v3601 = vsel %vm3600, %v3587, %v3599
        %v3603 = vsel %vm551, %v3601, -inf
        %3604 = vmax.xlane.f32.xlu0 %v3603
        %v3605 = vpop.xlane.xlu0 %3604
        %v3607 = vlaneseq
        %v3608 = vshrl.u32 %v3607, 7
        %v3609 = vsub.s32 0, %v3608
        %v3610 = vrot.slane %v3605, %v3609
        %v3611 = vlaneseq
        %v3612 = vshrl.u32 %v3611, 7
        %v3613 = vsub.s32 1, %v3612
        %v3614 = vrot.slane %v3605, %v3613
        %v3615 = vlaneseq
        %v3616 = vshrl.u32 %v3615, 7
        %v3617 = vsub.s32 2, %v3616
        %v3618 = vrot.slane %v3605, %v3617
        %v3619 = vlaneseq
        %v3620 = vshrl.u32 %v3619, 7
        %v3621 = vsub.s32 3, %v3620
        %v3622 = vrot.slane %v3605, %v3621
        %v3623 = vlaneseq
        %v3624 = vshrl.u32 %v3623, 7
        %v3625 = vsub.s32 4, %v3624
        %v3626 = vrot.slane %v3605, %v3625
        %v3627 = vlaneseq
        %v3628 = vshrl.u32 %v3627, 7
        %v3629 = vsub.s32 5, %v3628
        %v3630 = vrot.slane %v3605, %v3629
        %v3631 = vlaneseq
        %v3632 = vshrl.u32 %v3631, 7
        %v3633 = vsub.s32 6, %v3632
        %v3634 = vrot.slane %v3605, %v3633
        %v3635 = vlaneseq
        %v3636 = vshrl.u32 %v3635, 7
        %v3637 = vsub.s32 7, %v3636
        %v3638 = vrot.slane %v3605, %v3637
        %v3647 = vsub.f32 %v3450, %v3610
        %v3648 = vsub.f32 %v3453, %v3610
        %v3649 = vsub.f32 %v3456, %v3614
        %v3650 = vsub.f32 %v3459, %v3614
        %v3651 = vsub.f32 %v3462, %v3618
        %v3652 = vsub.f32 %v3465, %v3618
        %v3653 = vsub.f32 %v3468, %v3622
        %v3654 = vsub.f32 %v3471, %v3622
        %v3655 = vsub.f32 %v3474, %v3626
        %v3656 = vsub.f32 %v3477, %v3626
        %v3657 = vsub.f32 %v3480, %v3630
        %v3658 = vsub.f32 %v3483, %v3630
        %v3659 = vsub.f32 %v3486, %v3634
        %v3660 = vsub.f32 %v3489, %v3634
        %v3661 = vsub.f32 %v3492, %v3638
        %v3662 = vsub.f32 %v3495, %v3638
        %v3663 = vmul.f32 %v3647, 1.442695
        %v3664 = vpow.pop %v3663
        %v3665 = vmul.f32 %v3648, 1.442695
        %v3666 = vpow.pop %v3665
        %v3667 = vmul.f32 %v3649, 1.442695
        %v3668 = vpow.pop %v3667
        %v3669 = vmul.f32 %v3650, 1.442695
        %v3670 = vpow.pop %v3669
        %v3671 = vmul.f32 %v3651, 1.442695
        %v3672 = vpow.pop %v3671
        %v3673 = vmul.f32 %v3652, 1.442695
        %v3674 = vpow.pop %v3673
        %v3675 = vmul.f32 %v3653, 1.442695
        %v3676 = vpow.pop %v3675
        %v3677 = vmul.f32 %v3654, 1.442695
        %v3678 = vpow.pop %v3677
        %v3679 = vmul.f32 %v3655, 1.442695
        %v3680 = vpow.pop %v3679
        %v3681 = vmul.f32 %v3656, 1.442695
        %v3682 = vpow.pop %v3681
        %v3683 = vmul.f32 %v3657, 1.442695
        %v3684 = vpow.pop %v3683
        %v3685 = vmul.f32 %v3658, 1.442695
        %v3686 = vpow.pop %v3685
        %v3687 = vmul.f32 %v3659, 1.442695
        %v3688 = vpow.pop %v3687
        %v3689 = vmul.f32 %v3660, 1.442695
        %v3690 = vpow.pop %v3689
        %v3691 = vmul.f32 %v3661, 1.442695
        %v3692 = vpow.pop %v3691
        %v3693 = vmul.f32 %v3662, 1.442695
        %v3694 = vpow.pop %v3693
        %3711 = vset.pattern.permute.xlu0 0
        %3712 = vperm.xlu0 %3711, %v3664
        %v3713 = vpop.permute.xlu0 %3712
        %3714 = vset.pattern.permute.xlu0 0
        %3715 = vperm.xlu0 %3714, %v3666
        %v3716 = vpop.permute.xlu0 %3715
        %3717 = vset.pattern.permute.xlu0 0
        %3718 = vperm.xlu0 %3717, %v3668
        %v3719 = vpop.permute.xlu0 %3718
        %3720 = vset.pattern.permute.xlu0 0
        %3721 = vperm.xlu0 %3720, %v3670
        %v3722 = vpop.permute.xlu0 %3721
        %3723 = vset.pattern.permute.xlu0 0
        %3724 = vperm.xlu0 %3723, %v3672
        %v3725 = vpop.permute.xlu0 %3724
        %3726 = vset.pattern.permute.xlu0 0
        %3727 = vperm.xlu0 %3726, %v3674
        %v3728 = vpop.permute.xlu0 %3727
        %3729 = vset.pattern.permute.xlu0 0
        %3730 = vperm.xlu0 %3729, %v3676
        %v3731 = vpop.permute.xlu0 %3730
        %3732 = vset.pattern.permute.xlu0 0
        %3733 = vperm.xlu0 %3732, %v3678
        %v3734 = vpop.permute.xlu0 %3733
        %3735 = vset.pattern.permute.xlu0 0
        %3736 = vperm.xlu0 %3735, %v3680
        %v3737 = vpop.permute.xlu0 %3736
        %3738 = vset.pattern.permute.xlu0 0
        %3739 = vperm.xlu0 %3738, %v3682
        %v3740 = vpop.permute.xlu0 %3739
        %3741 = vset.pattern.permute.xlu0 0
        %3742 = vperm.xlu0 %3741, %v3684
        %v3743 = vpop.permute.xlu0 %3742
        %3744 = vset.pattern.permute.xlu0 0
        %3745 = vperm.xlu0 %3744, %v3686
        %v3746 = vpop.permute.xlu0 %3745
        %3747 = vset.pattern.permute.xlu0 0
        %3748 = vperm.xlu0 %3747, %v3688
        %v3749 = vpop.permute.xlu0 %3748
        %3750 = vset.pattern.permute.xlu0 0
        %3751 = vperm.xlu0 %3750, %v3690
        %v3752 = vpop.permute.xlu0 %3751
        %3753 = vset.pattern.permute.xlu0 0
        %3754 = vperm.xlu0 %3753, %v3692
        %v3755 = vpop.permute.xlu0 %3754
        %3756 = vset.pattern.permute.xlu0 0
        %3757 = vperm.xlu0 %3756, %v3694
        %v3758 = vpop.permute.xlu0 %3757
        %v3759 = vlaneseq
        %v3760 = vshrl.u32 %v3759, 7
        %v3761 = vsub.s32 %v3513, %v3760
        %v3762 = vrot.slane %v3713, %v3761
        %v3763 = vlaneseq
        %v3764 = vshrl.u32 %v3763, 7
        %v3765 = vsub.s32 %v3518, %v3764
        %v3766 = vrot.slane %v3716, %v3765
        %v3767 = vsel %vm3523, %v3766, %v3762
        %v3768 = vlaneseq
        %v3769 = vshrl.u32 %v3768, 7
        %v3770 = vsub.s32 %v3513, %v3769
        %v3771 = vrot.slane %v3719, %v3770
        %v3772 = vlaneseq
        %v3773 = vshrl.u32 %v3772, 7
        %v3774 = vsub.s32 %v3518, %v3773
        %v3775 = vrot.slane %v3722, %v3774
        %v3776 = vsel %vm3523, %v3775, %v3771
        %v3777 = vlaneseq
        %v3778 = vshrl.u32 %v3777, 7
        %v3779 = vsub.s32 %v3513, %v3778
        %v3780 = vrot.slane %v3725, %v3779
        %v3781 = vlaneseq
        %v3782 = vshrl.u32 %v3781, 7
        %v3783 = vsub.s32 %v3518, %v3782
        %v3784 = vrot.slane %v3728, %v3783
        %v3785 = vsel %vm3523, %v3784, %v3780
        %v3786 = vlaneseq
        %v3787 = vshrl.u32 %v3786, 7
        %v3788 = vsub.s32 %v3513, %v3787
        %v3789 = vrot.slane %v3731, %v3788
        %v3790 = vlaneseq
        %v3791 = vshrl.u32 %v3790, 7
        %v3792 = vsub.s32 %v3518, %v3791
        %v3793 = vrot.slane %v3734, %v3792
        %v3794 = vsel %vm3523, %v3793, %v3789
        %v3795 = vlaneseq
        %v3796 = vshrl.u32 %v3795, 7
        %v3797 = vsub.s32 %v3513, %v3796
        %v3798 = vrot.slane %v3737, %v3797
        %v3799 = vlaneseq
        %v3800 = vshrl.u32 %v3799, 7
        %v3801 = vsub.s32 %v3518, %v3800
        %v3802 = vrot.slane %v3740, %v3801
        %v3803 = vsel %vm3523, %v3802, %v3798
        %v3804 = vlaneseq
        %v3805 = vshrl.u32 %v3804, 7
        %v3806 = vsub.s32 %v3513, %v3805
        %v3807 = vrot.slane %v3743, %v3806
        %v3808 = vlaneseq
        %v3809 = vshrl.u32 %v3808, 7
        %v3810 = vsub.s32 %v3518, %v3809
        %v3811 = vrot.slane %v3746, %v3810
        %v3812 = vsel %vm3523, %v3811, %v3807
        %v3813 = vlaneseq
        %v3814 = vshrl.u32 %v3813, 7
        %v3815 = vsub.s32 %v3513, %v3814
        %v3816 = vrot.slane %v3749, %v3815
        %v3817 = vlaneseq
        %v3818 = vshrl.u32 %v3817, 7
        %v3819 = vsub.s32 %v3518, %v3818
        %v3820 = vrot.slane %v3752, %v3819
        %v3821 = vsel %vm3523, %v3820, %v3816
        %v3822 = vlaneseq
        %v3823 = vshrl.u32 %v3822, 7
        %v3824 = vsub.s32 %v3513, %v3823
        %v3825 = vrot.slane %v3755, %v3824
        %v3826 = vlaneseq
        %v3827 = vshrl.u32 %v3826, 7
        %v3828 = vsub.s32 %v3518, %v3827
        %v3829 = vrot.slane %v3758, %v3828
        %v3830 = vsel %vm3523, %v3829, %v3825
        %v3831 = vsel %vm3588, %v3776, %v3767
        %v3832 = vsel %vm3590, %v3785, %v3831
        %v3833 = vsel %vm3592, %v3794, %v3832
        %v3834 = vsel %vm3594, %v3803, %v3833
        %v3835 = vsel %vm3596, %v3812, %v3834
        %v3836 = vsel %vm3598, %v3821, %v3835
        %v3837 = vsel %vm3600, %v3830, %v3836
        %v3839 = vsel %vm551, %v3837, 0.0
        %3840 = vadd.xlane.f32.xlu0 %v3839
        %v3841 = vpop.xlane.xlu0 %3840
        %v3842 = vlog2.pop %v3841
        %v3843 = vmul.f32 %v3842, 0.6931472
        %v3845 = vlaneseq
        %v3846 = vshrl.u32 %v3845, 7
        %v3847 = vsub.s32 0, %v3846
        %v3848 = vrot.slane %v3843, %v3847
        %v3849 = vlaneseq
        %v3850 = vshrl.u32 %v3849, 7
        %v3851 = vsub.s32 1, %v3850
        %v3852 = vrot.slane %v3843, %v3851
        %v3853 = vlaneseq
        %v3854 = vshrl.u32 %v3853, 7
        %v3855 = vsub.s32 2, %v3854
        %v3856 = vrot.slane %v3843, %v3855
        %v3857 = vlaneseq
        %v3858 = vshrl.u32 %v3857, 7
        %v3859 = vsub.s32 3, %v3858
        %v3860 = vrot.slane %v3843, %v3859
        %v3861 = vlaneseq
        %v3862 = vshrl.u32 %v3861, 7
        %v3863 = vsub.s32 4, %v3862
        %v3864 = vrot.slane %v3843, %v3863
        %v3865 = vlaneseq
        %v3866 = vshrl.u32 %v3865, 7
        %v3867 = vsub.s32 5, %v3866
        %v3868 = vrot.slane %v3843, %v3867
        %v3869 = vlaneseq
        %v3870 = vshrl.u32 %v3869, 7
        %v3871 = vsub.s32 6, %v3870
        %v3872 = vrot.slane %v3843, %v3871
        %v3873 = vlaneseq
        %v3874 = vshrl.u32 %v3873, 7
        %v3875 = vsub.s32 7, %v3874
        %v3876 = vrot.slane %v3843, %v3875
        %v3885 = vsub.f32 %v3647, %v3848
        %v3886 = vsub.f32 %v3648, %v3848
        %v3887 = vsub.f32 %v3649, %v3852
        %v3888 = vsub.f32 %v3650, %v3852
        %v3889 = vsub.f32 %v3651, %v3856
        %v3890 = vsub.f32 %v3652, %v3856
        %v3891 = vsub.f32 %v3653, %v3860
        %v3892 = vsub.f32 %v3654, %v3860
        %v3893 = vsub.f32 %v3655, %v3864
        %v3894 = vsub.f32 %v3656, %v3864
        %v3895 = vsub.f32 %v3657, %v3868
        %v3896 = vsub.f32 %v3658, %v3868
        %v3897 = vsub.f32 %v3659, %v3872
        %v3898 = vsub.f32 %v3660, %v3872
        %v3899 = vsub.f32 %v3661, %v3876
        %v3900 = vsub.f32 %v3662, %v3876
        %3917 = vset.pattern.permute.xlu0 0
        %3918 = vperm.xlu0 %3917, %v3885
        %v3919 = vpop.permute.xlu0 %3918
        %3920 = vset.pattern.permute.xlu0 0
        %3921 = vperm.xlu0 %3920, %v3886
        %v3922 = vpop.permute.xlu0 %3921
        %3923 = vset.pattern.permute.xlu0 0
        %3924 = vperm.xlu0 %3923, %v3887
        %v3925 = vpop.permute.xlu0 %3924
        %3926 = vset.pattern.permute.xlu0 0
        %3927 = vperm.xlu0 %3926, %v3888
        %v3928 = vpop.permute.xlu0 %3927
        %3929 = vset.pattern.permute.xlu0 0
        %3930 = vperm.xlu0 %3929, %v3889
        %v3931 = vpop.permute.xlu0 %3930
        %3932 = vset.pattern.permute.xlu0 0
        %3933 = vperm.xlu0 %3932, %v3890
        %v3934 = vpop.permute.xlu0 %3933
        %3935 = vset.pattern.permute.xlu0 0
        %3936 = vperm.xlu0 %3935, %v3891
        %v3937 = vpop.permute.xlu0 %3936
        %3938 = vset.pattern.permute.xlu0 0
        %3939 = vperm.xlu0 %3938, %v3892
        %v3940 = vpop.permute.xlu0 %3939
        %3941 = vset.pattern.permute.xlu0 0
        %3942 = vperm.xlu0 %3941, %v3893
        %v3943 = vpop.permute.xlu0 %3942
        %3944 = vset.pattern.permute.xlu0 0
        %3945 = vperm.xlu0 %3944, %v3894
        %v3946 = vpop.permute.xlu0 %3945
        %3947 = vset.pattern.permute.xlu0 0
        %3948 = vperm.xlu0 %3947, %v3895
        %v3949 = vpop.permute.xlu0 %3948
        %3950 = vset.pattern.permute.xlu0 0
        %3951 = vperm.xlu0 %3950, %v3896
        %v3952 = vpop.permute.xlu0 %3951
        %3953 = vset.pattern.permute.xlu0 0
        %3954 = vperm.xlu0 %3953, %v3897
        %v3955 = vpop.permute.xlu0 %3954
        %3956 = vset.pattern.permute.xlu0 0
        %3957 = vperm.xlu0 %3956, %v3898
        %v3958 = vpop.permute.xlu0 %3957
        %3959 = vset.pattern.permute.xlu0 0
        %3960 = vperm.xlu0 %3959, %v3899
        %v3961 = vpop.permute.xlu0 %3960
        %3962 = vset.pattern.permute.xlu0 0
        %3963 = vperm.xlu0 %3962, %v3900
        %v3964 = vpop.permute.xlu0 %3963
        %v3965 = vlaneseq
        %v3966 = vshrl.u32 %v3965, 7
        %v3967 = vsub.s32 %v3513, %v3966
        %v3968 = vrot.slane %v3919, %v3967
        %v3969 = vlaneseq
        %v3970 = vshrl.u32 %v3969, 7
        %v3971 = vsub.s32 %v3518, %v3970
        %v3972 = vrot.slane %v3922, %v3971
        %v3973 = vsel %vm3523, %v3972, %v3968
        %v3974 = vlaneseq
        %v3975 = vshrl.u32 %v3974, 7
        %v3976 = vsub.s32 %v3513, %v3975
        %v3977 = vrot.slane %v3925, %v3976
        %v3978 = vlaneseq
        %v3979 = vshrl.u32 %v3978, 7
        %v3980 = vsub.s32 %v3518, %v3979
        %v3981 = vrot.slane %v3928, %v3980
        %v3982 = vsel %vm3523, %v3981, %v3977
        %v3983 = vlaneseq
        %v3984 = vshrl.u32 %v3983, 7
        %v3985 = vsub.s32 %v3513, %v3984
        %v3986 = vrot.slane %v3931, %v3985
        %v3987 = vlaneseq
        %v3988 = vshrl.u32 %v3987, 7
        %v3989 = vsub.s32 %v3518, %v3988
        %v3990 = vrot.slane %v3934, %v3989
        %v3991 = vsel %vm3523, %v3990, %v3986
        %v3992 = vlaneseq
        %v3993 = vshrl.u32 %v3992, 7
        %v3994 = vsub.s32 %v3513, %v3993
        %v3995 = vrot.slane %v3937, %v3994
        %v3996 = vlaneseq
        %v3997 = vshrl.u32 %v3996, 7
        %v3998 = vsub.s32 %v3518, %v3997
        %v3999 = vrot.slane %v3940, %v3998
        %v4000 = vsel %vm3523, %v3999, %v3995
        %v4001 = vlaneseq
        %v4002 = vshrl.u32 %v4001, 7
        %v4003 = vsub.s32 %v3513, %v4002
        %v4004 = vrot.slane %v3943, %v4003
        %v4005 = vlaneseq
        %v4006 = vshrl.u32 %v4005, 7
        %v4007 = vsub.s32 %v3518, %v4006
        %v4008 = vrot.slane %v3946, %v4007
        %v4009 = vsel %vm3523, %v4008, %v4004
        %v4010 = vlaneseq
        %v4011 = vshrl.u32 %v4010, 7
        %v4012 = vsub.s32 %v3513, %v4011
        %v4013 = vrot.slane %v3949, %v4012
        %v4014 = vlaneseq
        %v4015 = vshrl.u32 %v4014, 7
        %v4016 = vsub.s32 %v3518, %v4015
        %v4017 = vrot.slane %v3952, %v4016
        %v4018 = vsel %vm3523, %v4017, %v4013
        %v4019 = vlaneseq
        %v4020 = vshrl.u32 %v4019, 7
        %v4021 = vsub.s32 %v3513, %v4020
        %v4022 = vrot.slane %v3955, %v4021
        %v4023 = vlaneseq
        %v4024 = vshrl.u32 %v4023, 7
        %v4025 = vsub.s32 %v3518, %v4024
        %v4026 = vrot.slane %v3958, %v4025
        %v4027 = vsel %vm3523, %v4026, %v4022
        %v4028 = vlaneseq
        %v4029 = vshrl.u32 %v4028, 7
        %v4030 = vsub.s32 %v3513, %v4029
        %v4031 = vrot.slane %v3961, %v4030
        %v4032 = vlaneseq
        %v4033 = vshrl.u32 %v4032, 7
        %v4034 = vsub.s32 %v3518, %v4033
        %v4035 = vrot.slane %v3964, %v4034
        %v4036 = vsel %vm3523, %v4035, %v4031
        %v4037 = vsel %vm3588, %v3982, %v3973
        %v4038 = vsel %vm3590, %v3991, %v4037
        %v4039 = vsel %vm3592, %v4000, %v4038
        %v4040 = vsel %vm3594, %v4009, %v4039
        %v4041 = vsel %vm3596, %v4018, %v4040
        %v4042 = vsel %vm3598, %v4027, %v4041
        %v4043 = vsel %vm3600, %v4036, %v4042
        %4045 = vst.msk [vmem:[%s483] sm:$0xff] %vm551, %v4043
        %v4046 = vlaneseq
        %v4047 = vshrl.u32 %v4046, 7
        %v4048 = vsub.s32 0, %v4047
        %v4049 = vrot.slane %v3283, %v4048
        %v4050 = vmul.f32 %v611, %v4049
        %v4051 = vmul.f32 %v614, %v4049
        %v4052 = vmul.f32 %v619, %v4049
        %v4053 = vmul.f32 %v622, %v4049
        %v4054 = vmul.f32 %v627, %v4049
        %v4055 = vmul.f32 %v630, %v4049
        %v4056 = vmul.f32 %v635, %v4049
        %v4057 = vmul.f32 %v638, %v4049
        %v4058 = vmul.f32 %v643, %v4049
        %v4059 = vmul.f32 %v646, %v4049
        %v4060 = vmul.f32 %v651, %v4049
        %v4061 = vmul.f32 %v654, %v4049
        %v4062 = vmul.f32 %v659, %v4049
        %v4063 = vmul.f32 %v662, %v4049
        %v4064 = vmul.f32 %v667, %v4049
        %v4065 = vmul.f32 %v670, %v4049
        %v4066 = vlaneseq
        %v4067 = vshrl.u32 %v4066, 7
        %v4068 = vsub.s32 1, %v4067
        %v4069 = vrot.slane %v3283, %v4068
        %v4070 = vmul.f32 %v1486, %v4069
        %v4071 = vmul.f32 %v1489, %v4069
        %v4072 = vmul.f32 %v1532, %v4069
        %v4073 = vmul.f32 %v1535, %v4069
        %v4074 = vmul.f32 %v1578, %v4069
        %v4075 = vmul.f32 %v1581, %v4069
        %v4076 = vmul.f32 %v1624, %v4069
        %v4077 = vmul.f32 %v1627, %v4069
        %v4078 = vmul.f32 %v1670, %v4069
        %v4079 = vmul.f32 %v1673, %v4069
        %v4080 = vmul.f32 %v1716, %v4069
        %v4081 = vmul.f32 %v1719, %v4069
        %v4082 = vmul.f32 %v1762, %v4069
        %v4083 = vmul.f32 %v1765, %v4069
        %v4084 = vmul.f32 %v1808, %v4069
        %v4085 = vmul.f32 %v1811, %v4069
        %v4086 = vadd.f32 %v4050, %v4070
        %v4087 = vadd.f32 %v4051, %v4071
        %v4088 = vadd.f32 %v4052, %v4072
        %v4089 = vadd.f32 %v4053, %v4073
        %v4090 = vadd.f32 %v4054, %v4074
        %v4091 = vadd.f32 %v4055, %v4075
        %v4092 = vadd.f32 %v4056, %v4076
        %v4093 = vadd.f32 %v4057, %v4077
        %v4094 = vadd.f32 %v4058, %v4078
        %v4095 = vadd.f32 %v4059, %v4079
        %v4096 = vadd.f32 %v4060, %v4080
        %v4097 = vadd.f32 %v4061, %v4081
        %v4098 = vadd.f32 %v4062, %v4082
        %v4099 = vadd.f32 %v4063, %v4083
        %v4100 = vadd.f32 %v4064, %v4084
        %v4101 = vadd.f32 %v4065, %v4085
        %v4102 = vlaneseq
        %v4103 = vshrl.u32 %v4102, 7
        %v4104 = vsub.s32 2, %v4103
        %v4105 = vrot.slane %v3283, %v4104
        %v4106 = vmul.f32 %v2486, %v4105
        %v4107 = vmul.f32 %v2487, %v4105
        %v4108 = vmul.f32 %v2488, %v4105
        %v4109 = vmul.f32 %v2489, %v4105
        %v4110 = vmul.f32 %v2490, %v4105
        %v4111 = vmul.f32 %v2491, %v4105
        %v4112 = vmul.f32 %v2492, %v4105
        %v4113 = vmul.f32 %v2493, %v4105
        %v4114 = vmul.f32 %v2494, %v4105
        %v4115 = vmul.f32 %v2495, %v4105
        %v4116 = vmul.f32 %v2496, %v4105
        %v4117 = vmul.f32 %v2497, %v4105
        %v4118 = vmul.f32 %v2498, %v4105
        %v4119 = vmul.f32 %v2499, %v4105
        %v4120 = vmul.f32 %v2500, %v4105
        %v4121 = vmul.f32 %v2501, %v4105
        %v4122 = vadd.f32 %v4086, %v4106
        %v4123 = vadd.f32 %v4087, %v4107
        %v4124 = vadd.f32 %v4088, %v4108
        %v4125 = vadd.f32 %v4089, %v4109
        %v4126 = vadd.f32 %v4090, %v4110
        %v4127 = vadd.f32 %v4091, %v4111
        %v4128 = vadd.f32 %v4092, %v4112
        %v4129 = vadd.f32 %v4093, %v4113
        %v4130 = vadd.f32 %v4094, %v4114
        %v4131 = vadd.f32 %v4095, %v4115
        %v4132 = vadd.f32 %v4096, %v4116
        %v4133 = vadd.f32 %v4097, %v4117
        %v4134 = vadd.f32 %v4098, %v4118
        %v4135 = vadd.f32 %v4099, %v4119
        %v4136 = vadd.f32 %v4100, %v4120
        %v4137 = vadd.f32 %v4101, %v4121
        %v4138 = vlaneseq
        %v4139 = vshrl.u32 %v4138, 7
        %v4140 = vsub.s32 3, %v4139
        %v4141 = vrot.slane %v3283, %v4140
        %v4142 = vmul.f32 %v2534, %v4141
        %v4143 = vmul.f32 %v2535, %v4141
        %v4144 = vmul.f32 %v2536, %v4141
        %v4145 = vmul.f32 %v2537, %v4141
        %v4146 = vmul.f32 %v2538, %v4141
        %v4147 = vmul.f32 %v2539, %v4141
        %v4148 = vmul.f32 %v2540, %v4141
        %v4149 = vmul.f32 %v2541, %v4141
        %v4150 = vmul.f32 %v2542, %v4141
        %v4151 = vmul.f32 %v2543, %v4141
        %v4152 = vmul.f32 %v2544, %v4141
        %v4153 = vmul.f32 %v2545, %v4141
        %v4154 = vmul.f32 %v2546, %v4141
        %v4155 = vmul.f32 %v2547, %v4141
        %v4156 = vmul.f32 %v2548, %v4141
        %v4157 = vmul.f32 %v2549, %v4141
        %v4158 = vadd.f32 %v4122, %v4142
        %v4159 = vadd.f32 %v4123, %v4143
        %v4160 = vadd.f32 %v4124, %v4144
        %v4161 = vadd.f32 %v4125, %v4145
        %v4162 = vadd.f32 %v4126, %v4146
        %v4163 = vadd.f32 %v4127, %v4147
        %v4164 = vadd.f32 %v4128, %v4148
        %v4165 = vadd.f32 %v4129, %v4149
        %v4166 = vadd.f32 %v4130, %v4150
        %v4167 = vadd.f32 %v4131, %v4151
        %v4168 = vadd.f32 %v4132, %v4152
        %v4169 = vadd.f32 %v4133, %v4153
        %v4170 = vadd.f32 %v4134, %v4154
        %v4171 = vadd.f32 %v4135, %v4155
        %v4172 = vadd.f32 %v4136, %v4156
        %v4173 = vadd.f32 %v4137, %v4157
        %v4174 = vlaneseq
        %v4175 = vshrl.u32 %v4174, 7
        %v4176 = vsub.s32 4, %v4175
        %v4177 = vrot.slane %v3283, %v4176
        %v4178 = vmul.f32 %v3220, %v4177
        %v4179 = vmul.f32 %v3223, %v4177
        %v4180 = vmul.f32 %v3228, %v4177
        %v4181 = vmul.f32 %v3231, %v4177
        %v4182 = vmul.f32 %v3236, %v4177
        %v4183 = vmul.f32 %v3239, %v4177
        %v4184 = vmul.f32 %v3244, %v4177
        %v4185 = vmul.f32 %v3247, %v4177
        %v4186 = vmul.f32 %v3252, %v4177
        %v4187 = vmul.f32 %v3255, %v4177
        %v4188 = vmul.f32 %v3260, %v4177
        %v4189 = vmul.f32 %v3263, %v4177
        %v4190 = vmul.f32 %v3268, %v4177
        %v4191 = vmul.f32 %v3271, %v4177
        %v4192 = vmul.f32 %v3276, %v4177
        %v4193 = vmul.f32 %v3279, %v4177
        %v4194 = vadd.f32 %v4158, %v4178
        %v4195 = vadd.f32 %v4159, %v4179
        %v4196 = vadd.f32 %v4160, %v4180
        %v4197 = vadd.f32 %v4161, %v4181
        %v4198 = vadd.f32 %v4162, %v4182
        %v4199 = vadd.f32 %v4163, %v4183
        %v4200 = vadd.f32 %v4164, %v4184
        %v4201 = vadd.f32 %v4165, %v4185
        %v4202 = vadd.f32 %v4166, %v4186
        %v4203 = vadd.f32 %v4167, %v4187
        %v4204 = vadd.f32 %v4168, %v4188
        %v4205 = vadd.f32 %v4169, %v4189
        %v4206 = vadd.f32 %v4170, %v4190
        %v4207 = vadd.f32 %v4171, %v4191
        %v4208 = vadd.f32 %v4172, %v4192
        %v4209 = vadd.f32 %v4173, %v4193
        %v4210 = vsel %vm773, %v4194, 0.0
        %4211 = vadd.xlane.f32.xlu0 %v4210
        %v4212 = vpop.xlane.xlu0 %4211
        %v4213 = vsel %vm773, %v4195, 0.0
        %4214 = vadd.xlane.f32.xlu0 %v4213
        %v4215 = vpop.xlane.xlu0 %4214
        %v4216 = vsel %vm773, %v4196, 0.0
        %4217 = vadd.xlane.f32.xlu0 %v4216
        %v4218 = vpop.xlane.xlu0 %4217
        %v4219 = vsel %vm773, %v4197, 0.0
        %4220 = vadd.xlane.f32.xlu0 %v4219
        %v4221 = vpop.xlane.xlu0 %4220
        %v4222 = vsel %vm773, %v4198, 0.0
        %4223 = vadd.xlane.f32.xlu0 %v4222
        %v4224 = vpop.xlane.xlu0 %4223
        %v4225 = vsel %vm773, %v4199, 0.0
        %4226 = vadd.xlane.f32.xlu0 %v4225
        %v4227 = vpop.xlane.xlu0 %4226
        %v4228 = vsel %vm773, %v4200, 0.0
        %4229 = vadd.xlane.f32.xlu0 %v4228
        %v4230 = vpop.xlane.xlu0 %4229
        %v4231 = vsel %vm773, %v4201, 0.0
        %4232 = vadd.xlane.f32.xlu0 %v4231
        %v4233 = vpop.xlane.xlu0 %4232
        %v4234 = vsel %vm773, %v4202, 0.0
        %4235 = vadd.xlane.f32.xlu0 %v4234
        %v4236 = vpop.xlane.xlu0 %4235
        %v4237 = vsel %vm773, %v4203, 0.0
        %4238 = vadd.xlane.f32.xlu0 %v4237
        %v4239 = vpop.xlane.xlu0 %4238
        %v4240 = vsel %vm773, %v4204, 0.0
        %4241 = vadd.xlane.f32.xlu0 %v4240
        %v4242 = vpop.xlane.xlu0 %4241
        %v4243 = vsel %vm773, %v4205, 0.0
        %4244 = vadd.xlane.f32.xlu0 %v4243
        %v4245 = vpop.xlane.xlu0 %4244
        %v4246 = vsel %vm773, %v4206, 0.0
        %4247 = vadd.xlane.f32.xlu0 %v4246
        %v4248 = vpop.xlane.xlu0 %4247
        %v4249 = vsel %vm773, %v4207, 0.0
        %4250 = vadd.xlane.f32.xlu0 %v4249
        %v4251 = vpop.xlane.xlu0 %4250
        %v4252 = vsel %vm773, %v4208, 0.0
        %4253 = vadd.xlane.f32.xlu0 %v4252
        %v4254 = vpop.xlane.xlu0 %4253
        %v4255 = vsel %vm773, %v4209, 0.0
        %4256 = vadd.xlane.f32.xlu0 %v4255
        %v4257 = vpop.xlane.xlu0 %4256
        %v4274 = vlaneseq
        %v4275 = vshrl.u32 %v4274, 7
        %v4276 = vsub.s32 %v3513, %v4275
        %v4277 = vrot.slane %v4212, %v4276
        %v4278 = vlaneseq
        %v4279 = vshrl.u32 %v4278, 7
        %v4280 = vsub.s32 %v3518, %v4279
        %v4281 = vrot.slane %v4215, %v4280
        %v4282 = vsel %vm3523, %v4281, %v4277
        %v4283 = vlaneseq
        %v4284 = vshrl.u32 %v4283, 7
        %v4285 = vsub.s32 %v3513, %v4284
        %v4286 = vrot.slane %v4218, %v4285
        %v4287 = vlaneseq
        %v4288 = vshrl.u32 %v4287, 7
        %v4289 = vsub.s32 %v3518, %v4288
        %v4290 = vrot.slane %v4221, %v4289
        %v4291 = vsel %vm3523, %v4290, %v4286
        %v4292 = vlaneseq
        %v4293 = vshrl.u32 %v4292, 7
        %v4294 = vsub.s32 %v3513, %v4293
        %v4295 = vrot.slane %v4224, %v4294
        %v4296 = vlaneseq
        %v4297 = vshrl.u32 %v4296, 7
        %v4298 = vsub.s32 %v3518, %v4297
        %v4299 = vrot.slane %v4227, %v4298
        %v4300 = vsel %vm3523, %v4299, %v4295
        %v4301 = vlaneseq
        %v4302 = vshrl.u32 %v4301, 7
        %v4303 = vsub.s32 %v3513, %v4302
        %v4304 = vrot.slane %v4230, %v4303
        %v4305 = vlaneseq
        %v4306 = vshrl.u32 %v4305, 7
        %v4307 = vsub.s32 %v3518, %v4306
        %v4308 = vrot.slane %v4233, %v4307
        %v4309 = vsel %vm3523, %v4308, %v4304
        %v4310 = vlaneseq
        %v4311 = vshrl.u32 %v4310, 7
        %v4312 = vsub.s32 %v3513, %v4311
        %v4313 = vrot.slane %v4236, %v4312
        %v4314 = vlaneseq
        %v4315 = vshrl.u32 %v4314, 7
        %v4316 = vsub.s32 %v3518, %v4315
        %v4317 = vrot.slane %v4239, %v4316
        %v4318 = vsel %vm3523, %v4317, %v4313
        %v4319 = vlaneseq
        %v4320 = vshrl.u32 %v4319, 7
        %v4321 = vsub.s32 %v3513, %v4320
        %v4322 = vrot.slane %v4242, %v4321
        %v4323 = vlaneseq
        %v4324 = vshrl.u32 %v4323, 7
        %v4325 = vsub.s32 %v3518, %v4324
        %v4326 = vrot.slane %v4245, %v4325
        %v4327 = vsel %vm3523, %v4326, %v4322
        %v4328 = vlaneseq
        %v4329 = vshrl.u32 %v4328, 7
        %v4330 = vsub.s32 %v3513, %v4329
        %v4331 = vrot.slane %v4248, %v4330
        %v4332 = vlaneseq
        %v4333 = vshrl.u32 %v4332, 7
        %v4334 = vsub.s32 %v3518, %v4333
        %v4335 = vrot.slane %v4251, %v4334
        %v4336 = vsel %vm3523, %v4335, %v4331
        %v4337 = vlaneseq
        %v4338 = vshrl.u32 %v4337, 7
        %v4339 = vsub.s32 %v3513, %v4338
        %v4340 = vrot.slane %v4254, %v4339
        %v4341 = vlaneseq
        %v4342 = vshrl.u32 %v4341, 7
        %v4343 = vsub.s32 %v3518, %v4342
        %v4344 = vrot.slane %v4257, %v4343
        %v4345 = vsel %vm3523, %v4344, %v4340
        %v4346 = vsel %vm3588, %v4291, %v4282
        %v4347 = vsel %vm3590, %v4300, %v4346
        %v4348 = vsel %vm3592, %v4309, %v4347
        %v4349 = vsel %vm3594, %v4318, %v4348
        %v4350 = vsel %vm3596, %v4327, %v4349
        %v4351 = vsel %vm3598, %v4336, %v4350
        %v4352 = vsel %vm3600, %v4345, %v4351
        %v4354 = vsel %vm551, %v4352, -inf
        %4355 = vmax.xlane.f32.xlu0 %v4354
        %v4356 = vpop.xlane.xlu0 %4355
        %v4358 = vlaneseq
        %v4359 = vshrl.u32 %v4358, 7
        %v4360 = vsub.s32 0, %v4359
        %v4361 = vrot.slane %v4356, %v4360
        %v4362 = vlaneseq
        %v4363 = vshrl.u32 %v4362, 7
        %v4364 = vsub.s32 1, %v4363
        %v4365 = vrot.slane %v4356, %v4364
        %v4366 = vlaneseq
        %v4367 = vshrl.u32 %v4366, 7
        %v4368 = vsub.s32 2, %v4367
        %v4369 = vrot.slane %v4356, %v4368
        %v4370 = vlaneseq
        %v4371 = vshrl.u32 %v4370, 7
        %v4372 = vsub.s32 3, %v4371
        %v4373 = vrot.slane %v4356, %v4372
        %v4374 = vlaneseq
        %v4375 = vshrl.u32 %v4374, 7
        %v4376 = vsub.s32 4, %v4375
        %v4377 = vrot.slane %v4356, %v4376
        %v4378 = vlaneseq
        %v4379 = vshrl.u32 %v4378, 7
        %v4380 = vsub.s32 5, %v4379
        %v4381 = vrot.slane %v4356, %v4380
        %v4382 = vlaneseq
        %v4383 = vshrl.u32 %v4382, 7
        %v4384 = vsub.s32 6, %v4383
        %v4385 = vrot.slane %v4356, %v4384
        %v4386 = vlaneseq
        %v4387 = vshrl.u32 %v4386, 7
        %v4388 = vsub.s32 7, %v4387
        %v4389 = vrot.slane %v4356, %v4388
        %v4398 = vsub.f32 %v4212, %v4361
        %v4399 = vsub.f32 %v4215, %v4361
        %v4400 = vsub.f32 %v4218, %v4365
        %v4401 = vsub.f32 %v4221, %v4365
        %v4402 = vsub.f32 %v4224, %v4369
        %v4403 = vsub.f32 %v4227, %v4369
        %v4404 = vsub.f32 %v4230, %v4373
        %v4405 = vsub.f32 %v4233, %v4373
        %v4406 = vsub.f32 %v4236, %v4377
        %v4407 = vsub.f32 %v4239, %v4377
        %v4408 = vsub.f32 %v4242, %v4381
        %v4409 = vsub.f32 %v4245, %v4381
        %v4410 = vsub.f32 %v4248, %v4385
        %v4411 = vsub.f32 %v4251, %v4385
        %v4412 = vsub.f32 %v4254, %v4389
        %v4413 = vsub.f32 %v4257, %v4389
        %v4414 = vmul.f32 %v4398, 1.442695
        %v4415 = vpow.pop %v4414
        %v4416 = vmul.f32 %v4399, 1.442695
        %v4417 = vpow.pop %v4416
        %v4418 = vmul.f32 %v4400, 1.442695
        %v4419 = vpow.pop %v4418
        %v4420 = vmul.f32 %v4401, 1.442695
        %v4421 = vpow.pop %v4420
        %v4422 = vmul.f32 %v4402, 1.442695
        %v4423 = vpow.pop %v4422
        %v4424 = vmul.f32 %v4403, 1.442695
        %v4425 = vpow.pop %v4424
        %v4426 = vmul.f32 %v4404, 1.442695
        %v4427 = vpow.pop %v4426
        %v4428 = vmul.f32 %v4405, 1.442695
        %v4429 = vpow.pop %v4428
        %v4430 = vmul.f32 %v4406, 1.442695
        %v4431 = vpow.pop %v4430
        %v4432 = vmul.f32 %v4407, 1.442695
        %v4433 = vpow.pop %v4432
        %v4434 = vmul.f32 %v4408, 1.442695
        %v4435 = vpow.pop %v4434
        %v4436 = vmul.f32 %v4409, 1.442695
        %v4437 = vpow.pop %v4436
        %v4438 = vmul.f32 %v4410, 1.442695
        %v4439 = vpow.pop %v4438
        %v4440 = vmul.f32 %v4411, 1.442695
        %v4441 = vpow.pop %v4440
        %v4442 = vmul.f32 %v4412, 1.442695
        %v4443 = vpow.pop %v4442
        %v4444 = vmul.f32 %v4413, 1.442695
        %v4445 = vpow.pop %v4444
        %4462 = vset.pattern.permute.xlu0 0
        %4463 = vperm.xlu0 %4462, %v4415
        %v4464 = vpop.permute.xlu0 %4463
        %4465 = vset.pattern.permute.xlu0 0
        %4466 = vperm.xlu0 %4465, %v4417
        %v4467 = vpop.permute.xlu0 %4466
        %4468 = vset.pattern.permute.xlu0 0
        %4469 = vperm.xlu0 %4468, %v4419
        %v4470 = vpop.permute.xlu0 %4469
        %4471 = vset.pattern.permute.xlu0 0
        %4472 = vperm.xlu0 %4471, %v4421
        %v4473 = vpop.permute.xlu0 %4472
        %4474 = vset.pattern.permute.xlu0 0
        %4475 = vperm.xlu0 %4474, %v4423
        %v4476 = vpop.permute.xlu0 %4475
        %4477 = vset.pattern.permute.xlu0 0
        %4478 = vperm.xlu0 %4477, %v4425
        %v4479 = vpop.permute.xlu0 %4478
        %4480 = vset.pattern.permute.xlu0 0
        %4481 = vperm.xlu0 %4480, %v4427
        %v4482 = vpop.permute.xlu0 %4481
        %4483 = vset.pattern.permute.xlu0 0
        %4484 = vperm.xlu0 %4483, %v4429
        %v4485 = vpop.permute.xlu0 %4484
        %4486 = vset.pattern.permute.xlu0 0
        %4487 = vperm.xlu0 %4486, %v4431
        %v4488 = vpop.permute.xlu0 %4487
        %4489 = vset.pattern.permute.xlu0 0
        %4490 = vperm.xlu0 %4489, %v4433
        %v4491 = vpop.permute.xlu0 %4490
        %4492 = vset.pattern.permute.xlu0 0
        %4493 = vperm.xlu0 %4492, %v4435
        %v4494 = vpop.permute.xlu0 %4493
        %4495 = vset.pattern.permute.xlu0 0
        %4496 = vperm.xlu0 %4495, %v4437
        %v4497 = vpop.permute.xlu0 %4496
        %4498 = vset.pattern.permute.xlu0 0
        %4499 = vperm.xlu0 %4498, %v4439
        %v4500 = vpop.permute.xlu0 %4499
        %4501 = vset.pattern.permute.xlu0 0
        %4502 = vperm.xlu0 %4501, %v4441
        %v4503 = vpop.permute.xlu0 %4502
        %4504 = vset.pattern.permute.xlu0 0
        %4505 = vperm.xlu0 %4504, %v4443
        %v4506 = vpop.permute.xlu0 %4505
        %4507 = vset.pattern.permute.xlu0 0
        %4508 = vperm.xlu0 %4507, %v4445
        %v4509 = vpop.permute.xlu0 %4508
        %v4510 = vlaneseq
        %v4511 = vshrl.u32 %v4510, 7
        %v4512 = vsub.s32 %v3513, %v4511
        %v4513 = vrot.slane %v4464, %v4512
        %v4514 = vlaneseq
        %v4515 = vshrl.u32 %v4514, 7
        %v4516 = vsub.s32 %v3518, %v4515
        %v4517 = vrot.slane %v4467, %v4516
        %v4518 = vsel %vm3523, %v4517, %v4513
        %v4519 = vlaneseq
        %v4520 = vshrl.u32 %v4519, 7
        %v4521 = vsub.s32 %v3513, %v4520
        %v4522 = vrot.slane %v4470, %v4521
        %v4523 = vlaneseq
        %v4524 = vshrl.u32 %v4523, 7
        %v4525 = vsub.s32 %v3518, %v4524
        %v4526 = vrot.slane %v4473, %v4525
        %v4527 = vsel %vm3523, %v4526, %v4522
        %v4528 = vlaneseq
        %v4529 = vshrl.u32 %v4528, 7
        %v4530 = vsub.s32 %v3513, %v4529
        %v4531 = vrot.slane %v4476, %v4530
        %v4532 = vlaneseq
        %v4533 = vshrl.u32 %v4532, 7
        %v4534 = vsub.s32 %v3518, %v4533
        %v4535 = vrot.slane %v4479, %v4534
        %v4536 = vsel %vm3523, %v4535, %v4531
        %v4537 = vlaneseq
        %v4538 = vshrl.u32 %v4537, 7
        %v4539 = vsub.s32 %v3513, %v4538
        %v4540 = vrot.slane %v4482, %v4539
        %v4541 = vlaneseq
        %v4542 = vshrl.u32 %v4541, 7
        %v4543 = vsub.s32 %v3518, %v4542
        %v4544 = vrot.slane %v4485, %v4543
        %v4545 = vsel %vm3523, %v4544, %v4540
        %v4546 = vlaneseq
        %v4547 = vshrl.u32 %v4546, 7
        %v4548 = vsub.s32 %v3513, %v4547
        %v4549 = vrot.slane %v4488, %v4548
        %v4550 = vlaneseq
        %v4551 = vshrl.u32 %v4550, 7
        %v4552 = vsub.s32 %v3518, %v4551
        %v4553 = vrot.slane %v4491, %v4552
        %v4554 = vsel %vm3523, %v4553, %v4549
        %v4555 = vlaneseq
        %v4556 = vshrl.u32 %v4555, 7
        %v4557 = vsub.s32 %v3513, %v4556
        %v4558 = vrot.slane %v4494, %v4557
        %v4559 = vlaneseq
        %v4560 = vshrl.u32 %v4559, 7
        %v4561 = vsub.s32 %v3518, %v4560
        %v4562 = vrot.slane %v4497, %v4561
        %v4563 = vsel %vm3523, %v4562, %v4558
        %v4564 = vlaneseq
        %v4565 = vshrl.u32 %v4564, 7
        %v4566 = vsub.s32 %v3513, %v4565
        %v4567 = vrot.slane %v4500, %v4566
        %v4568 = vlaneseq
        %v4569 = vshrl.u32 %v4568, 7
        %v4570 = vsub.s32 %v3518, %v4569
        %v4571 = vrot.slane %v4503, %v4570
        %v4572 = vsel %vm3523, %v4571, %v4567
        %v4573 = vlaneseq
        %v4574 = vshrl.u32 %v4573, 7
        %v4575 = vsub.s32 %v3513, %v4574
        %v4576 = vrot.slane %v4506, %v4575
        %v4577 = vlaneseq
        %v4578 = vshrl.u32 %v4577, 7
        %v4579 = vsub.s32 %v3518, %v4578
        %v4580 = vrot.slane %v4509, %v4579
        %v4581 = vsel %vm3523, %v4580, %v4576
        %v4582 = vsel %vm3588, %v4527, %v4518
        %v4583 = vsel %vm3590, %v4536, %v4582
        %v4584 = vsel %vm3592, %v4545, %v4583
        %v4585 = vsel %vm3594, %v4554, %v4584
        %v4586 = vsel %vm3596, %v4563, %v4585
        %v4587 = vsel %vm3598, %v4572, %v4586
        %v4588 = vsel %vm3600, %v4581, %v4587
        %v4590 = vsel %vm551, %v4588, 0.0
        %4591 = vadd.xlane.f32.xlu0 %v4590
        %v4592 = vpop.xlane.xlu0 %4591
        %v4593 = vlog2.pop %v4592
        %v4594 = vmul.f32 %v4593, 0.6931472
        %v4596 = vlaneseq
        %v4597 = vshrl.u32 %v4596, 7
        %v4598 = vsub.s32 0, %v4597
        %v4599 = vrot.slane %v4594, %v4598
        %v4600 = vlaneseq
        %v4601 = vshrl.u32 %v4600, 7
        %v4602 = vsub.s32 1, %v4601
        %v4603 = vrot.slane %v4594, %v4602
        %v4604 = vlaneseq
        %v4605 = vshrl.u32 %v4604, 7
        %v4606 = vsub.s32 2, %v4605
        %v4607 = vrot.slane %v4594, %v4606
        %v4608 = vlaneseq
        %v4609 = vshrl.u32 %v4608, 7
        %v4610 = vsub.s32 3, %v4609
        %v4611 = vrot.slane %v4594, %v4610
        %v4612 = vlaneseq
        %v4613 = vshrl.u32 %v4612, 7
        %v4614 = vsub.s32 4, %v4613
        %v4615 = vrot.slane %v4594, %v4614
        %v4616 = vlaneseq
        %v4617 = vshrl.u32 %v4616, 7
        %v4618 = vsub.s32 5, %v4617
        %v4619 = vrot.slane %v4594, %v4618
        %v4620 = vlaneseq
        %v4621 = vshrl.u32 %v4620, 7
        %v4622 = vsub.s32 6, %v4621
        %v4623 = vrot.slane %v4594, %v4622
        %v4624 = vlaneseq
        %v4625 = vshrl.u32 %v4624, 7
        %v4626 = vsub.s32 7, %v4625
        %v4627 = vrot.slane %v4594, %v4626
        %v4636 = vsub.f32 %v4398, %v4599
        %v4637 = vsub.f32 %v4399, %v4599
        %v4638 = vsub.f32 %v4400, %v4603
        %v4639 = vsub.f32 %v4401, %v4603
        %v4640 = vsub.f32 %v4402, %v4607
        %v4641 = vsub.f32 %v4403, %v4607
        %v4642 = vsub.f32 %v4404, %v4611
        %v4643 = vsub.f32 %v4405, %v4611
        %v4644 = vsub.f32 %v4406, %v4615
        %v4645 = vsub.f32 %v4407, %v4615
        %v4646 = vsub.f32 %v4408, %v4619
        %v4647 = vsub.f32 %v4409, %v4619
        %v4648 = vsub.f32 %v4410, %v4623
        %v4649 = vsub.f32 %v4411, %v4623
        %v4650 = vsub.f32 %v4412, %v4627
        %v4651 = vsub.f32 %v4413, %v4627
        %4668 = vset.pattern.permute.xlu0 0
        %4669 = vperm.xlu0 %4668, %v4636
        %v4670 = vpop.permute.xlu0 %4669
        %4671 = vset.pattern.permute.xlu0 0
        %4672 = vperm.xlu0 %4671, %v4637
        %v4673 = vpop.permute.xlu0 %4672
        %4674 = vset.pattern.permute.xlu0 0
        %4675 = vperm.xlu0 %4674, %v4638
        %v4676 = vpop.permute.xlu0 %4675
        %4677 = vset.pattern.permute.xlu0 0
        %4678 = vperm.xlu0 %4677, %v4639
        %v4679 = vpop.permute.xlu0 %4678
        %4680 = vset.pattern.permute.xlu0 0
        %4681 = vperm.xlu0 %4680, %v4640
        %v4682 = vpop.permute.xlu0 %4681
        %4683 = vset.pattern.permute.xlu0 0
        %4684 = vperm.xlu0 %4683, %v4641
        %v4685 = vpop.permute.xlu0 %4684
        %4686 = vset.pattern.permute.xlu0 0
        %4687 = vperm.xlu0 %4686, %v4642
        %v4688 = vpop.permute.xlu0 %4687
        %4689 = vset.pattern.permute.xlu0 0
        %4690 = vperm.xlu0 %4689, %v4643
        %v4691 = vpop.permute.xlu0 %4690
        %4692 = vset.pattern.permute.xlu0 0
        %4693 = vperm.xlu0 %4692, %v4644
        %v4694 = vpop.permute.xlu0 %4693
        %4695 = vset.pattern.permute.xlu0 0
        %4696 = vperm.xlu0 %4695, %v4645
        %v4697 = vpop.permute.xlu0 %4696
        %4698 = vset.pattern.permute.xlu0 0
        %4699 = vperm.xlu0 %4698, %v4646
        %v4700 = vpop.permute.xlu0 %4699
        %4701 = vset.pattern.permute.xlu0 0
        %4702 = vperm.xlu0 %4701, %v4647
        %v4703 = vpop.permute.xlu0 %4702
        %4704 = vset.pattern.permute.xlu0 0
        %4705 = vperm.xlu0 %4704, %v4648
        %v4706 = vpop.permute.xlu0 %4705
        %4707 = vset.pattern.permute.xlu0 0
        %4708 = vperm.xlu0 %4707, %v4649
        %v4709 = vpop.permute.xlu0 %4708
        %4710 = vset.pattern.permute.xlu0 0
        %4711 = vperm.xlu0 %4710, %v4650
        %v4712 = vpop.permute.xlu0 %4711
        %4713 = vset.pattern.permute.xlu0 0
        %4714 = vperm.xlu0 %4713, %v4651
        %v4715 = vpop.permute.xlu0 %4714
        %v4716 = vlaneseq
        %v4717 = vshrl.u32 %v4716, 7
        %v4718 = vsub.s32 %v3513, %v4717
        %v4719 = vrot.slane %v4670, %v4718
        %v4720 = vlaneseq
        %v4721 = vshrl.u32 %v4720, 7
        %v4722 = vsub.s32 %v3518, %v4721
        %v4723 = vrot.slane %v4673, %v4722
        %v4724 = vsel %vm3523, %v4723, %v4719
        %v4725 = vlaneseq
        %v4726 = vshrl.u32 %v4725, 7
        %v4727 = vsub.s32 %v3513, %v4726
        %v4728 = vrot.slane %v4676, %v4727
        %v4729 = vlaneseq
        %v4730 = vshrl.u32 %v4729, 7
        %v4731 = vsub.s32 %v3518, %v4730
        %v4732 = vrot.slane %v4679, %v4731
        %v4733 = vsel %vm3523, %v4732, %v4728
        %v4734 = vlaneseq
        %v4735 = vshrl.u32 %v4734, 7
        %v4736 = vsub.s32 %v3513, %v4735
        %v4737 = vrot.slane %v4682, %v4736
        %v4738 = vlaneseq
        %v4739 = vshrl.u32 %v4738, 7
        %v4740 = vsub.s32 %v3518, %v4739
        %v4741 = vrot.slane %v4685, %v4740
        %v4742 = vsel %vm3523, %v4741, %v4737
        %v4743 = vlaneseq
        %v4744 = vshrl.u32 %v4743, 7
        %v4745 = vsub.s32 %v3513, %v4744
        %v4746 = vrot.slane %v4688, %v4745
        %v4747 = vlaneseq
        %v4748 = vshrl.u32 %v4747, 7
        %v4749 = vsub.s32 %v3518, %v4748
        %v4750 = vrot.slane %v4691, %v4749
        %v4751 = vsel %vm3523, %v4750, %v4746
        %v4752 = vlaneseq
        %v4753 = vshrl.u32 %v4752, 7
        %v4754 = vsub.s32 %v3513, %v4753
        %v4755 = vrot.slane %v4694, %v4754
        %v4756 = vlaneseq
        %v4757 = vshrl.u32 %v4756, 7
        %v4758 = vsub.s32 %v3518, %v4757
        %v4759 = vrot.slane %v4697, %v4758
        %v4760 = vsel %vm3523, %v4759, %v4755
        %v4761 = vlaneseq
        %v4762 = vshrl.u32 %v4761, 7
        %v4763 = vsub.s32 %v3513, %v4762
        %v4764 = vrot.slane %v4700, %v4763
        %v4765 = vlaneseq
        %v4766 = vshrl.u32 %v4765, 7
        %v4767 = vsub.s32 %v3518, %v4766
        %v4768 = vrot.slane %v4703, %v4767
        %v4769 = vsel %vm3523, %v4768, %v4764
        %v4770 = vlaneseq
        %v4771 = vshrl.u32 %v4770, 7
        %v4772 = vsub.s32 %v3513, %v4771
        %v4773 = vrot.slane %v4706, %v4772
        %v4774 = vlaneseq
        %v4775 = vshrl.u32 %v4774, 7
        %v4776 = vsub.s32 %v3518, %v4775
        %v4777 = vrot.slane %v4709, %v4776
        %v4778 = vsel %vm3523, %v4777, %v4773
        %v4779 = vlaneseq
        %v4780 = vshrl.u32 %v4779, 7
        %v4781 = vsub.s32 %v3513, %v4780
        %v4782 = vrot.slane %v4712, %v4781
        %v4783 = vlaneseq
        %v4784 = vshrl.u32 %v4783, 7
        %v4785 = vsub.s32 %v3518, %v4784
        %v4786 = vrot.slane %v4715, %v4785
        %v4787 = vsel %vm3523, %v4786, %v4782
        %v4788 = vsel %vm3588, %v4733, %v4724
        %v4789 = vsel %vm3590, %v4742, %v4788
        %v4790 = vsel %vm3592, %v4751, %v4789
        %v4791 = vsel %vm3594, %v4760, %v4790
        %v4792 = vsel %vm3596, %v4769, %v4791
        %v4793 = vsel %vm3598, %v4778, %v4792
        %v4794 = vsel %vm3600, %v4787, %v4793
        %4796 = vst.msk [vmem:[%s490] sm:$0xff] %vm551, %v4794
        %s4797 = sand.u32 %s323, 1
        %s4798 = scalar_lea.sflag [#allocation3], %s4797
        %s4799 = sand.u32 %s323, 1
        %s4800 = smul.addr %s4799, 8
        %s4801 = scalar_lea.vmem [#allocation2], %s4800
        %s4802 = sand.u32 %s349, 1
        %s4803 = scalar_lea.sflag [#allocation5], %s4802
        %s4804 = sand.u32 %s349, 1
        %s4805 = smul.addr %s4804, 8
        %s4806 = scalar_lea.vmem [#allocation4], %s4805
        // Predicated region
        $region73: #{pipeline_forward.1} parent=71 // pred_check
          %p4807 = pneg %p333
        $region74: #{pipeline_forward.1} parent=71 // pred_check_branch
          %4809 = sbr.rel (%p4807) target = $region76
        $region75: #{pipeline_forward.1} parent=71 // pred_region
          %s4811 = ssub.s32 128, 128
          %4812 = vsyncadd %s4798, %s4811
          %s4813 = smul.addr %s32, 128
          %s4814 = scalar_lea.hbm %s13, %s4813
          %s4816 = sshll.u32 %s4801, 4
          %s4817 = int_to_ptr.vmem [resolvable:$true] %s4816
          %4819 = dma.vmem_to_hbm [thread:$0]  %s4817, 128, %s4814, %s4798
        $region76: #{pipeline_forward.1} parent=71 // pred_fallthru
          _
        // Predicated region
        $region77: #{pipeline_forward.1} parent=71 // pred_check
          %p4820 = pneg %p359
        $region78: #{pipeline_forward.1} parent=71 // pred_check_branch
          %4822 = sbr.rel (%p4820) target = $region80
        $region79: #{pipeline_forward.1} parent=71 // pred_region
          %s4824 = ssub.s32 128, 128
          %4825 = vsyncadd %s4803, %s4824
          %s4826 = smul.addr %s32, 128
          %s4827 = scalar_lea.hbm %s14, %s4826
          %s4829 = sshll.u32 %s4806, 4
          %s4830 = int_to_ptr.vmem [resolvable:$true] %s4829
          %4832 = dma.vmem_to_hbm [thread:$0]  %s4830, 128, %s4827, %s4803
        $region80: #{pipeline_forward.1} parent=71 // pred_fallthru
          _
      $region72: #{pipeline_forward.1} parent=5 // pred_fallthru
        _
      %p4833 = scmp.le.s32.totalorder 2, %s27
      // Predicated region
      $region81: #{pipeline_forward.1} parent=5 // pred_check
        %p4834 = pneg %p4833
      $region82: #{pipeline_forward.1} parent=5 // pred_check_branch
        %4836 = sbr.rel (%p4834) target = $region84
      $region83: #{pipeline_forward.1} parent=5 // pred_region
        %s4837 = ssub.s32 %s27, 2
        // Predicated region
        $region85: #{pipeline_forward.1} parent=83 // pred_check
          %p4838 = pneg %p339
        $region86: #{pipeline_forward.1} parent=83 // pred_check_branch
          %4840 = sbr.rel (%p4838) target = $region88
        $region87: #{pipeline_forward.1} parent=83 // pred_region
          %s4841 = sand.u32 %s324, 1
          %s4842 = scalar_lea.sflag [#allocation3], %s4841
          %s4843 = sand.u32 %s324, 1
          %s4844 = smul.addr %s4843, 8
          %s4845 = scalar_lea.vmem [#allocation2], %s4844
          %4846 = dma.done %s4842, 128
        $region88: #{pipeline_forward.1} parent=83 // pred_fallthru
          _
        // Predicated region
        $region89: #{pipeline_forward.1} parent=83 // pred_check
          %p4847 = pneg %p365
        $region90: #{pipeline_forward.1} parent=83 // pred_check_branch
          %4849 = sbr.rel (%p4847) target = $region92
        $region91: #{pipeline_forward.1} parent=83 // pred_region
          %s4850 = sand.u32 %s350, 1
          %s4851 = scalar_lea.sflag [#allocation5], %s4850
          %s4852 = sand.u32 %s350, 1
          %s4853 = smul.addr %s4852, 8
          %s4854 = scalar_lea.vmem [#allocation4], %s4853
          %4855 = dma.done %s4851, 128
        $region92: #{pipeline_forward.1} parent=83 // pred_fallthru
          _
      $region84: #{pipeline_forward.1} parent=5 // pred_fallthru
        _
    $region6: #{pipeline_forward.1} parent=1 // loop_footer
      %s31 = sadd.s32 1, %s27
    $region7: #{pipeline_forward.1} parent=1 // loop_footer_branch
      %26 = sbr.rel target = $region3
    $region8: #{pipeline_forward.1} parent=1 // loop_exit
      _
    %4856 = vsyncpa [#allocation3], 1
    %s4857 = scalar_lea.sflag [#allocation3], 1
    %4858 = vsyncpa %s4857, 1
    %4859 = vsyncpa [#allocation5], 1
    %s4860 = scalar_lea.sflag [#allocation5], 1
    %4861 = vsyncpa %s4860, 1

</llo_original>
